<compile_context>
chip_gen: v7x
topology: tpu7x:2x2x1
jax: 0.10.0
libtpu: 0.0.40
codegen_flags: <defaults>
</compile_context>

<pallas_src>
import math
import functools

import jax
import jax.numpy as jnp
from jax import lax
from jax.experimental import pallas as pl
from jax.experimental.pallas import tpu as pltpu

EPS = 1e-5            # GraphNorm eps (PyG default)
NUM_LAYERS = 10


# ------------------------------ fused kernel ------------------------------- #

def fused_pfae_kernel(ea_ref, src_ref, dst_ref, x_ref,
                      w1_ref, b1_ref, w2_ref, b2_ref,
                      wT_ref, b_ref, alpha_ref,
                      gw_ref, gb_ref, gms_ref, o_ref):
    """Entire PFAE_PDN forward in one invocation (grid=())."""
    f32, bf16 = jnp.float32, jnp.bfloat16
    E = ea_ref.shape[0]
    N, cin = x_ref.shape
    L, cmax, _ = wT_ref.shape

    # ---- one-hot structure from int32 edge indices (pure VPU compares) ----
    dst = dst_ref[...]                                                    # [1, E]
    DT = (dst == lax.broadcasted_iota(jnp.int32, (N, E), 0)).astype(bf16)  # [N, E]
    src = src_ref[...]                                                    # [E, 1]

    # ---- batched edge MLPs (all 10 layers) in one matmul pair.
    # w2/b2 are packed column-replicated so z is already [E, L*N] with each
    # layer's logit broadcast across its N-column adjacency block.
    ea = ea_ref[...].astype(bf16)                                         # [E, De]
    h = jnp.dot(ea, w1_ref[...], preferred_element_type=f32) + b1_ref[...]
    h = jnp.maximum(h, 0.0)                                               # [E, L*H]
    z = jnp.dot(h.astype(bf16), w2_ref[...], preferred_element_type=f32) + b2_ref[...]
    W_rep = jax.nn.sigmoid(z)                                             # [E, L*N]

    # ---- ALL 10 weighted adjacencies in ONE lane-dense matmul ----
    # WS[e, li*N + n] = w_e[li] * (src[e] == n);   A_flat = DT @ WS
    col_n = lax.broadcasted_iota(jnp.int32, (E, L * N), 1) % N
    WS = jnp.where(src == col_n, W_rep, 0.0).astype(bf16)                 # [E, L*N]
    A_flat = jnp.dot(DT, WS, preferred_element_type=f32)                  # [N, L*N]
    A_bf = A_flat.astype(bf16)

    # ---- node features, zero-padded to cmax lanes in-kernel (no XLA pad) ----
    x = x_ref[...]
    if cin < cmax:
        x = jnp.concatenate([x, jnp.zeros((N, cmax - cin), f32)], axis=1)
    x_bf = x.astype(bf16)

    for li in range(L):                                                   # static unroll
        a32 = A_flat[:, li * N:(li + 1) * N]                              # [N, N] f32
        # degree incl. implicit weight-1 self loop; XLU row-sum of precomputed A
        dis = lax.rsqrt(jnp.sum(a32, axis=1, keepdims=True) + 1.0)        # [N, 1]

        xl = jnp.dot(x_bf, wT_ref[li], preferred_element_type=f32)        # [N, cmax]
        y = dis * xl
        # D^-1/2 (A + I) D^-1/2 @ xl  ==  dis * (A @ (dis*xl) + dis*xl)
        agg = jnp.dot(A_bf[:, li * N:(li + 1) * N], y.astype(bf16),
                      preferred_element_type=f32) + y                     # [N, cmax]
        hcur = dis * agg + b_ref[li]                                      # [N, cmax]

        if li < L - 1:
            alpha = alpha_ref[li]                                         # SMEM scalar
            hcur = jnp.where(hcur >= 0.0, hcur, alpha * hcur)             # PReLU
            mean = jnp.mean(hcur, axis=0, keepdims=True)                  # GraphNorm
            cent = hcur - mean * gms_ref[li]
            var = jnp.mean(cent * cent, axis=0, keepdims=True)
            hcur = gw_ref[li] * cent * lax.rsqrt(var + EPS) + gb_ref[li]

        x = hcur
        x_bf = x.astype(bf16)

    o_ref[...] = x          # full cmax-lane (lane-dense, unmasked) store


# -------------------------------- wrapper ----------------------------------- #

def pfae_pdn_forward(x, edge_index, edge_attr, packed, *, out_channels):
    """x:[N,Cin] f32, edge_index:[2,E] int32 (row0=src, row1=dst), edge_attr:[E,De]."""
    N = x.shape[0]
    E = edge_attr.shape[0]
    L, cmax, _ = packed['wT'].shape

    src_col = edge_index[0].astype(jnp.int32).reshape(E, 1)
    dst_row = edge_index[1].astype(jnp.int32).reshape(1, E)

    vmem = pl.BlockSpec(memory_space=pltpu.MemorySpace.VMEM)
    smem = pl.BlockSpec(memory_space=pltpu.MemorySpace.SMEM)

    out_full = pl.pallas_call(
        fused_pfae_kernel,
        out_shape=jax.ShapeDtypeStruct((N, cmax), jnp.float32),
        in_specs=[vmem] * 10 + [smem] + [vmem] * 3,
        out_specs=vmem,
        cost_estimate=pl.CostEstimate(flops=2_200_000, transcendentals=8_000,
                                      bytes_accessed=60_000),
    )(edge_attr, src_col, dst_row, x,
      packed['mlp_w1'], packed['mlp_b1'], packed['mlp_w2'], packed['mlp_b2'],
      packed['wT'], packed['b'], packed['alpha'],
      packed['gn_w'], packed['gn_b'], packed['gn_ms'])

    return out_full[:, :out_channels]   # tiny XLA slice, fuses into consumer


# --------------------------- parameters & packing ---------------------------- #

def init_params(key, in_channels, out_channels, edge_features, hidden_channels):
    diff = in_channels - out_channels
    dims = ([in_channels]
            + [in_channels - math.floor(k * diff / 10) for k in range(1, 10)]
            + [out_channels])
    per_layer = []
    for li in range(NUM_LAYERS):
        cin, cout = dims[li], dims[li + 1]
        key, k1, k2, k3, k4, k5 = jax.random.split(key, 6)
        per_layer.append(dict(
            wT=jax.random.normal(k1, (cin, cout), jnp.float32) / jnp.sqrt(cin),
            b=0.01 * jax.random.normal(k2, (cout,), jnp.float32),
            mlp_w1=jax.random.normal(k3, (edge_features, hidden_channels),
                                     jnp.float32) / jnp.sqrt(edge_features),
            mlp_b1=0.01 * jax.random.normal(k4, (hidden_channels,), jnp.float32),
            mlp_w2=jax.random.normal(k5, (hidden_channels, 1),
                                     jnp.float32) / jnp.sqrt(hidden_channels),
            mlp_b2=jnp.zeros((1,), jnp.float32),
            alpha=jnp.float32(0.25),                     # torch PReLU default
            gn_w=jnp.ones((cout,), jnp.float32),         # PyG GraphNorm defaults
            gn_b=jnp.zeros((cout,), jnp.float32),
            gn_ms=jnp.ones((cout,), jnp.float32),
        ))
    return per_layer, dims


def pack_params(per_layer, dims, edge_features, hidden_channels, num_nodes):
    """Stack + zero-pad per-layer params to fixed shapes for the fused kernel.

    NOTE: mlp_w2 / mlp_b2 are packed column-replicated over the N node columns of
    each layer's adjacency block (ties this packing to the node count N)."""
    L = len(per_layer)
    cmax = max(dims)
    H = hidden_channels
    N = num_nodes

    wT = jnp.zeros((L, cmax, cmax), jnp.float32)
    b = jnp.zeros((L, 1, cmax), jnp.float32)
    alpha = jnp.zeros((L - 1,), jnp.float32)
    gw = jnp.zeros((L - 1, 1, cmax), jnp.float32)
    gb = jnp.zeros((L - 1, 1, cmax), jnp.float32)
    gms = jnp.zeros((L - 1, 1, cmax), jnp.float32)
    w1 = jnp.zeros((edge_features, L * H), jnp.float32)
    b1 = jnp.zeros((1, L * H), jnp.float32)
    w2 = jnp.zeros((L * H, L * N), jnp.float32)     # block-diag, column-replicated
    b2 = jnp.zeros((1, L * N), jnp.float32)

    for li, p in enumerate(per_layer):
        cin, cout = dims[li], dims[li + 1]
        wT = wT.at[li, :cin, :cout].set(p['wT'])
        b = b.at[li, 0, :cout].set(p['b'])
        if li < L - 1:
            alpha = alpha.at[li].set(p['alpha'])
            gw = gw.at[li, 0, :cout].set(p['gn_w'])
            gb = gb.at[li, 0, :cout].set(p['gn_b'])
            gms = gms.at[li, 0, :cout].set(p['gn_ms'])
        w1 = w1.at[:, li * H:(li + 1) * H].set(p['mlp_w1'])
        b1 = b1.at[0, li * H:(li + 1) * H].set(p['mlp_b1'])
        w2 = w2.at[li * H:(li + 1) * H, li * N:(li + 1) * N].set(
            jnp.tile(p['mlp_w2'], (1, N)))
        b2 = b2.at[0, li * N:(li + 1) * N].set(p['mlp_b2'][0])

    return dict(wT=wT.astype(jnp.bfloat16), b=b, alpha=alpha,
                gn_w=gw, gn_b=gb, gn_ms=gms,
                mlp_w1=w1.astype(jnp.bfloat16), mlp_b1=b1,
                mlp_w2=w2.astype(jnp.bfloat16), mlp_b2=b2)


# ----------------------------------- main ------------------------------------ #

if __name__ == "__main__":
    in_channels, out_channels = 32, 12
    edge_features, hidden_channels = 4, 8
    N, E = 16, 48

    key = jax.random.PRNGKey(0)
    kx, ks, kd, ke, kp = jax.random.split(key, 5)

    x = jax.random.normal(kx, (N, in_channels), jnp.float32)
    src = jax.random.randint(ks, (E,), 0, N, dtype=jnp.int32)
    off = jax.random.randint(kd, (E,), 1, N, dtype=jnp.int32)
    dst = (src + off) % N                                      # self-loop-free graph
    edge_index = jnp.stack([src, dst], axis=0)                 # [2, E]
    edge_attr = jax.random.normal(ke, (E, edge_features), jnp.float32)

    per_layer, dims = init_params(kp, in_channels, out_channels,
                                  edge_features, hidden_channels)
    packed = pack_params(per_layer, dims, edge_features, hidden_channels, N)

    forward = jax.jit(functools.partial(pfae_pdn_forward,
                                        out_channels=out_channels))
    out = forward(x, edge_index, edge_attr, packed)
    out = jax.block_until_ready(out)

    assert out.shape == (N, out_channels), out.shape
    assert bool(jnp.all(jnp.isfinite(out)))
    print("KERNEL_OK")
</pallas_src>

<mosaic_0001>
module attributes {stable_mosaic.version = 11 : i64} {
  func.func @fused_pfae_kernel(%arg0: memref<48x4xf32, #tpu.memory_space<vmem>>, %arg1: memref<48x1xi32, #tpu.memory_space<vmem>>, %arg2: memref<1x48xi32, #tpu.memory_space<vmem>>, %arg3: memref<16x32xf32, #tpu.memory_space<vmem>>, %arg4: memref<4x80xbf16, #tpu.memory_space<vmem>>, %arg5: memref<1x80xf32, #tpu.memory_space<vmem>>, %arg6: memref<80x160xbf16, #tpu.memory_space<vmem>>, %arg7: memref<1x160xf32, #tpu.memory_space<vmem>>, %arg8: memref<10x32x32xbf16, #tpu.memory_space<vmem>>, %arg9: memref<10x1x32xf32, #tpu.memory_space<vmem>>, %arg10: memref<9xf32, #tpu.memory_space<smem>>, %arg11: memref<9x1x32xf32, #tpu.memory_space<vmem>>, %arg12: memref<9x1x32xf32, #tpu.memory_space<vmem>>, %arg13: memref<9x1x32xf32, #tpu.memory_space<vmem>>, %arg14: memref<16x32xf32, #tpu.memory_space<vmem>>) attributes {dimension_semantics = [], scalar_prefetch = 0 : i64, scratch_operands = 0 : i64, tpu.core_type = #tpu.core_type<tc>} {
    %c0 = arith.constant 0 : index
    %c0_0 = arith.constant 0 : index
    %0 = vector.load %arg2[%c0, %c0_0] : memref<1x48xi32, #tpu.memory_space<vmem>>, vector<1x48xi32>
    %1 = tpu.iota {dimensions = array<i32: 0>} : vector<16x48xi32>
    %2 = vector.broadcast %0 : vector<1x48xi32> to vector<16x48xi32>
    %3 = arith.cmpi eq, %2, %1 : vector<16x48xi32>
    %4 = arith.extui %3 : vector<16x48xi1> to vector<16x48xi32>
    %5 = arith.sitofp %4 : vector<16x48xi32> to vector<16x48xf32>
    %6 = arith.truncf %5 : vector<16x48xf32> to vector<16x48xbf16>
    %c0_1 = arith.constant 0 : index
    %c0_2 = arith.constant 0 : index
    %7 = vector.load %arg1[%c0_1, %c0_2] : memref<48x1xi32, #tpu.memory_space<vmem>>, vector<48x1xi32>
    %c0_3 = arith.constant 0 : index
    %c0_4 = arith.constant 0 : index
    %8 = vector.load %arg0[%c0_3, %c0_4] : memref<48x4xf32, #tpu.memory_space<vmem>>, vector<48x4xf32>
    %9 = arith.truncf %8 : vector<48x4xf32> to vector<48x4xbf16>
    %c0_5 = arith.constant 0 : index
    %c0_6 = arith.constant 0 : index
    %10 = vector.load %arg4[%c0_5, %c0_6] : memref<4x80xbf16, #tpu.memory_space<vmem>>, vector<4x80xbf16>
    %cst = arith.constant dense<0.000000e+00> : vector<48x80xf32>
    %11 = tpu.matmul %9, %10, %cst {dimension_numbers = #tpu.dot_dimension_numbers<[1], [0], [0], [1], [0, 0, 1, 1], [], []>} : vector<48x4xbf16>, vector<4x80xbf16>, vector<48x80xf32> -> vector<48x80xf32>
    %c0_7 = arith.constant 0 : index
    %c0_8 = arith.constant 0 : index
    %12 = vector.load %arg5[%c0_7, %c0_8] : memref<1x80xf32, #tpu.memory_space<vmem>>, vector<1x80xf32>
    %13 = vector.broadcast %12 : vector<1x80xf32> to vector<48x80xf32>
    %14 = arith.addf %11, %13 : vector<48x80xf32>
    %cst_9 = arith.constant 0.000000e+00 : f32
    %15 = vector.broadcast %cst_9 : f32 to vector<48x80xf32>
    %16 = arith.maximumf %14, %15 : vector<48x80xf32>
    %17 = arith.truncf %16 : vector<48x80xf32> to vector<48x80xbf16>
    %c0_10 = arith.constant 0 : index
    %c0_11 = arith.constant 0 : index
    %18 = vector.load %arg6[%c0_10, %c0_11] : memref<80x160xbf16, #tpu.memory_space<vmem>>, vector<80x160xbf16>
    %cst_12 = arith.constant dense<0.000000e+00> : vector<48x160xf32>
    %19 = tpu.matmul %17, %18, %cst_12 {dimension_numbers = #tpu.dot_dimension_numbers<[1], [0], [0], [1], [0, 0, 1, 1], [], []>} : vector<48x80xbf16>, vector<80x160xbf16>, vector<48x160xf32> -> vector<48x160xf32>
    %c0_13 = arith.constant 0 : index
    %c0_14 = arith.constant 0 : index
    %20 = vector.load %arg7[%c0_13, %c0_14] : memref<1x160xf32, #tpu.memory_space<vmem>>, vector<1x160xf32>
    %21 = vector.broadcast %20 : vector<1x160xf32> to vector<48x160xf32>
    %22 = arith.addf %19, %21 : vector<48x160xf32>
    %23 = arith.negf %22 : vector<48x160xf32>
    %24 = math.exp %23 : vector<48x160xf32>
    %cst_15 = arith.constant 1.000000e+00 : f32
    %25 = vector.broadcast %cst_15 : f32 to vector<48x160xf32>
    %26 = arith.addf %25, %24 : vector<48x160xf32>
    %27 = arith.divf %25, %26 : vector<48x160xf32>
    %28 = tpu.iota {dimensions = array<i32: 1>} : vector<48x160xi32>
    %c16_i32 = arith.constant 16 : i32
    %c0_i32 = arith.constant 0 : i32
    %29 = arith.cmpi eq, %c16_i32, %c0_i32 : i32
    %c1_i32 = arith.constant 1 : i32
    %30 = arith.select %29, %c1_i32, %c16_i32 : i32
    %31 = vector.broadcast %30 : i32 to vector<48x160xi32>
    %32 = arith.remsi %28, %31 : vector<48x160xi32>
    %c0_i32_16 = arith.constant 0 : i32
    %33 = vector.broadcast %c0_i32_16 : i32 to vector<48x160xi32>
    %34 = arith.cmpi ne, %32, %33 : vector<48x160xi32>
    %c0_i32_17 = arith.constant 0 : i32
    %35 = vector.broadcast %c0_i32_17 : i32 to vector<48x160xi32>
    %36 = arith.cmpi slt, %32, %35 : vector<48x160xi32>
    %c0_i32_18 = arith.constant 0 : i32
    %37 = arith.cmpi slt, %30, %c0_i32_18 : i32
    %38 = vector.broadcast %37 : i1 to vector<48x160xi1>
    %39 = vector.broadcast %38 : vector<48x160xi1> to vector<48x160xi1>
    %40 = arith.xori %36, %39 : vector<48x160xi1>
    %41 = arith.andi %40, %34 : vector<48x160xi1>
    %42 = vector.broadcast %30 : i32 to vector<48x160xi32>
    %43 = arith.addi %32, %42 : vector<48x160xi32>
    %44 = arith.select %41, %43, %32 : vector<48x160xi1>, vector<48x160xi32>
    %45 = vector.broadcast %7 : vector<48x1xi32> to vector<48x160xi32>
    %46 = arith.cmpi eq, %45, %44 : vector<48x160xi32>
    %cst_19 = arith.constant 0.000000e+00 : f32
    %47 = vector.broadcast %cst_19 : f32 to vector<48x160xf32>
    %48 = arith.select %46, %27, %47 : vector<48x160xi1>, vector<48x160xf32>
    %49 = arith.truncf %48 : vector<48x160xf32> to vector<48x160xbf16>
    %cst_20 = arith.constant dense<0.000000e+00> : vector<16x160xf32>
    %50 = tpu.matmul %6, %49, %cst_20 {dimension_numbers = #tpu.dot_dimension_numbers<[1], [0], [0], [1], [0, 0, 1, 1], [], []>} : vector<16x48xbf16>, vector<48x160xbf16>, vector<16x160xf32> -> vector<16x160xf32>
    %51 = arith.truncf %50 : vector<16x160xf32> to vector<16x160xbf16>
    %c0_21 = arith.constant 0 : index
    %c0_22 = arith.constant 0 : index
    %52 = vector.load %arg3[%c0_21, %c0_22] : memref<16x32xf32, #tpu.memory_space<vmem>>, vector<16x32xf32>
    %53 = arith.truncf %52 : vector<16x32xf32> to vector<16x32xbf16>
    %54 = vector.extract_strided_slice %50 {offsets = [0, 0], sizes = [16, 16], strides = [1, 1]} : vector<16x160xf32> to vector<16x16xf32>
    %cst_23 = arith.constant dense<0.000000e+00> : vector<16xf32>
    %55 = vector.multi_reduction <add>, %54, %cst_23 [1] : vector<16x16xf32> to vector<16xf32>
    %56 = vector.shape_cast %55 : vector<16xf32> to vector<16x1xf32>
    %cst_24 = arith.constant 1.000000e+00 : f32
    %57 = vector.broadcast %cst_24 : f32 to vector<16x1xf32>
    %58 = arith.addf %56, %57 : vector<16x1xf32>
    %59 = math.rsqrt %58 : vector<16x1xf32>
    %c0_25 = arith.constant 0 : index
    %c0_26 = arith.constant 0 : index
    %c0_27 = arith.constant 0 : index
    %60 = vector.load %arg8[%c0_25, %c0_26, %c0_27] : memref<10x32x32xbf16, #tpu.memory_space<vmem>>, vector<1x32x32xbf16>
    %61 = vector.shape_cast %60 : vector<1x32x32xbf16> to vector<32x32xbf16>
    %cst_28 = arith.constant dense<0.000000e+00> : vector<16x32xf32>
    %62 = tpu.matmul %53, %61, %cst_28 {dimension_numbers = #tpu.dot_dimension_numbers<[1], [0], [0], [1], [0, 0, 1, 1], [], []>} : vector<16x32xbf16>, vector<32x32xbf16>, vector<16x32xf32> -> vector<16x32xf32>
    %63 = vector.broadcast %59 : vector<16x1xf32> to vector<16x32xf32>
    %64 = arith.mulf %63, %62 : vector<16x32xf32>
    %65 = vector.extract_strided_slice %51 {offsets = [0, 0], sizes = [16, 16], strides = [1, 1]} : vector<16x160xbf16> to vector<16x16xbf16>
    %66 = arith.truncf %64 : vector<16x32xf32> to vector<16x32xbf16>
    %cst_29 = arith.constant dense<0.000000e+00> : vector<16x32xf32>
    %67 = tpu.matmul %65, %66, %cst_29 {dimension_numbers = #tpu.dot_dimension_numbers<[1], [0], [0], [1], [0, 0, 1, 1], [], []>} : vector<16x16xbf16>, vector<16x32xbf16>, vector<16x32xf32> -> vector<16x32xf32>
    %68 = arith.addf %67, %64 : vector<16x32xf32>
    %69 = vector.broadcast %59 : vector<16x1xf32> to vector<16x32xf32>
    %70 = arith.mulf %69, %68 : vector<16x32xf32>
    %c0_30 = arith.constant 0 : index
    %c0_31 = arith.constant 0 : index
    %c0_32 = arith.constant 0 : index
    %71 = vector.load %arg9[%c0_30, %c0_31, %c0_32] : memref<10x1x32xf32, #tpu.memory_space<vmem>>, vector<1x1x32xf32>
    %72 = vector.shape_cast %71 : vector<1x1x32xf32> to vector<1x32xf32>
    %73 = vector.broadcast %72 : vector<1x32xf32> to vector<16x32xf32>
    %74 = arith.addf %70, %73 : vector<16x32xf32>
    %c0_33 = arith.constant 0 : index
    %75 = memref.load %arg10[%c0_33] : memref<9xf32, #tpu.memory_space<smem>>
    %cst_34 = arith.constant 0.000000e+00 : f32
    %76 = vector.broadcast %cst_34 : f32 to vector<16x32xf32>
    %77 = arith.cmpf oge, %74, %76 : vector<16x32xf32>
    %78 = vector.broadcast %75 : f32 to vector<16x32xf32>
    %79 = arith.mulf %78, %74 : vector<16x32xf32>
    %80 = arith.select %77, %74, %79 : vector<16x32xi1>, vector<16x32xf32>
    %cst_35 = arith.constant dense<0.000000e+00> : vector<32xf32>
    %81 = vector.multi_reduction <add>, %80, %cst_35 [0] : vector<16x32xf32> to vector<32xf32>
    %82 = vector.shape_cast %81 : vector<32xf32> to vector<1x32xf32>
    %cst_36 = arith.constant 1.600000e+01 : f32
    %83 = vector.broadcast %cst_36 : f32 to vector<1x32xf32>
    %84 = arith.divf %82, %83 : vector<1x32xf32>
    %c0_37 = arith.constant 0 : index
    %c0_38 = arith.constant 0 : index
    %c0_39 = arith.constant 0 : index
    %85 = vector.load %arg13[%c0_37, %c0_38, %c0_39] : memref<9x1x32xf32, #tpu.memory_space<vmem>>, vector<1x1x32xf32>
    %86 = vector.shape_cast %85 : vector<1x1x32xf32> to vector<1x32xf32>
    %87 = arith.mulf %84, %86 : vector<1x32xf32>
    %88 = vector.broadcast %87 : vector<1x32xf32> to vector<16x32xf32>
    %89 = arith.subf %80, %88 : vector<16x32xf32>
    %90 = arith.mulf %89, %89 : vector<16x32xf32>
    %cst_40 = arith.constant dense<0.000000e+00> : vector<32xf32>
    %91 = vector.multi_reduction <add>, %90, %cst_40 [0] : vector<16x32xf32> to vector<32xf32>
    %92 = vector.shape_cast %91 : vector<32xf32> to vector<1x32xf32>
    %cst_41 = arith.constant 1.600000e+01 : f32
    %93 = vector.broadcast %cst_41 : f32 to vector<1x32xf32>
    %94 = arith.divf %92, %93 : vector<1x32xf32>
    %c0_42 = arith.constant 0 : index
    %c0_43 = arith.constant 0 : index
    %c0_44 = arith.constant 0 : index
    %95 = vector.load %arg11[%c0_42, %c0_43, %c0_44] : memref<9x1x32xf32, #tpu.memory_space<vmem>>, vector<1x1x32xf32>
    %96 = vector.shape_cast %95 : vector<1x1x32xf32> to vector<1x32xf32>
    %97 = vector.broadcast %96 : vector<1x32xf32> to vector<16x32xf32>
    %98 = arith.mulf %97, %89 : vector<16x32xf32>
    %cst_45 = arith.constant 9.99999974E-6 : f32
    %99 = vector.broadcast %cst_45 : f32 to vector<1x32xf32>
    %100 = arith.addf %94, %99 : vector<1x32xf32>
    %101 = math.rsqrt %100 : vector<1x32xf32>
    %102 = vector.broadcast %101 : vector<1x32xf32> to vector<16x32xf32>
    %103 = arith.mulf %98, %102 : vector<16x32xf32>
    %c0_46 = arith.constant 0 : index
    %c0_47 = arith.constant 0 : index
    %c0_48 = arith.constant 0 : index
    %104 = vector.load %arg12[%c0_46, %c0_47, %c0_48] : memref<9x1x32xf32, #tpu.memory_space<vmem>>, vector<1x1x32xf32>
    %105 = vector.shape_cast %104 : vector<1x1x32xf32> to vector<1x32xf32>
    %106 = vector.broadcast %105 : vector<1x32xf32> to vector<16x32xf32>
    %107 = arith.addf %103, %106 : vector<16x32xf32>
    %108 = arith.truncf %107 : vector<16x32xf32> to vector<16x32xbf16>
    %109 = vector.extract_strided_slice %50 {offsets = [0, 16], sizes = [16, 16], strides = [1, 1]} : vector<16x160xf32> to vector<16x16xf32>
    %cst_49 = arith.constant dense<0.000000e+00> : vector<16xf32>
    %110 = vector.multi_reduction <add>, %109, %cst_49 [1] : vector<16x16xf32> to vector<16xf32>
    %111 = vector.shape_cast %110 : vector<16xf32> to vector<16x1xf32>
    %cst_50 = arith.constant 1.000000e+00 : f32
    %112 = vector.broadcast %cst_50 : f32 to vector<16x1xf32>
    %113 = arith.addf %111, %112 : vector<16x1xf32>
    %114 = math.rsqrt %113 : vector<16x1xf32>
    %c1 = arith.constant 1 : index
    %c0_51 = arith.constant 0 : index
    %c0_52 = arith.constant 0 : index
    %115 = vector.load %arg8[%c1, %c0_51, %c0_52] : memref<10x32x32xbf16, #tpu.memory_space<vmem>>, vector<1x32x32xbf16>
    %116 = vector.shape_cast %115 : vector<1x32x32xbf16> to vector<32x32xbf16>
    %cst_53 = arith.constant dense<0.000000e+00> : vector<16x32xf32>
    %117 = tpu.matmul %108, %116, %cst_53 {dimension_numbers = #tpu.dot_dimension_numbers<[1], [0], [0], [1], [0, 0, 1, 1], [], []>} : vector<16x32xbf16>, vector<32x32xbf16>, vector<16x32xf32> -> vector<16x32xf32>
    %118 = vector.broadcast %114 : vector<16x1xf32> to vector<16x32xf32>
    %119 = arith.mulf %118, %117 : vector<16x32xf32>
    %120 = vector.extract_strided_slice %51 {offsets = [0, 16], sizes = [16, 16], strides = [1, 1]} : vector<16x160xbf16> to vector<16x16xbf16>
    %121 = arith.truncf %119 : vector<16x32xf32> to vector<16x32xbf16>
    %cst_54 = arith.constant dense<0.000000e+00> : vector<16x32xf32>
    %122 = tpu.matmul %120, %121, %cst_54 {dimension_numbers = #tpu.dot_dimension_numbers<[1], [0], [0], [1], [0, 0, 1, 1], [], []>} : vector<16x16xbf16>, vector<16x32xbf16>, vector<16x32xf32> -> vector<16x32xf32>
    %123 = arith.addf %122, %119 : vector<16x32xf32>
    %124 = vector.broadcast %114 : vector<16x1xf32> to vector<16x32xf32>
    %125 = arith.mulf %124, %123 : vector<16x32xf32>
    %c1_55 = arith.constant 1 : index
    %c0_56 = arith.constant 0 : index
    %c0_57 = arith.constant 0 : index
    %126 = vector.load %arg9[%c1_55, %c0_56, %c0_57] : memref<10x1x32xf32, #tpu.memory_space<vmem>>, vector<1x1x32xf32>
    %127 = vector.shape_cast %126 : vector<1x1x32xf32> to vector<1x32xf32>
    %128 = vector.broadcast %127 : vector<1x32xf32> to vector<16x32xf32>
    %129 = arith.addf %125, %128 : vector<16x32xf32>
    %c1_58 = arith.constant 1 : index
    %130 = memref.load %arg10[%c1_58] : memref<9xf32, #tpu.memory_space<smem>>
    %cst_59 = arith.constant 0.000000e+00 : f32
    %131 = vector.broadcast %cst_59 : f32 to vector<16x32xf32>
    %132 = arith.cmpf oge, %129, %131 : vector<16x32xf32>
    %133 = vector.broadcast %130 : f32 to vector<16x32xf32>
    %134 = arith.mulf %133, %129 : vector<16x32xf32>
    %135 = arith.select %132, %129, %134 : vector<16x32xi1>, vector<16x32xf32>
    %cst_60 = arith.constant dense<0.000000e+00> : vector<32xf32>
    %136 = vector.multi_reduction <add>, %135, %cst_60 [0] : vector<16x32xf32> to vector<32xf32>
    %137 = vector.shape_cast %136 : vector<32xf32> to vector<1x32xf32>
    %cst_61 = arith.constant 1.600000e+01 : f32
    %138 = vector.broadcast %cst_61 : f32 to vector<1x32xf32>
    %139 = arith.divf %137, %138 : vector<1x32xf32>
    %c1_62 = arith.constant 1 : index
    %c0_63 = arith.constant 0 : index
    %c0_64 = arith.constant 0 : index
    %140 = vector.load %arg13[%c1_62, %c0_63, %c0_64] : memref<9x1x32xf32, #tpu.memory_space<vmem>>, vector<1x1x32xf32>
    %141 = vector.shape_cast %140 : vector<1x1x32xf32> to vector<1x32xf32>
    %142 = arith.mulf %139, %141 : vector<1x32xf32>
    %143 = vector.broadcast %142 : vector<1x32xf32> to vector<16x32xf32>
    %144 = arith.subf %135, %143 : vector<16x32xf32>
    %145 = arith.mulf %144, %144 : vector<16x32xf32>
    %cst_65 = arith.constant dense<0.000000e+00> : vector<32xf32>
    %146 = vector.multi_reduction <add>, %145, %cst_65 [0] : vector<16x32xf32> to vector<32xf32>
    %147 = vector.shape_cast %146 : vector<32xf32> to vector<1x32xf32>
    %cst_66 = arith.constant 1.600000e+01 : f32
    %148 = vector.broadcast %cst_66 : f32 to vector<1x32xf32>
    %149 = arith.divf %147, %148 : vector<1x32xf32>
    %c1_67 = arith.constant 1 : index
    %c0_68 = arith.constant 0 : index
    %c0_69 = arith.constant 0 : index
    %150 = vector.load %arg11[%c1_67, %c0_68, %c0_69] : memref<9x1x32xf32, #tpu.memory_space<vmem>>, vector<1x1x32xf32>
    %151 = vector.shape_cast %150 : vector<1x1x32xf32> to vector<1x32xf32>
    %152 = vector.broadcast %151 : vector<1x32xf32> to vector<16x32xf32>
    %153 = arith.mulf %152, %144 : vector<16x32xf32>
    %cst_70 = arith.constant 9.99999974E-6 : f32
    %154 = vector.broadcast %cst_70 : f32 to vector<1x32xf32>
    %155 = arith.addf %149, %154 : vector<1x32xf32>
    %156 = math.rsqrt %155 : vector<1x32xf32>
    %157 = vector.broadcast %156 : vector<1x32xf32> to vector<16x32xf32>
    %158 = arith.mulf %153, %157 : vector<16x32xf32>
    %c1_71 = arith.constant 1 : index
    %c0_72 = arith.constant 0 : index
    %c0_73 = arith.constant 0 : index
    %159 = vector.load %arg12[%c1_71, %c0_72, %c0_73] : memref<9x1x32xf32, #tpu.memory_space<vmem>>, vector<1x1x32xf32>
    %160 = vector.shape_cast %159 : vector<1x1x32xf32> to vector<1x32xf32>
    %161 = vector.broadcast %160 : vector<1x32xf32> to vector<16x32xf32>
    %162 = arith.addf %158, %161 : vector<16x32xf32>
    %163 = arith.truncf %162 : vector<16x32xf32> to vector<16x32xbf16>
    %164 = vector.extract_strided_slice %50 {offsets = [0, 32], sizes = [16, 16], strides = [1, 1]} : vector<16x160xf32> to vector<16x16xf32>
    %cst_74 = arith.constant dense<0.000000e+00> : vector<16xf32>
    %165 = vector.multi_reduction <add>, %164, %cst_74 [1] : vector<16x16xf32> to vector<16xf32>
    %166 = vector.shape_cast %165 : vector<16xf32> to vector<16x1xf32>
    %cst_75 = arith.constant 1.000000e+00 : f32
    %167 = vector.broadcast %cst_75 : f32 to vector<16x1xf32>
    %168 = arith.addf %166, %167 : vector<16x1xf32>
    %169 = math.rsqrt %168 : vector<16x1xf32>
    %c2 = arith.constant 2 : index
    %c0_76 = arith.constant 0 : index
    %c0_77 = arith.constant 0 : index
    %170 = vector.load %arg8[%c2, %c0_76, %c0_77] : memref<10x32x32xbf16, #tpu.memory_space<vmem>>, vector<1x32x32xbf16>
    %171 = vector.shape_cast %170 : vector<1x32x32xbf16> to vector<32x32xbf16>
    %cst_78 = arith.constant dense<0.000000e+00> : vector<16x32xf32>
    %172 = tpu.matmul %163, %171, %cst_78 {dimension_numbers = #tpu.dot_dimension_numbers<[1], [0], [0], [1], [0, 0, 1, 1], [], []>} : vector<16x32xbf16>, vector<32x32xbf16>, vector<16x32xf32> -> vector<16x32xf32>
    %173 = vector.broadcast %169 : vector<16x1xf32> to vector<16x32xf32>
    %174 = arith.mulf %173, %172 : vector<16x32xf32>
    %175 = vector.extract_strided_slice %51 {offsets = [0, 32], sizes = [16, 16], strides = [1, 1]} : vector<16x160xbf16> to vector<16x16xbf16>
    %176 = arith.truncf %174 : vector<16x32xf32> to vector<16x32xbf16>
    %cst_79 = arith.constant dense<0.000000e+00> : vector<16x32xf32>
    %177 = tpu.matmul %175, %176, %cst_79 {dimension_numbers = #tpu.dot_dimension_numbers<[1], [0], [0], [1], [0, 0, 1, 1], [], []>} : vector<16x16xbf16>, vector<16x32xbf16>, vector<16x32xf32> -> vector<16x32xf32>
    %178 = arith.addf %177, %174 : vector<16x32xf32>
    %179 = vector.broadcast %169 : vector<16x1xf32> to vector<16x32xf32>
    %180 = arith.mulf %179, %178 : vector<16x32xf32>
    %c2_80 = arith.constant 2 : index
    %c0_81 = arith.constant 0 : index
    %c0_82 = arith.constant 0 : index
    %181 = vector.load %arg9[%c2_80, %c0_81, %c0_82] : memref<10x1x32xf32, #tpu.memory_space<vmem>>, vector<1x1x32xf32>
    %182 = vector.shape_cast %181 : vector<1x1x32xf32> to vector<1x32xf32>
    %183 = vector.broadcast %182 : vector<1x32xf32> to vector<16x32xf32>
    %184 = arith.addf %180, %183 : vector<16x32xf32>
    %c2_83 = arith.constant 2 : index
    %185 = memref.load %arg10[%c2_83] : memref<9xf32, #tpu.memory_space<smem>>
    %cst_84 = arith.constant 0.000000e+00 : f32
    %186 = vector.broadcast %cst_84 : f32 to vector<16x32xf32>
    %187 = arith.cmpf oge, %184, %186 : vector<16x32xf32>
    %188 = vector.broadcast %185 : f32 to vector<16x32xf32>
    %189 = arith.mulf %188, %184 : vector<16x32xf32>
    %190 = arith.select %187, %184, %189 : vector<16x32xi1>, vector<16x32xf32>
    %cst_85 = arith.constant dense<0.000000e+00> : vector<32xf32>
    %191 = vector.multi_reduction <add>, %190, %cst_85 [0] : vector<16x32xf32> to vector<32xf32>
    %192 = vector.shape_cast %191 : vector<32xf32> to vector<1x32xf32>
    %cst_86 = arith.constant 1.600000e+01 : f32
    %193 = vector.broadcast %cst_86 : f32 to vector<1x32xf32>
    %194 = arith.divf %192, %193 : vector<1x32xf32>
    %c2_87 = arith.constant 2 : index
    %c0_88 = arith.constant 0 : index
    %c0_89 = arith.constant 0 : index
    %195 = vector.load %arg13[%c2_87, %c0_88, %c0_89] : memref<9x1x32xf32, #tpu.memory_space<vmem>>, vector<1x1x32xf32>
    %196 = vector.shape_cast %195 : vector<1x1x32xf32> to vector<1x32xf32>
    %197 = arith.mulf %194, %196 : vector<1x32xf32>
    %198 = vector.broadcast %197 : vector<1x32xf32> to vector<16x32xf32>
    %199 = arith.subf %190, %198 : vector<16x32xf32>
    %200 = arith.mulf %199, %199 : vector<16x32xf32>
    %cst_90 = arith.constant dense<0.000000e+00> : vector<32xf32>
    %201 = vector.multi_reduction <add>, %200, %cst_90 [0] : vector<16x32xf32> to vector<32xf32>
    %202 = vector.shape_cast %201 : vector<32xf32> to vector<1x32xf32>
    %cst_91 = arith.constant 1.600000e+01 : f32
    %203 = vector.broadcast %cst_91 : f32 to vector<1x32xf32>
    %204 = arith.divf %202, %203 : vector<1x32xf32>
    %c2_92 = arith.constant 2 : index
    %c0_93 = arith.constant 0 : index
    %c0_94 = arith.constant 0 : index
    %205 = vector.load %arg11[%c2_92, %c0_93, %c0_94] : memref<9x1x32xf32, #tpu.memory_space<vmem>>, vector<1x1x32xf32>
    %206 = vector.shape_cast %205 : vector<1x1x32xf32> to vector<1x32xf32>
    %207 = vector.broadcast %206 : vector<1x32xf32> to vector<16x32xf32>
    %208 = arith.mulf %207, %199 : vector<16x32xf32>
    %cst_95 = arith.constant 9.99999974E-6 : f32
    %209 = vector.broadcast %cst_95 : f32 to vector<1x32xf32>
    %210 = arith.addf %204, %209 : vector<1x32xf32>
    %211 = math.rsqrt %210 : vector<1x32xf32>
    %212 = vector.broadcast %211 : vector<1x32xf32> to vector<16x32xf32>
    %213 = arith.mulf %208, %212 : vector<16x32xf32>
    %c2_96 = arith.constant 2 : index
    %c0_97 = arith.constant 0 : index
    %c0_98 = arith.constant 0 : index
    %214 = vector.load %arg12[%c2_96, %c0_97, %c0_98] : memref<9x1x32xf32, #tpu.memory_space<vmem>>, vector<1x1x32xf32>
    %215 = vector.shape_cast %214 : vector<1x1x32xf32> to vector<1x32xf32>
    %216 = vector.broadcast %215 : vector<1x32xf32> to vector<16x32xf32>
    %217 = arith.addf %213, %216 : vector<16x32xf32>
    %218 = arith.truncf %217 : vector<16x32xf32> to vector<16x32xbf16>
    %219 = vector.extract_strided_slice %50 {offsets = [0, 48], sizes = [16, 16], strides = [1, 1]} : vector<16x160xf32> to vector<16x16xf32>
    %cst_99 = arith.constant dense<0.000000e+00> : vector<16xf32>
    %220 = vector.multi_reduction <add>, %219, %cst_99 [1] : vector<16x16xf32> to vector<16xf32>
    %221 = vector.shape_cast %220 : vector<16xf32> to vector<16x1xf32>
    %cst_100 = arith.constant 1.000000e+00 : f32
    %222 = vector.broadcast %cst_100 : f32 to vector<16x1xf32>
    %223 = arith.addf %221, %222 : vector<16x1xf32>
    %224 = math.rsqrt %223 : vector<16x1xf32>
    %c3 = arith.constant 3 : index
    %c0_101 = arith.constant 0 : index
    %c0_102 = arith.constant 0 : index
    %225 = vector.load %arg8[%c3, %c0_101, %c0_102] : memref<10x32x32xbf16, #tpu.memory_space<vmem>>, vector<1x32x32xbf16>
    %226 = vector.shape_cast %225 : vector<1x32x32xbf16> to vector<32x32xbf16>
    %cst_103 = arith.constant dense<0.000000e+00> : vector<16x32xf32>
    %227 = tpu.matmul %218, %226, %cst_103 {dimension_numbers = #tpu.dot_dimension_numbers<[1], [0], [0], [1], [0, 0, 1, 1], [], []>} : vector<16x32xbf16>, vector<32x32xbf16>, vector<16x32xf32> -> vector<16x32xf32>
    %228 = vector.broadcast %224 : vector<16x1xf32> to vector<16x32xf32>
    %229 = arith.mulf %228, %227 : vector<16x32xf32>
    %230 = vector.extract_strided_slice %51 {offsets = [0, 48], sizes = [16, 16], strides = [1, 1]} : vector<16x160xbf16> to vector<16x16xbf16>
    %231 = arith.truncf %229 : vector<16x32xf32> to vector<16x32xbf16>
    %cst_104 = arith.constant dense<0.000000e+00> : vector<16x32xf32>
    %232 = tpu.matmul %230, %231, %cst_104 {dimension_numbers = #tpu.dot_dimension_numbers<[1], [0], [0], [1], [0, 0, 1, 1], [], []>} : vector<16x16xbf16>, vector<16x32xbf16>, vector<16x32xf32> -> vector<16x32xf32>
    %233 = arith.addf %232, %229 : vector<16x32xf32>
    %234 = vector.broadcast %224 : vector<16x1xf32> to vector<16x32xf32>
    %235 = arith.mulf %234, %233 : vector<16x32xf32>
    %c3_105 = arith.constant 3 : index
    %c0_106 = arith.constant 0 : index
    %c0_107 = arith.constant 0 : index
    %236 = vector.load %arg9[%c3_105, %c0_106, %c0_107] : memref<10x1x32xf32, #tpu.memory_space<vmem>>, vector<1x1x32xf32>
    %237 = vector.shape_cast %236 : vector<1x1x32xf32> to vector<1x32xf32>
    %238 = vector.broadcast %237 : vector<1x32xf32> to vector<16x32xf32>
    %239 = arith.addf %235, %238 : vector<16x32xf32>
    %c3_108 = arith.constant 3 : index
    %240 = memref.load %arg10[%c3_108] : memref<9xf32, #tpu.memory_space<smem>>
    %cst_109 = arith.constant 0.000000e+00 : f32
    %241 = vector.broadcast %cst_109 : f32 to vector<16x32xf32>
    %242 = arith.cmpf oge, %239, %241 : vector<16x32xf32>
    %243 = vector.broadcast %240 : f32 to vector<16x32xf32>
    %244 = arith.mulf %243, %239 : vector<16x32xf32>
    %245 = arith.select %242, %239, %244 : vector<16x32xi1>, vector<16x32xf32>
    %cst_110 = arith.constant dense<0.000000e+00> : vector<32xf32>
    %246 = vector.multi_reduction <add>, %245, %cst_110 [0] : vector<16x32xf32> to vector<32xf32>
    %247 = vector.shape_cast %246 : vector<32xf32> to vector<1x32xf32>
    %cst_111 = arith.constant 1.600000e+01 : f32
    %248 = vector.broadcast %cst_111 : f32 to vector<1x32xf32>
    %249 = arith.divf %247, %248 : vector<1x32xf32>
    %c3_112 = arith.constant 3 : index
    %c0_113 = arith.constant 0 : index
    %c0_114 = arith.constant 0 : index
    %250 = vector.load %arg13[%c3_112, %c0_113, %c0_114] : memref<9x1x32xf32, #tpu.memory_space<vmem>>, vector<1x1x32xf32>
    %251 = vector.shape_cast %250 : vector<1x1x32xf32> to vector<1x32xf32>
    %252 = arith.mulf %249, %251 : vector<1x32xf32>
    %253 = vector.broadcast %252 : vector<1x32xf32> to vector<16x32xf32>
    %254 = arith.subf %245, %253 : vector<16x32xf32>
    %255 = arith.mulf %254, %254 : vector<16x32xf32>
    %cst_115 = arith.constant dense<0.000000e+00> : vector<32xf32>
    %256 = vector.multi_reduction <add>, %255, %cst_115 [0] : vector<16x32xf32> to vector<32xf32>
    %257 = vector.shape_cast %256 : vector<32xf32> to vector<1x32xf32>
    %cst_116 = arith.constant 1.600000e+01 : f32
    %258 = vector.broadcast %cst_116 : f32 to vector<1x32xf32>
    %259 = arith.divf %257, %258 : vector<1x32xf32>
    %c3_117 = arith.constant 3 : index
    %c0_118 = arith.constant 0 : index
    %c0_119 = arith.constant 0 : index
    %260 = vector.load %arg11[%c3_117, %c0_118, %c0_119] : memref<9x1x32xf32, #tpu.memory_space<vmem>>, vector<1x1x32xf32>
    %261 = vector.shape_cast %260 : vector<1x1x32xf32> to vector<1x32xf32>
    %262 = vector.broadcast %261 : vector<1x32xf32> to vector<16x32xf32>
    %263 = arith.mulf %262, %254 : vector<16x32xf32>
    %cst_120 = arith.constant 9.99999974E-6 : f32
    %264 = vector.broadcast %cst_120 : f32 to vector<1x32xf32>
    %265 = arith.addf %259, %264 : vector<1x32xf32>
    %266 = math.rsqrt %265 : vector<1x32xf32>
    %267 = vector.broadcast %266 : vector<1x32xf32> to vector<16x32xf32>
    %268 = arith.mulf %263, %267 : vector<16x32xf32>
    %c3_121 = arith.constant 3 : index
    %c0_122 = arith.constant 0 : index
    %c0_123 = arith.constant 0 : index
    %269 = vector.load %arg12[%c3_121, %c0_122, %c0_123] : memref<9x1x32xf32, #tpu.memory_space<vmem>>, vector<1x1x32xf32>
    %270 = vector.shape_cast %269 : vector<1x1x32xf32> to vector<1x32xf32>
    %271 = vector.broadcast %270 : vector<1x32xf32> to vector<16x32xf32>
    %272 = arith.addf %268, %271 : vector<16x32xf32>
    %273 = arith.truncf %272 : vector<16x32xf32> to vector<16x32xbf16>
    %274 = vector.extract_strided_slice %50 {offsets = [0, 64], sizes = [16, 16], strides = [1, 1]} : vector<16x160xf32> to vector<16x16xf32>
    %cst_124 = arith.constant dense<0.000000e+00> : vector<16xf32>
    %275 = vector.multi_reduction <add>, %274, %cst_124 [1] : vector<16x16xf32> to vector<16xf32>
    %276 = vector.shape_cast %275 : vector<16xf32> to vector<16x1xf32>
    %cst_125 = arith.constant 1.000000e+00 : f32
    %277 = vector.broadcast %cst_125 : f32 to vector<16x1xf32>
    %278 = arith.addf %276, %277 : vector<16x1xf32>
    %279 = math.rsqrt %278 : vector<16x1xf32>
    %c4 = arith.constant 4 : index
    %c0_126 = arith.constant 0 : index
    %c0_127 = arith.constant 0 : index
    %280 = vector.load %arg8[%c4, %c0_126, %c0_127] : memref<10x32x32xbf16, #tpu.memory_space<vmem>>, vector<1x32x32xbf16>
    %281 = vector.shape_cast %280 : vector<1x32x32xbf16> to vector<32x32xbf16>
    %cst_128 = arith.constant dense<0.000000e+00> : vector<16x32xf32>
    %282 = tpu.matmul %273, %281, %cst_128 {dimension_numbers = #tpu.dot_dimension_numbers<[1], [0], [0], [1], [0, 0, 1, 1], [], []>} : vector<16x32xbf16>, vector<32x32xbf16>, vector<16x32xf32> -> vector<16x32xf32>
    %283 = vector.broadcast %279 : vector<16x1xf32> to vector<16x32xf32>
    %284 = arith.mulf %283, %282 : vector<16x32xf32>
    %285 = vector.extract_strided_slice %51 {offsets = [0, 64], sizes = [16, 16], strides = [1, 1]} : vector<16x160xbf16> to vector<16x16xbf16>
    %286 = arith.truncf %284 : vector<16x32xf32> to vector<16x32xbf16>
    %cst_129 = arith.constant dense<0.000000e+00> : vector<16x32xf32>
    %287 = tpu.matmul %285, %286, %cst_129 {dimension_numbers = #tpu.dot_dimension_numbers<[1], [0], [0], [1], [0, 0, 1, 1], [], []>} : vector<16x16xbf16>, vector<16x32xbf16>, vector<16x32xf32> -> vector<16x32xf32>
    %288 = arith.addf %287, %284 : vector<16x32xf32>
    %289 = vector.broadcast %279 : vector<16x1xf32> to vector<16x32xf32>
    %290 = arith.mulf %289, %288 : vector<16x32xf32>
    %c4_130 = arith.constant 4 : index
    %c0_131 = arith.constant 0 : index
    %c0_132 = arith.constant 0 : index
    %291 = vector.load %arg9[%c4_130, %c0_131, %c0_132] : memref<10x1x32xf32, #tpu.memory_space<vmem>>, vector<1x1x32xf32>
    %292 = vector.shape_cast %291 : vector<1x1x32xf32> to vector<1x32xf32>
    %293 = vector.broadcast %292 : vector<1x32xf32> to vector<16x32xf32>
    %294 = arith.addf %290, %293 : vector<16x32xf32>
    %c4_133 = arith.constant 4 : index
    %295 = memref.load %arg10[%c4_133] : memref<9xf32, #tpu.memory_space<smem>>
    %cst_134 = arith.constant 0.000000e+00 : f32
    %296 = vector.broadcast %cst_134 : f32 to vector<16x32xf32>
    %297 = arith.cmpf oge, %294, %296 : vector<16x32xf32>
    %298 = vector.broadcast %295 : f32 to vector<16x32xf32>
    %299 = arith.mulf %298, %294 : vector<16x32xf32>
    %300 = arith.select %297, %294, %299 : vector<16x32xi1>, vector<16x32xf32>
    %cst_135 = arith.constant dense<0.000000e+00> : vector<32xf32>
    %301 = vector.multi_reduction <add>, %300, %cst_135 [0] : vector<16x32xf32> to vector<32xf32>
    %302 = vector.shape_cast %301 : vector<32xf32> to vector<1x32xf32>
    %cst_136 = arith.constant 1.600000e+01 : f32
    %303 = vector.broadcast %cst_136 : f32 to vector<1x32xf32>
    %304 = arith.divf %302, %303 : vector<1x32xf32>
    %c4_137 = arith.constant 4 : index
    %c0_138 = arith.constant 0 : index
    %c0_139 = arith.constant 0 : index
    %305 = vector.load %arg13[%c4_137, %c0_138, %c0_139] : memref<9x1x32xf32, #tpu.memory_space<vmem>>, vector<1x1x32xf32>
    %306 = vector.shape_cast %305 : vector<1x1x32xf32> to vector<1x32xf32>
    %307 = arith.mulf %304, %306 : vector<1x32xf32>
    %308 = vector.broadcast %307 : vector<1x32xf32> to vector<16x32xf32>
    %309 = arith.subf %300, %308 : vector<16x32xf32>
    %310 = arith.mulf %309, %309 : vector<16x32xf32>
    %cst_140 = arith.constant dense<0.000000e+00> : vector<32xf32>
    %311 = vector.multi_reduction <add>, %310, %cst_140 [0] : vector<16x32xf32> to vector<32xf32>
    %312 = vector.shape_cast %311 : vector<32xf32> to vector<1x32xf32>
    %cst_141 = arith.constant 1.600000e+01 : f32
    %313 = vector.broadcast %cst_141 : f32 to vector<1x32xf32>
    %314 = arith.divf %312, %313 : vector<1x32xf32>
    %c4_142 = arith.constant 4 : index
    %c0_143 = arith.constant 0 : index
    %c0_144 = arith.constant 0 : index
    %315 = vector.load %arg11[%c4_142, %c0_143, %c0_144] : memref<9x1x32xf32, #tpu.memory_space<vmem>>, vector<1x1x32xf32>
    %316 = vector.shape_cast %315 : vector<1x1x32xf32> to vector<1x32xf32>
    %317 = vector.broadcast %316 : vector<1x32xf32> to vector<16x32xf32>
    %318 = arith.mulf %317, %309 : vector<16x32xf32>
    %cst_145 = arith.constant 9.99999974E-6 : f32
    %319 = vector.broadcast %cst_145 : f32 to vector<1x32xf32>
    %320 = arith.addf %314, %319 : vector<1x32xf32>
    %321 = math.rsqrt %320 : vector<1x32xf32>
    %322 = vector.broadcast %321 : vector<1x32xf32> to vector<16x32xf32>
    %323 = arith.mulf %318, %322 : vector<16x32xf32>
    %c4_146 = arith.constant 4 : index
    %c0_147 = arith.constant 0 : index
    %c0_148 = arith.constant 0 : index
    %324 = vector.load %arg12[%c4_146, %c0_147, %c0_148] : memref<9x1x32xf32, #tpu.memory_space<vmem>>, vector<1x1x32xf32>
    %325 = vector.shape_cast %324 : vector<1x1x32xf32> to vector<1x32xf32>
    %326 = vector.broadcast %325 : vector<1x32xf32> to vector<16x32xf32>
    %327 = arith.addf %323, %326 : vector<16x32xf32>
    %328 = arith.truncf %327 : vector<16x32xf32> to vector<16x32xbf16>
    %329 = vector.extract_strided_slice %50 {offsets = [0, 80], sizes = [16, 16], strides = [1, 1]} : vector<16x160xf32> to vector<16x16xf32>
    %cst_149 = arith.constant dense<0.000000e+00> : vector<16xf32>
    %330 = vector.multi_reduction <add>, %329, %cst_149 [1] : vector<16x16xf32> to vector<16xf32>
    %331 = vector.shape_cast %330 : vector<16xf32> to vector<16x1xf32>
    %cst_150 = arith.constant 1.000000e+00 : f32
    %332 = vector.broadcast %cst_150 : f32 to vector<16x1xf32>
    %333 = arith.addf %331, %332 : vector<16x1xf32>
    %334 = math.rsqrt %333 : vector<16x1xf32>
    %c5 = arith.constant 5 : index
    %c0_151 = arith.constant 0 : index
    %c0_152 = arith.constant 0 : index
    %335 = vector.load %arg8[%c5, %c0_151, %c0_152] : memref<10x32x32xbf16, #tpu.memory_space<vmem>>, vector<1x32x32xbf16>
    %336 = vector.shape_cast %335 : vector<1x32x32xbf16> to vector<32x32xbf16>
    %cst_153 = arith.constant dense<0.000000e+00> : vector<16x32xf32>
    %337 = tpu.matmul %328, %336, %cst_153 {dimension_numbers = #tpu.dot_dimension_numbers<[1], [0], [0], [1], [0, 0, 1, 1], [], []>} : vector<16x32xbf16>, vector<32x32xbf16>, vector<16x32xf32> -> vector<16x32xf32>
    %338 = vector.broadcast %334 : vector<16x1xf32> to vector<16x32xf32>
    %339 = arith.mulf %338, %337 : vector<16x32xf32>
    %340 = vector.extract_strided_slice %51 {offsets = [0, 80], sizes = [16, 16], strides = [1, 1]} : vector<16x160xbf16> to vector<16x16xbf16>
    %341 = arith.truncf %339 : vector<16x32xf32> to vector<16x32xbf16>
    %cst_154 = arith.constant dense<0.000000e+00> : vector<16x32xf32>
    %342 = tpu.matmul %340, %341, %cst_154 {dimension_numbers = #tpu.dot_dimension_numbers<[1], [0], [0], [1], [0, 0, 1, 1], [], []>} : vector<16x16xbf16>, vector<16x32xbf16>, vector<16x32xf32> -> vector<16x32xf32>
    %343 = arith.addf %342, %339 : vector<16x32xf32>
    %344 = vector.broadcast %334 : vector<16x1xf32> to vector<16x32xf32>
    %345 = arith.mulf %344, %343 : vector<16x32xf32>
    %c5_155 = arith.constant 5 : index
    %c0_156 = arith.constant 0 : index
    %c0_157 = arith.constant 0 : index
    %346 = vector.load %arg9[%c5_155, %c0_156, %c0_157] : memref<10x1x32xf32, #tpu.memory_space<vmem>>, vector<1x1x32xf32>
    %347 = vector.shape_cast %346 : vector<1x1x32xf32> to vector<1x32xf32>
    %348 = vector.broadcast %347 : vector<1x32xf32> to vector<16x32xf32>
    %349 = arith.addf %345, %348 : vector<16x32xf32>
    %c5_158 = arith.constant 5 : index
    %350 = memref.load %arg10[%c5_158] : memref<9xf32, #tpu.memory_space<smem>>
    %cst_159 = arith.constant 0.000000e+00 : f32
    %351 = vector.broadcast %cst_159 : f32 to vector<16x32xf32>
    %352 = arith.cmpf oge, %349, %351 : vector<16x32xf32>
    %353 = vector.broadcast %350 : f32 to vector<16x32xf32>
    %354 = arith.mulf %353, %349 : vector<16x32xf32>
    %355 = arith.select %352, %349, %354 : vector<16x32xi1>, vector<16x32xf32>
    %cst_160 = arith.constant dense<0.000000e+00> : vector<32xf32>
    %356 = vector.multi_reduction <add>, %355, %cst_160 [0] : vector<16x32xf32> to vector<32xf32>
    %357 = vector.shape_cast %356 : vector<32xf32> to vector<1x32xf32>
    %cst_161 = arith.constant 1.600000e+01 : f32
    %358 = vector.broadcast %cst_161 : f32 to vector<1x32xf32>
    %359 = arith.divf %357, %358 : vector<1x32xf32>
    %c5_162 = arith.constant 5 : index
    %c0_163 = arith.constant 0 : index
    %c0_164 = arith.constant 0 : index
    %360 = vector.load %arg13[%c5_162, %c0_163, %c0_164] : memref<9x1x32xf32, #tpu.memory_space<vmem>>, vector<1x1x32xf32>
    %361 = vector.shape_cast %360 : vector<1x1x32xf32> to vector<1x32xf32>
    %362 = arith.mulf %359, %361 : vector<1x32xf32>
    %363 = vector.broadcast %362 : vector<1x32xf32> to vector<16x32xf32>
    %364 = arith.subf %355, %363 : vector<16x32xf32>
    %365 = arith.mulf %364, %364 : vector<16x32xf32>
    %cst_165 = arith.constant dense<0.000000e+00> : vector<32xf32>
    %366 = vector.multi_reduction <add>, %365, %cst_165 [0] : vector<16x32xf32> to vector<32xf32>
    %367 = vector.shape_cast %366 : vector<32xf32> to vector<1x32xf32>
    %cst_166 = arith.constant 1.600000e+01 : f32
    %368 = vector.broadcast %cst_166 : f32 to vector<1x32xf32>
    %369 = arith.divf %367, %368 : vector<1x32xf32>
    %c5_167 = arith.constant 5 : index
    %c0_168 = arith.constant 0 : index
    %c0_169 = arith.constant 0 : index
    %370 = vector.load %arg11[%c5_167, %c0_168, %c0_169] : memref<9x1x32xf32, #tpu.memory_space<vmem>>, vector<1x1x32xf32>
    %371 = vector.shape_cast %370 : vector<1x1x32xf32> to vector<1x32xf32>
    %372 = vector.broadcast %371 : vector<1x32xf32> to vector<16x32xf32>
    %373 = arith.mulf %372, %364 : vector<16x32xf32>
    %cst_170 = arith.constant 9.99999974E-6 : f32
    %374 = vector.broadcast %cst_170 : f32 to vector<1x32xf32>
    %375 = arith.addf %369, %374 : vector<1x32xf32>
    %376 = math.rsqrt %375 : vector<1x32xf32>
    %377 = vector.broadcast %376 : vector<1x32xf32> to vector<16x32xf32>
    %378 = arith.mulf %373, %377 : vector<16x32xf32>
    %c5_171 = arith.constant 5 : index
    %c0_172 = arith.constant 0 : index
    %c0_173 = arith.constant 0 : index
    %379 = vector.load %arg12[%c5_171, %c0_172, %c0_173] : memref<9x1x32xf32, #tpu.memory_space<vmem>>, vector<1x1x32xf32>
    %380 = vector.shape_cast %379 : vector<1x1x32xf32> to vector<1x32xf32>
    %381 = vector.broadcast %380 : vector<1x32xf32> to vector<16x32xf32>
    %382 = arith.addf %378, %381 : vector<16x32xf32>
    %383 = arith.truncf %382 : vector<16x32xf32> to vector<16x32xbf16>
    %384 = vector.extract_strided_slice %50 {offsets = [0, 96], sizes = [16, 16], strides = [1, 1]} : vector<16x160xf32> to vector<16x16xf32>
    %cst_174 = arith.constant dense<0.000000e+00> : vector<16xf32>
    %385 = vector.multi_reduction <add>, %384, %cst_174 [1] : vector<16x16xf32> to vector<16xf32>
    %386 = vector.shape_cast %385 : vector<16xf32> to vector<16x1xf32>
    %cst_175 = arith.constant 1.000000e+00 : f32
    %387 = vector.broadcast %cst_175 : f32 to vector<16x1xf32>
    %388 = arith.addf %386, %387 : vector<16x1xf32>
    %389 = math.rsqrt %388 : vector<16x1xf32>
    %c6 = arith.constant 6 : index
    %c0_176 = arith.constant 0 : index
    %c0_177 = arith.constant 0 : index
    %390 = vector.load %arg8[%c6, %c0_176, %c0_177] : memref<10x32x32xbf16, #tpu.memory_space<vmem>>, vector<1x32x32xbf16>
    %391 = vector.shape_cast %390 : vector<1x32x32xbf16> to vector<32x32xbf16>
    %cst_178 = arith.constant dense<0.000000e+00> : vector<16x32xf32>
    %392 = tpu.matmul %383, %391, %cst_178 {dimension_numbers = #tpu.dot_dimension_numbers<[1], [0], [0], [1], [0, 0, 1, 1], [], []>} : vector<16x32xbf16>, vector<32x32xbf16>, vector<16x32xf32> -> vector<16x32xf32>
    %393 = vector.broadcast %389 : vector<16x1xf32> to vector<16x32xf32>
    %394 = arith.mulf %393, %392 : vector<16x32xf32>
    %395 = vector.extract_strided_slice %51 {offsets = [0, 96], sizes = [16, 16], strides = [1, 1]} : vector<16x160xbf16> to vector<16x16xbf16>
    %396 = arith.truncf %394 : vector<16x32xf32> to vector<16x32xbf16>
    %cst_179 = arith.constant dense<0.000000e+00> : vector<16x32xf32>
    %397 = tpu.matmul %395, %396, %cst_179 {dimension_numbers = #tpu.dot_dimension_numbers<[1], [0], [0], [1], [0, 0, 1, 1], [], []>} : vector<16x16xbf16>, vector<16x32xbf16>, vector<16x32xf32> -> vector<16x32xf32>
    %398 = arith.addf %397, %394 : vector<16x32xf32>
    %399 = vector.broadcast %389 : vector<16x1xf32> to vector<16x32xf32>
    %400 = arith.mulf %399, %398 : vector<16x32xf32>
    %c6_180 = arith.constant 6 : index
    %c0_181 = arith.constant 0 : index
    %c0_182 = arith.constant 0 : index
    %401 = vector.load %arg9[%c6_180, %c0_181, %c0_182] : memref<10x1x32xf32, #tpu.memory_space<vmem>>, vector<1x1x32xf32>
    %402 = vector.shape_cast %401 : vector<1x1x32xf32> to vector<1x32xf32>
    %403 = vector.broadcast %402 : vector<1x32xf32> to vector<16x32xf32>
    %404 = arith.addf %400, %403 : vector<16x32xf32>
    %c6_183 = arith.constant 6 : index
    %405 = memref.load %arg10[%c6_183] : memref<9xf32, #tpu.memory_space<smem>>
    %cst_184 = arith.constant 0.000000e+00 : f32
    %406 = vector.broadcast %cst_184 : f32 to vector<16x32xf32>
    %407 = arith.cmpf oge, %404, %406 : vector<16x32xf32>
    %408 = vector.broadcast %405 : f32 to vector<16x32xf32>
    %409 = arith.mulf %408, %404 : vector<16x32xf32>
    %410 = arith.select %407, %404, %409 : vector<16x32xi1>, vector<16x32xf32>
    %cst_185 = arith.constant dense<0.000000e+00> : vector<32xf32>
    %411 = vector.multi_reduction <add>, %410, %cst_185 [0] : vector<16x32xf32> to vector<32xf32>
    %412 = vector.shape_cast %411 : vector<32xf32> to vector<1x32xf32>
    %cst_186 = arith.constant 1.600000e+01 : f32
    %413 = vector.broadcast %cst_186 : f32 to vector<1x32xf32>
    %414 = arith.divf %412, %413 : vector<1x32xf32>
    %c6_187 = arith.constant 6 : index
    %c0_188 = arith.constant 0 : index
    %c0_189 = arith.constant 0 : index
    %415 = vector.load %arg13[%c6_187, %c0_188, %c0_189] : memref<9x1x32xf32, #tpu.memory_space<vmem>>, vector<1x1x32xf32>
    %416 = vector.shape_cast %415 : vector<1x1x32xf32> to vector<1x32xf32>
    %417 = arith.mulf %414, %416 : vector<1x32xf32>
    %418 = vector.broadcast %417 : vector<1x32xf32> to vector<16x32xf32>
    %419 = arith.subf %410, %418 : vector<16x32xf32>
    %420 = arith.mulf %419, %419 : vector<16x32xf32>
    %cst_190 = arith.constant dense<0.000000e+00> : vector<32xf32>
    %421 = vector.multi_reduction <add>, %420, %cst_190 [0] : vector<16x32xf32> to vector<32xf32>
    %422 = vector.shape_cast %421 : vector<32xf32> to vector<1x32xf32>
    %cst_191 = arith.constant 1.600000e+01 : f32
    %423 = vector.broadcast %cst_191 : f32 to vector<1x32xf32>
    %424 = arith.divf %422, %423 : vector<1x32xf32>
    %c6_192 = arith.constant 6 : index
    %c0_193 = arith.constant 0 : index
    %c0_194 = arith.constant 0 : index
    %425 = vector.load %arg11[%c6_192, %c0_193, %c0_194] : memref<9x1x32xf32, #tpu.memory_space<vmem>>, vector<1x1x32xf32>
    %426 = vector.shape_cast %425 : vector<1x1x32xf32> to vector<1x32xf32>
    %427 = vector.broadcast %426 : vector<1x32xf32> to vector<16x32xf32>
    %428 = arith.mulf %427, %419 : vector<16x32xf32>
    %cst_195 = arith.constant 9.99999974E-6 : f32
    %429 = vector.broadcast %cst_195 : f32 to vector<1x32xf32>
    %430 = arith.addf %424, %429 : vector<1x32xf32>
    %431 = math.rsqrt %430 : vector<1x32xf32>
    %432 = vector.broadcast %431 : vector<1x32xf32> to vector<16x32xf32>
    %433 = arith.mulf %428, %432 : vector<16x32xf32>
    %c6_196 = arith.constant 6 : index
    %c0_197 = arith.constant 0 : index
    %c0_198 = arith.constant 0 : index
    %434 = vector.load %arg12[%c6_196, %c0_197, %c0_198] : memref<9x1x32xf32, #tpu.memory_space<vmem>>, vector<1x1x32xf32>
    %435 = vector.shape_cast %434 : vector<1x1x32xf32> to vector<1x32xf32>
    %436 = vector.broadcast %435 : vector<1x32xf32> to vector<16x32xf32>
    %437 = arith.addf %433, %436 : vector<16x32xf32>
    %438 = arith.truncf %437 : vector<16x32xf32> to vector<16x32xbf16>
    %439 = vector.extract_strided_slice %50 {offsets = [0, 112], sizes = [16, 16], strides = [1, 1]} : vector<16x160xf32> to vector<16x16xf32>
    %cst_199 = arith.constant dense<0.000000e+00> : vector<16xf32>
    %440 = vector.multi_reduction <add>, %439, %cst_199 [1] : vector<16x16xf32> to vector<16xf32>
    %441 = vector.shape_cast %440 : vector<16xf32> to vector<16x1xf32>
    %cst_200 = arith.constant 1.000000e+00 : f32
    %442 = vector.broadcast %cst_200 : f32 to vector<16x1xf32>
    %443 = arith.addf %441, %442 : vector<16x1xf32>
    %444 = math.rsqrt %443 : vector<16x1xf32>
    %c7 = arith.constant 7 : index
    %c0_201 = arith.constant 0 : index
    %c0_202 = arith.constant 0 : index
    %445 = vector.load %arg8[%c7, %c0_201, %c0_202] : memref<10x32x32xbf16, #tpu.memory_space<vmem>>, vector<1x32x32xbf16>
    %446 = vector.shape_cast %445 : vector<1x32x32xbf16> to vector<32x32xbf16>
    %cst_203 = arith.constant dense<0.000000e+00> : vector<16x32xf32>
    %447 = tpu.matmul %438, %446, %cst_203 {dimension_numbers = #tpu.dot_dimension_numbers<[1], [0], [0], [1], [0, 0, 1, 1], [], []>} : vector<16x32xbf16>, vector<32x32xbf16>, vector<16x32xf32> -> vector<16x32xf32>
    %448 = vector.broadcast %444 : vector<16x1xf32> to vector<16x32xf32>
    %449 = arith.mulf %448, %447 : vector<16x32xf32>
    %450 = vector.extract_strided_slice %51 {offsets = [0, 112], sizes = [16, 16], strides = [1, 1]} : vector<16x160xbf16> to vector<16x16xbf16>
    %451 = arith.truncf %449 : vector<16x32xf32> to vector<16x32xbf16>
    %cst_204 = arith.constant dense<0.000000e+00> : vector<16x32xf32>
    %452 = tpu.matmul %450, %451, %cst_204 {dimension_numbers = #tpu.dot_dimension_numbers<[1], [0], [0], [1], [0, 0, 1, 1], [], []>} : vector<16x16xbf16>, vector<16x32xbf16>, vector<16x32xf32> -> vector<16x32xf32>
    %453 = arith.addf %452, %449 : vector<16x32xf32>
    %454 = vector.broadcast %444 : vector<16x1xf32> to vector<16x32xf32>
    %455 = arith.mulf %454, %453 : vector<16x32xf32>
    %c7_205 = arith.constant 7 : index
    %c0_206 = arith.constant 0 : index
    %c0_207 = arith.constant 0 : index
    %456 = vector.load %arg9[%c7_205, %c0_206, %c0_207] : memref<10x1x32xf32, #tpu.memory_space<vmem>>, vector<1x1x32xf32>
    %457 = vector.shape_cast %456 : vector<1x1x32xf32> to vector<1x32xf32>
    %458 = vector.broadcast %457 : vector<1x32xf32> to vector<16x32xf32>
    %459 = arith.addf %455, %458 : vector<16x32xf32>
    %c7_208 = arith.constant 7 : index
    %460 = memref.load %arg10[%c7_208] : memref<9xf32, #tpu.memory_space<smem>>
    %cst_209 = arith.constant 0.000000e+00 : f32
    %461 = vector.broadcast %cst_209 : f32 to vector<16x32xf32>
    %462 = arith.cmpf oge, %459, %461 : vector<16x32xf32>
    %463 = vector.broadcast %460 : f32 to vector<16x32xf32>
    %464 = arith.mulf %463, %459 : vector<16x32xf32>
    %465 = arith.select %462, %459, %464 : vector<16x32xi1>, vector<16x32xf32>
    %cst_210 = arith.constant dense<0.000000e+00> : vector<32xf32>
    %466 = vector.multi_reduction <add>, %465, %cst_210 [0] : vector<16x32xf32> to vector<32xf32>
    %467 = vector.shape_cast %466 : vector<32xf32> to vector<1x32xf32>
    %cst_211 = arith.constant 1.600000e+01 : f32
    %468 = vector.broadcast %cst_211 : f32 to vector<1x32xf32>
    %469 = arith.divf %467, %468 : vector<1x32xf32>
    %c7_212 = arith.constant 7 : index
    %c0_213 = arith.constant 0 : index
    %c0_214 = arith.constant 0 : index
    %470 = vector.load %arg13[%c7_212, %c0_213, %c0_214] : memref<9x1x32xf32, #tpu.memory_space<vmem>>, vector<1x1x32xf32>
    %471 = vector.shape_cast %470 : vector<1x1x32xf32> to vector<1x32xf32>
    %472 = arith.mulf %469, %471 : vector<1x32xf32>
    %473 = vector.broadcast %472 : vector<1x32xf32> to vector<16x32xf32>
    %474 = arith.subf %465, %473 : vector<16x32xf32>
    %475 = arith.mulf %474, %474 : vector<16x32xf32>
    %cst_215 = arith.constant dense<0.000000e+00> : vector<32xf32>
    %476 = vector.multi_reduction <add>, %475, %cst_215 [0] : vector<16x32xf32> to vector<32xf32>
    %477 = vector.shape_cast %476 : vector<32xf32> to vector<1x32xf32>
    %cst_216 = arith.constant 1.600000e+01 : f32
    %478 = vector.broadcast %cst_216 : f32 to vector<1x32xf32>
    %479 = arith.divf %477, %478 : vector<1x32xf32>
    %c7_217 = arith.constant 7 : index
    %c0_218 = arith.constant 0 : index
    %c0_219 = arith.constant 0 : index
    %480 = vector.load %arg11[%c7_217, %c0_218, %c0_219] : memref<9x1x32xf32, #tpu.memory_space<vmem>>, vector<1x1x32xf32>
    %481 = vector.shape_cast %480 : vector<1x1x32xf32> to vector<1x32xf32>
    %482 = vector.broadcast %481 : vector<1x32xf32> to vector<16x32xf32>
    %483 = arith.mulf %482, %474 : vector<16x32xf32>
    %cst_220 = arith.constant 9.99999974E-6 : f32
    %484 = vector.broadcast %cst_220 : f32 to vector<1x32xf32>
    %485 = arith.addf %479, %484 : vector<1x32xf32>
    %486 = math.rsqrt %485 : vector<1x32xf32>
    %487 = vector.broadcast %486 : vector<1x32xf32> to vector<16x32xf32>
    %488 = arith.mulf %483, %487 : vector<16x32xf32>
    %c7_221 = arith.constant 7 : index
    %c0_222 = arith.constant 0 : index
    %c0_223 = arith.constant 0 : index
    %489 = vector.load %arg12[%c7_221, %c0_222, %c0_223] : memref<9x1x32xf32, #tpu.memory_space<vmem>>, vector<1x1x32xf32>
    %490 = vector.shape_cast %489 : vector<1x1x32xf32> to vector<1x32xf32>
    %491 = vector.broadcast %490 : vector<1x32xf32> to vector<16x32xf32>
    %492 = arith.addf %488, %491 : vector<16x32xf32>
    %493 = arith.truncf %492 : vector<16x32xf32> to vector<16x32xbf16>
    %494 = vector.extract_strided_slice %50 {offsets = [0, 128], sizes = [16, 16], strides = [1, 1]} : vector<16x160xf32> to vector<16x16xf32>
    %cst_224 = arith.constant dense<0.000000e+00> : vector<16xf32>
    %495 = vector.multi_reduction <add>, %494, %cst_224 [1] : vector<16x16xf32> to vector<16xf32>
    %496 = vector.shape_cast %495 : vector<16xf32> to vector<16x1xf32>
    %cst_225 = arith.constant 1.000000e+00 : f32
    %497 = vector.broadcast %cst_225 : f32 to vector<16x1xf32>
    %498 = arith.addf %496, %497 : vector<16x1xf32>
    %499 = math.rsqrt %498 : vector<16x1xf32>
    %c8 = arith.constant 8 : index
    %c0_226 = arith.constant 0 : index
    %c0_227 = arith.constant 0 : index
    %500 = vector.load %arg8[%c8, %c0_226, %c0_227] : memref<10x32x32xbf16, #tpu.memory_space<vmem>>, vector<1x32x32xbf16>
    %501 = vector.shape_cast %500 : vector<1x32x32xbf16> to vector<32x32xbf16>
    %cst_228 = arith.constant dense<0.000000e+00> : vector<16x32xf32>
    %502 = tpu.matmul %493, %501, %cst_228 {dimension_numbers = #tpu.dot_dimension_numbers<[1], [0], [0], [1], [0, 0, 1, 1], [], []>} : vector<16x32xbf16>, vector<32x32xbf16>, vector<16x32xf32> -> vector<16x32xf32>
    %503 = vector.broadcast %499 : vector<16x1xf32> to vector<16x32xf32>
    %504 = arith.mulf %503, %502 : vector<16x32xf32>
    %505 = vector.extract_strided_slice %51 {offsets = [0, 128], sizes = [16, 16], strides = [1, 1]} : vector<16x160xbf16> to vector<16x16xbf16>
    %506 = arith.truncf %504 : vector<16x32xf32> to vector<16x32xbf16>
    %cst_229 = arith.constant dense<0.000000e+00> : vector<16x32xf32>
    %507 = tpu.matmul %505, %506, %cst_229 {dimension_numbers = #tpu.dot_dimension_numbers<[1], [0], [0], [1], [0, 0, 1, 1], [], []>} : vector<16x16xbf16>, vector<16x32xbf16>, vector<16x32xf32> -> vector<16x32xf32>
    %508 = arith.addf %507, %504 : vector<16x32xf32>
    %509 = vector.broadcast %499 : vector<16x1xf32> to vector<16x32xf32>
    %510 = arith.mulf %509, %508 : vector<16x32xf32>
    %c8_230 = arith.constant 8 : index
    %c0_231 = arith.constant 0 : index
    %c0_232 = arith.constant 0 : index
    %511 = vector.load %arg9[%c8_230, %c0_231, %c0_232] : memref<10x1x32xf32, #tpu.memory_space<vmem>>, vector<1x1x32xf32>
    %512 = vector.shape_cast %511 : vector<1x1x32xf32> to vector<1x32xf32>
    %513 = vector.broadcast %512 : vector<1x32xf32> to vector<16x32xf32>
    %514 = arith.addf %510, %513 : vector<16x32xf32>
    %c8_233 = arith.constant 8 : index
    %515 = memref.load %arg10[%c8_233] : memref<9xf32, #tpu.memory_space<smem>>
    %cst_234 = arith.constant 0.000000e+00 : f32
    %516 = vector.broadcast %cst_234 : f32 to vector<16x32xf32>
    %517 = arith.cmpf oge, %514, %516 : vector<16x32xf32>
    %518 = vector.broadcast %515 : f32 to vector<16x32xf32>
    %519 = arith.mulf %518, %514 : vector<16x32xf32>
    %520 = arith.select %517, %514, %519 : vector<16x32xi1>, vector<16x32xf32>
    %cst_235 = arith.constant dense<0.000000e+00> : vector<32xf32>
    %521 = vector.multi_reduction <add>, %520, %cst_235 [0] : vector<16x32xf32> to vector<32xf32>
    %522 = vector.shape_cast %521 : vector<32xf32> to vector<1x32xf32>
    %cst_236 = arith.constant 1.600000e+01 : f32
    %523 = vector.broadcast %cst_236 : f32 to vector<1x32xf32>
    %524 = arith.divf %522, %523 : vector<1x32xf32>
    %c8_237 = arith.constant 8 : index
    %c0_238 = arith.constant 0 : index
    %c0_239 = arith.constant 0 : index
    %525 = vector.load %arg13[%c8_237, %c0_238, %c0_239] : memref<9x1x32xf32, #tpu.memory_space<vmem>>, vector<1x1x32xf32>
    %526 = vector.shape_cast %525 : vector<1x1x32xf32> to vector<1x32xf32>
    %527 = arith.mulf %524, %526 : vector<1x32xf32>
    %528 = vector.broadcast %527 : vector<1x32xf32> to vector<16x32xf32>
    %529 = arith.subf %520, %528 : vector<16x32xf32>
    %530 = arith.mulf %529, %529 : vector<16x32xf32>
    %cst_240 = arith.constant dense<0.000000e+00> : vector<32xf32>
    %531 = vector.multi_reduction <add>, %530, %cst_240 [0] : vector<16x32xf32> to vector<32xf32>
    %532 = vector.shape_cast %531 : vector<32xf32> to vector<1x32xf32>
    %cst_241 = arith.constant 1.600000e+01 : f32
    %533 = vector.broadcast %cst_241 : f32 to vector<1x32xf32>
    %534 = arith.divf %532, %533 : vector<1x32xf32>
    %c8_242 = arith.constant 8 : index
    %c0_243 = arith.constant 0 : index
    %c0_244 = arith.constant 0 : index
    %535 = vector.load %arg11[%c8_242, %c0_243, %c0_244] : memref<9x1x32xf32, #tpu.memory_space<vmem>>, vector<1x1x32xf32>
    %536 = vector.shape_cast %535 : vector<1x1x32xf32> to vector<1x32xf32>
    %537 = vector.broadcast %536 : vector<1x32xf32> to vector<16x32xf32>
    %538 = arith.mulf %537, %529 : vector<16x32xf32>
    %cst_245 = arith.constant 9.99999974E-6 : f32
    %539 = vector.broadcast %cst_245 : f32 to vector<1x32xf32>
    %540 = arith.addf %534, %539 : vector<1x32xf32>
    %541 = math.rsqrt %540 : vector<1x32xf32>
    %542 = vector.broadcast %541 : vector<1x32xf32> to vector<16x32xf32>
    %543 = arith.mulf %538, %542 : vector<16x32xf32>
    %c8_246 = arith.constant 8 : index
    %c0_247 = arith.constant 0 : index
    %c0_248 = arith.constant 0 : index
    %544 = vector.load %arg12[%c8_246, %c0_247, %c0_248] : memref<9x1x32xf32, #tpu.memory_space<vmem>>, vector<1x1x32xf32>
    %545 = vector.shape_cast %544 : vector<1x1x32xf32> to vector<1x32xf32>
    %546 = vector.broadcast %545 : vector<1x32xf32> to vector<16x32xf32>
    %547 = arith.addf %543, %546 : vector<16x32xf32>
    %548 = arith.truncf %547 : vector<16x32xf32> to vector<16x32xbf16>
    %549 = vector.extract_strided_slice %50 {offsets = [0, 144], sizes = [16, 16], strides = [1, 1]} : vector<16x160xf32> to vector<16x16xf32>
    %cst_249 = arith.constant dense<0.000000e+00> : vector<16xf32>
    %550 = vector.multi_reduction <add>, %549, %cst_249 [1] : vector<16x16xf32> to vector<16xf32>
    %551 = vector.shape_cast %550 : vector<16xf32> to vector<16x1xf32>
    %cst_250 = arith.constant 1.000000e+00 : f32
    %552 = vector.broadcast %cst_250 : f32 to vector<16x1xf32>
    %553 = arith.addf %551, %552 : vector<16x1xf32>
    %554 = math.rsqrt %553 : vector<16x1xf32>
    %c9 = arith.constant 9 : index
    %c0_251 = arith.constant 0 : index
    %c0_252 = arith.constant 0 : index
    %555 = vector.load %arg8[%c9, %c0_251, %c0_252] : memref<10x32x32xbf16, #tpu.memory_space<vmem>>, vector<1x32x32xbf16>
    %556 = vector.shape_cast %555 : vector<1x32x32xbf16> to vector<32x32xbf16>
    %cst_253 = arith.constant dense<0.000000e+00> : vector<16x32xf32>
    %557 = tpu.matmul %548, %556, %cst_253 {dimension_numbers = #tpu.dot_dimension_numbers<[1], [0], [0], [1], [0, 0, 1, 1], [], []>} : vector<16x32xbf16>, vector<32x32xbf16>, vector<16x32xf32> -> vector<16x32xf32>
    %558 = vector.broadcast %554 : vector<16x1xf32> to vector<16x32xf32>
    %559 = arith.mulf %558, %557 : vector<16x32xf32>
    %560 = vector.extract_strided_slice %51 {offsets = [0, 144], sizes = [16, 16], strides = [1, 1]} : vector<16x160xbf16> to vector<16x16xbf16>
    %561 = arith.truncf %559 : vector<16x32xf32> to vector<16x32xbf16>
    %cst_254 = arith.constant dense<0.000000e+00> : vector<16x32xf32>
    %562 = tpu.matmul %560, %561, %cst_254 {dimension_numbers = #tpu.dot_dimension_numbers<[1], [0], [0], [1], [0, 0, 1, 1], [], []>} : vector<16x16xbf16>, vector<16x32xbf16>, vector<16x32xf32> -> vector<16x32xf32>
    %563 = arith.addf %562, %559 : vector<16x32xf32>
    %564 = vector.broadcast %554 : vector<16x1xf32> to vector<16x32xf32>
    %565 = arith.mulf %564, %563 : vector<16x32xf32>
    %c9_255 = arith.constant 9 : index
    %c0_256 = arith.constant 0 : index
    %c0_257 = arith.constant 0 : index
    %566 = vector.load %arg9[%c9_255, %c0_256, %c0_257] : memref<10x1x32xf32, #tpu.memory_space<vmem>>, vector<1x1x32xf32>
    %567 = vector.shape_cast %566 : vector<1x1x32xf32> to vector<1x32xf32>
    %568 = vector.broadcast %567 : vector<1x32xf32> to vector<16x32xf32>
    %569 = arith.addf %565, %568 : vector<16x32xf32>
    %c0_258 = arith.constant 0 : index
    %c0_259 = arith.constant 0 : index
    %570 = vector.load %arg14[%c0_258, %c0_259] : memref<16x32xf32, #tpu.memory_space<vmem>>, vector<16x32xf32>
    tpu.vector_store %arg14[%c0_258, %c0_259], %569 {strides = array<i32>} : memref<16x32xf32, #tpu.memory_space<vmem>>, vector<16x32xf32>,
    return
  }
}

</mosaic_0001>

<llo_original>
// kernel: pfae_pdn_forward.1
$region0: #{pfae_pdn_forward.1}
  #allocation0 [shape = 'u32[]', space=smem, size = 0x4, offset = 0x4, fixed_abs, tag = 'smem constant byte address 0x4 - core index']
  #allocation1 [shape = 'u32[144,128]{1,0:T(1,128)}', space=vmem, size = 0x12000, scoped, tag = 'internal scratch']
  %s0 = inlined_call_operand.vmem [shape: f32[48,4], index: 0, kind: input, shape index: {}]
  %s1 = inlined_call_operand.vmem [shape: s32[48,1], index: 1, kind: input, shape index: {}]
  %s2 = inlined_call_operand.vmem [shape: s32[1,48], index: 2, kind: input, shape index: {}]
  %s3 = inlined_call_operand.vmem [shape: f32[16,32], index: 3, kind: input, shape index: {}]
  %s4 = inlined_call_operand.vmem [shape: bf16[4,80], index: 4, kind: input, shape index: {}]
  %s5 = inlined_call_operand.vmem [shape: f32[1,80], index: 5, kind: input, shape index: {}]
  %s6 = inlined_call_operand.vmem [shape: bf16[80,160], index: 6, kind: input, shape index: {}]
  %s7 = inlined_call_operand.vmem [shape: f32[1,160], index: 7, kind: input, shape index: {}]
  %s8 = inlined_call_operand.hbm [shape: bf16[10,32,32], index: 8, kind: input, shape index: {}]
  %s9 = inlined_call_operand.vmem [shape: f32[10,1,32], index: 9, kind: input, shape index: {}]
  %s10 = inlined_call_operand.vmem [shape: f32[9], index: 10, kind: input, shape index: {}]
  %s11 = inlined_call_operand.vmem [shape: f32[9,1,32], index: 11, kind: input, shape index: {}]
  %s12 = inlined_call_operand.vmem [shape: f32[9,1,32], index: 12, kind: input, shape index: {}]
  %s13 = inlined_call_operand.vmem [shape: f32[9,1,32], index: 13, kind: input, shape index: {}]
  %s14 = inlined_call_operand.hbm [shape: f32[16,32], index: 14, kind: output, shape index: {}]
  %s15 = sld [smem:[#allocation0]]
  $region74: #{pfae_pdn_forward.1} parent=0
    _
  %s17 = ssub.s32 1, %s15
  %s18 = scalar_select 0, %s17, %s15
  $region1: #{pfae_pdn_forward.1} parent=0
    #allocation2 [shape = 'u8[81920]{0}', space=vmem, size = 0x14000, scoped, tag = 'input window, operand 8, single buffered']
    #allocation3 [shape = 's32[1]{0}', space=sflag, size = 0x4, scoped, tag = 'scoped memory for pfae_pdn_forward.1']
    #allocation4 [shape = 's32[1]{0}', space=sflag, size = 0x4, scoped, tag = 'scoped memory for pfae_pdn_forward.1']
    #allocation5 [shape = 's32[1]{0}', space=sflag, size = 0x4, scoped, tag = 'scoped memory for pfae_pdn_forward.1']
    #allocation6 [shape = 'u8[512]{0}', space=smem, size = 0x200, scoped, tag = 'input window, operand 10, single buffered']
    #allocation7 [shape = 'u8[8192]{0}', space=vmem, size = 0x2000, scoped, tag = 'output window, operand 0, single buffered']
    %19 = vsyncpa [#allocation3], 0
    %20 = vsyncpa [#allocation5], 0
    %21 = vsyncpa [#allocation4], 0
    // Predicated region
    $region2: #{pfae_pdn_forward.1} parent=1 // pred_check
      _
    $region3: #{pfae_pdn_forward.1} parent=1 // pred_check_branch
      %23 = sbr.rel (0) target = $region5
    $region4: #{pfae_pdn_forward.1} parent=1 // pred_region
      _
    $region5: #{pfae_pdn_forward.1} parent=1 // pred_fallthru
      _
    // Predicated region
    $region6: #{pfae_pdn_forward.1} parent=1 // pred_check
      _
    $region7: #{pfae_pdn_forward.1} parent=1 // pred_check_branch
      %25 = sbr.rel (0) target = $region9
    $region8: #{pfae_pdn_forward.1} parent=1 // pred_region
      _
    $region9: #{pfae_pdn_forward.1} parent=1 // pred_fallthru
      _
    // Predicated region
    $region10: #{pfae_pdn_forward.1} parent=1 // pred_check
      _
    $region11: #{pfae_pdn_forward.1} parent=1 // pred_check_branch
      %27 = sbr.rel (0) target = $region13
    $region12: #{pfae_pdn_forward.1} parent=1 // pred_region
      _
    $region13: #{pfae_pdn_forward.1} parent=1 // pred_fallthru
      _
    // Predicated region
    $region14: #{pfae_pdn_forward.1} parent=1 // pred_check
      _
    $region15: #{pfae_pdn_forward.1} parent=1 // pred_check_branch
      %29 = sbr.rel (0) target = $region17
    $region16: #{pfae_pdn_forward.1} parent=1 // pred_region
      _
    $region17: #{pfae_pdn_forward.1} parent=1 // pred_fallthru
      _
    // Predicated region
    $region18: #{pfae_pdn_forward.1} parent=1 // pred_check
      _
    $region19: #{pfae_pdn_forward.1} parent=1 // pred_check_branch
      %31 = sbr.rel (0) target = $region21
    $region20: #{pfae_pdn_forward.1} parent=1 // pred_region
      _
    $region21: #{pfae_pdn_forward.1} parent=1 // pred_fallthru
      _
    // Predicated region
    $region22: #{pfae_pdn_forward.1} parent=1 // pred_check
      _
    $region23: #{pfae_pdn_forward.1} parent=1 // pred_check_branch
      %33 = sbr.rel (0) target = $region25
    $region24: #{pfae_pdn_forward.1} parent=1 // pred_region
      _
    $region25: #{pfae_pdn_forward.1} parent=1 // pred_fallthru
      _
    // Predicated region
    $region26: #{pfae_pdn_forward.1} parent=1 // pred_check
      _
    $region27: #{pfae_pdn_forward.1} parent=1 // pred_check_branch
      %35 = sbr.rel (0) target = $region29
    $region28: #{pfae_pdn_forward.1} parent=1 // pred_region
      _
    $region29: #{pfae_pdn_forward.1} parent=1 // pred_fallthru
      _
    // Predicated region
    $region30: #{pfae_pdn_forward.1} parent=1 // pred_check
      _
    $region31: #{pfae_pdn_forward.1} parent=1 // pred_check_branch
      %37 = sbr.rel (0) target = $region33
    $region32: #{pfae_pdn_forward.1} parent=1 // pred_region
      _
    $region33: #{pfae_pdn_forward.1} parent=1 // pred_fallthru
      _
    // Predicated region
    $region34: #{pfae_pdn_forward.1} parent=1 // pred_check
      _
    $region35: #{pfae_pdn_forward.1} parent=1 // pred_check_branch
      %39 = sbr.rel (0) target = $region37
    $region36: #{pfae_pdn_forward.1} parent=1 // pred_region
      %s41 = ssub.s32 2560, 2560
      %42 = vsyncadd [#allocation3], %s41
      %s43 = sshll.u32 [#allocation2], 4
      %s44 = int_to_ptr.vmem [resolvable:$true] %s43
      %49 = dma.hbm_to_vmem [thread:$0]  %s8, 2560, %s44, [#allocation3], 64, 64, 4
    $region37: #{pfae_pdn_forward.1} parent=1 // pred_fallthru
      _
    // Predicated region
    $region38: #{pfae_pdn_forward.1} parent=1 // pred_check
      _
    $region39: #{pfae_pdn_forward.1} parent=1 // pred_check_branch
      %51 = sbr.rel (0) target = $region41
    $region40: #{pfae_pdn_forward.1} parent=1 // pred_region
      _
    $region41: #{pfae_pdn_forward.1} parent=1 // pred_fallthru
      _
    // Predicated region
    $region42: #{pfae_pdn_forward.1} parent=1 // pred_check
      _
    $region43: #{pfae_pdn_forward.1} parent=1 // pred_check_branch
      %53 = sbr.rel (0) target = $region45
    $region44: #{pfae_pdn_forward.1} parent=1 // pred_region
      %s55 = ssub.s32 16, 16
      %56 = vsyncadd [#allocation5], %s55
      %s58 = sshll.u32 %s10, 4
      %s59 = int_to_ptr.vmem [resolvable:$true] %s58
      %61 = dma.vmem_to_smem %s59, 16, [#allocation6], [#allocation5]
    $region45: #{pfae_pdn_forward.1} parent=1 // pred_fallthru
      _
    // Predicated region
    $region46: #{pfae_pdn_forward.1} parent=1 // pred_check
      _
    $region47: #{pfae_pdn_forward.1} parent=1 // pred_check_branch
      %63 = sbr.rel (0) target = $region49
    $region48: #{pfae_pdn_forward.1} parent=1 // pred_region
      _
    $region49: #{pfae_pdn_forward.1} parent=1 // pred_fallthru
      _
    // Predicated region
    $region50: #{pfae_pdn_forward.1} parent=1 // pred_check
      _
    $region51: #{pfae_pdn_forward.1} parent=1 // pred_check_branch
      %65 = sbr.rel (0) target = $region53
    $region52: #{pfae_pdn_forward.1} parent=1 // pred_region
      _
    $region53: #{pfae_pdn_forward.1} parent=1 // pred_fallthru
      _
    // Predicated region
    $region54: #{pfae_pdn_forward.1} parent=1 // pred_check
      _
    $region55: #{pfae_pdn_forward.1} parent=1 // pred_check_branch
      %67 = sbr.rel (0) target = $region57
    $region56: #{pfae_pdn_forward.1} parent=1 // pred_region
      _
    $region57: #{pfae_pdn_forward.1} parent=1 // pred_fallthru
      _
    // Predicated region
    $region58: #{pfae_pdn_forward.1} parent=1 // pred_check
      _
    $region59: #{pfae_pdn_forward.1} parent=1 // pred_check_branch
      %69 = sbr.rel (0) target = $region61
    $region60: #{pfae_pdn_forward.1} parent=1 // pred_region
      %70 = dma.done [#allocation3], 2560
    $region61: #{pfae_pdn_forward.1} parent=1 // pred_fallthru
      _
    // Predicated region
    $region62: #{pfae_pdn_forward.1} parent=1 // pred_check
      _
    $region63: #{pfae_pdn_forward.1} parent=1 // pred_check_branch
      %72 = sbr.rel (0) target = $region65
    $region64: #{pfae_pdn_forward.1} parent=1 // pred_region
      %73 = dma.done [#allocation5], 16
    $region65: #{pfae_pdn_forward.1} parent=1 // pred_fallthru
      _
    %74 = sfence
    %v76 = vld [vmem:[%s2] sm:$0x1]
    %v77 = vlaneseq
    %v78 = vshrl.u32 %v77, 7
    %v79 = vadd.s32 %v78, 8
    %v80 = vlaneseq
    %v81 = vshrl.u32 %v80, 7
    %v82 = vsub.s32 0, %v81
    %v83 = vrot.slane %v76, %v82
    %vm84 = vcmp.eq.s32.totalorder %v83, %v78
    %vm85 = vcmp.eq.s32.totalorder %v83, %v79
    %v86 = vsel %vm84, 1, 0
    %v87 = vsel %vm85, 1, 0
    %v88 = vcvt.s32.f32 %v86
    %v89 = vcvt.s32.f32 %v87
    %v90 = vpack.c.bf16 %v89, %v88
    %v91 = vld [vmem:[%s1] sm:$0xff]
    %v92 = vld [vmem:[%s1 + $0x8] sm:$0xff]
    %v93 = vld [vmem:[%s1 + $0x10] sm:$0xff]
    %v94 = vld [vmem:[%s1 + $0x18] sm:$0xff]
    %v95 = vld [vmem:[%s1 + $0x20] sm:$0xff]
    %v96 = vld [vmem:[%s1 + $0x28] sm:$0xff]
    %v97 = vld [vmem:[%s0] sm:$0xff]
    %v98 = vld [vmem:[%s0 + $0x8] sm:$0xff]
    %v99 = vld [vmem:[%s0 + $0x10] sm:$0xff]
    %v100 = vld [vmem:[%s0 + $0x18] sm:$0xff]
    %v101 = vld [vmem:[%s0 + $0x20] sm:$0xff]
    %v102 = vld [vmem:[%s0 + $0x28] sm:$0xff]
    %v103 = vpack.c.bf16 %v98, %v97
    %v104 = vpack.c.bf16 %v100, %v99
    %v105 = vpack.c.bf16 %v102, %v101
    %v106 = vld [vmem:[%s4] sm:$0x3]
    %v107 = vld [vmem:[%s5] sm:$0x1]
    %v109 = vlaneseq
    %v110 = vshrl.u32 %v109, 7
    %v111 = vsub.s32 0, %v110
    %v112 = vrot.slane %v107, %v111
    %vm114 = vcmask 31744
    %v116 = vsel %vm114, %v103, 0
    %v119 = vsel %vm114, %v104, 0
    %v122 = vsel %vm114, %v105, 0
    %vm124 = vcmask 1041408
    %v126 = vsel %vm124, %v106, 0
    %128 = vmatprep.subr.bf16.mxu0 0
    %129 = vmatpush1.bf16.msra.mxu0 %v126
    %130 = vmatprep.subr.bf16.mxu0 0
    %131 = vmatpush1.bf16.msra.mxu0 0
    %132 = vmatprep.subr.bf16.mxu0 0
    %133 = vmatpush1.bf16.msra.mxu0 0
    %134 = vmatprep.subr.bf16.mxu0 0
    %135 = vmatpush1.bf16.msra.mxu0 0
    %136 = vmatprep.subr.bf16.mxu0 0
    %137 = vmatpush1.bf16.msra.mxu0 0
    %138 = vmatprep.subr.bf16.mxu0 0
    %139 = vmatpush1.bf16.msra.mxu0 0
    %140 = vmatprep.subr.bf16.mxu0 0
    %141 = vmatpush1.bf16.msra.mxu0 0
    %142 = vmatprep.subr.bf16.mxu0 0
    %143 = vmatpush1.bf16.msra.mxu0 0
    %144 = vmatprep.subr.bf16.mxu0 0
    %145 = vmatpush1.bf16.msra.mxu0 0
    %146 = vmatprep.subr.bf16.mxu0 0
    %147 = vmatpush1.bf16.msra.mxu0 0
    %148 = vmatprep.subr.bf16.mxu0 0
    %149 = vmatpush1.bf16.msra.mxu0 0
    %150 = vmatprep.subr.bf16.mxu0 0
    %151 = vmatpush1.bf16.msra.mxu0 0
    %152 = vmatprep.subr.bf16.mxu0 0
    %153 = vmatpush1.bf16.msra.mxu0 0
    %154 = vmatprep.subr.bf16.mxu0 0
    %155 = vmatpush1.bf16.msra.mxu0 0
    %156 = vmatprep.subr.bf16.mxu0 0
    %157 = vmatpush1.bf16.msra.mxu0 0
    %158 = vmatprep.subr.bf16.mxu0 0
    %159 = vmatpush1.bf16.msra.mxu0 0
    %160 = vmatprep.mubr.bf16.mxu0 0
    %161 = vmatmul.mubr.bf16.gmra.mrb[0].mxu0 %v116
    %v162 = vpop.f32.mrb[0].mxu0
    %v163 = vadd.f32 %v112, %v162
    %v164 = vpop.f32.mrb[0].mxu0
    %v165 = vpop.f32.mrb[0].mxu0
    %v166 = vadd.f32 %v112, %v165
    %v167 = vpop.f32.mrb[0].mxu0
    %168 = vmatprep.mubr.bf16.mxu0 0
    %169 = vmatmul.mubr.bf16.gmra.mrb[0].mxu0 %v119
    %v170 = vpop.f32.mrb[0].mxu0
    %v171 = vadd.f32 %v112, %v170
    %v172 = vpop.f32.mrb[0].mxu0
    %v173 = vpop.f32.mrb[0].mxu0
    %v174 = vadd.f32 %v112, %v173
    %v175 = vpop.f32.mrb[0].mxu0
    %176 = vmatprep.mubr.bf16.mxu0 0
    %177 = vmatmul.mubr.bf16.gmra.mrb[0].mxu0 %v122
    %v178 = vpop.f32.mrb[0].mxu0
    %v179 = vadd.f32 %v112, %v178
    %v180 = vpop.f32.mrb[0].mxu0
    %v181 = vpop.f32.mrb[0].mxu0
    %v182 = vadd.f32 %v112, %v181
    %v183 = vpop.f32.mrb[0].mxu0
    %184 = vdwg.mxu0
    %v185 = vmax.f32 %v163, 0.0
    %v186 = vmax.f32 %v166, 0.0
    %v187 = vmax.f32 %v171, 0.0
    %v188 = vmax.f32 %v174, 0.0
    %v189 = vmax.f32 %v179, 0.0
    %v190 = vmax.f32 %v182, 0.0
    %v191 = vpack.c.bf16 %v186, %v185
    %v192 = vpack.c.bf16 %v188, %v187
    %v193 = vpack.c.bf16 %v190, %v189
    %v194 = vld [vmem:[%s6] sm:$0xff]
    %v195 = vld [vmem:[%s6 + $0x8] sm:$0xff]
    %v196 = vld [vmem:[%s6 + $0x10] sm:$0xff]
    %v197 = vld [vmem:[%s6 + $0x18] sm:$0xff]
    %v198 = vld [vmem:[%s6 + $0x20] sm:$0xff]
    %v199 = vld [vmem:[%s6 + $0x28] sm:$0xff]
    %v200 = vld [vmem:[%s6 + $0x30] sm:$0xff]
    %v201 = vld [vmem:[%s6 + $0x38] sm:$0xff]
    %v202 = vld [vmem:[%s6 + $0x40] sm:$0xff]
    %v203 = vld [vmem:[%s6 + $0x48] sm:$0xff]
    %v204 = vld [vmem:[%s7] sm:$0x3]
    %v206 = vlaneseq
    %v207 = vshrl.u32 %v206, 7
    %v208 = vsub.s32 0, %v207
    %v209 = vrot.slane %v204, %v208
    %v210 = vlaneseq
    %v211 = vshrl.u32 %v210, 7
    %v212 = vsub.s32 1, %v211
    %v213 = vrot.slane %v204, %v212
    %v226 = vunpack.c.l.b16 %v194
    %v227 = vunpack.c.h.b16 %v194
    %v228 = vunpack.c.l.b16 %v195
    %v229 = vunpack.c.h.b16 %v195
    %v230 = vunpack.c.l.b16 %v196
    %v231 = vunpack.c.h.b16 %v196
    %v232 = vunpack.c.l.b16 %v197
    %v233 = vunpack.c.h.b16 %v197
    %v234 = vunpack.c.l.b16 %v198
    %v235 = vunpack.c.h.b16 %v198
    %v236 = vunpack.c.l.b16 %v199
    %v237 = vunpack.c.h.b16 %v199
    %v238 = vunpack.c.l.b16 %v200
    %v239 = vunpack.c.h.b16 %v200
    %v240 = vunpack.c.l.b16 %v201
    %v241 = vunpack.c.h.b16 %v201
    %v242 = vunpack.c.l.b16 %v202
    %v243 = vunpack.c.h.b16 %v202
    %v244 = vunpack.c.l.b16 %v203
    %v245 = vunpack.c.h.b16 %v203
    %v246 = vpack.c.b16 %v228, %v226
    %v247 = vpack.c.b16 %v229, %v227
    %v248 = vpack.c.b16 %v232, %v230
    %v249 = vpack.c.b16 %v233, %v231
    %v250 = vpack.c.b16 %v236, %v234
    %v251 = vpack.c.b16 %v237, %v235
    %v252 = vpack.c.b16 %v240, %v238
    %v253 = vpack.c.b16 %v241, %v239
    %v254 = vpack.c.b16 %v244, %v242
    %v255 = vpack.c.b16 %v245, %v243
    %vm266 = vcmask 654336
    %v268 = vsel %vm266, %v191, 0
    %v271 = vsel %vm266, %v192, 0
    %v274 = vsel %vm266, %v193, 0
    %276 = vmatprep.subr.bf16.mxu0 %v247
    %277 = vmatpush1.bf16.msra.mxu0 %v246
    %278 = vmatprep.subr.bf16.mxu0 %v249
    %279 = vmatpush1.bf16.msra.mxu0 %v248
    %280 = vmatprep.subr.bf16.mxu0 %v251
    %281 = vmatpush1.bf16.msra.mxu0 %v250
    %282 = vmatprep.subr.bf16.mxu0 %v253
    %283 = vmatpush1.bf16.msra.mxu0 %v252
    %284 = vmatprep.subr.bf16.mxu0 %v255
    %285 = vmatpush1.bf16.msra.mxu0 %v254
    %286 = vmatprep.subr.bf16.mxu0 0
    %287 = vmatpush1.bf16.msra.mxu0 0
    %288 = vmatprep.subr.bf16.mxu0 0
    %289 = vmatpush1.bf16.msra.mxu0 0
    %290 = vmatprep.subr.bf16.mxu0 0
    %291 = vmatpush1.bf16.msra.mxu0 0
    %292 = vmatprep.subr.bf16.mxu0 0
    %293 = vmatpush1.bf16.msra.mxu0 0
    %294 = vmatprep.subr.bf16.mxu0 0
    %295 = vmatpush1.bf16.msra.mxu0 0
    %296 = vmatprep.subr.bf16.mxu0 0
    %297 = vmatpush1.bf16.msra.mxu0 0
    %298 = vmatprep.subr.bf16.mxu0 0
    %299 = vmatpush1.bf16.msra.mxu0 0
    %300 = vmatprep.subr.bf16.mxu0 0
    %301 = vmatpush1.bf16.msra.mxu0 0
    %302 = vmatprep.subr.bf16.mxu0 0
    %303 = vmatpush1.bf16.msra.mxu0 0
    %304 = vmatprep.subr.bf16.mxu0 0
    %305 = vmatpush1.bf16.msra.mxu0 0
    %306 = vmatprep.subr.bf16.mxu0 0
    %307 = vmatpush1.bf16.msra.mxu0 0
    %308 = vmatprep.mubr.bf16.mxu0 0
    %309 = vmatmul.mubr.bf16.gmra.mrb[0].mxu0 %v268
    %v310 = vpop.f32.mrb[0].mxu0
    %v311 = vadd.f32 %v209, %v310
    %v312 = vpop.f32.mrb[0].mxu0
    %v313 = vadd.f32 %v213, %v312
    %v314 = vpop.f32.mrb[0].mxu0
    %v315 = vadd.f32 %v209, %v314
    %v316 = vpop.f32.mrb[0].mxu0
    %v317 = vadd.f32 %v213, %v316
    %318 = vmatprep.mubr.bf16.mxu0 0
    %319 = vmatmul.mubr.bf16.gmra.mrb[0].mxu0 %v271
    %v320 = vpop.f32.mrb[0].mxu0
    %v321 = vadd.f32 %v209, %v320
    %v322 = vpop.f32.mrb[0].mxu0
    %v323 = vadd.f32 %v213, %v322
    %v324 = vpop.f32.mrb[0].mxu0
    %v325 = vadd.f32 %v209, %v324
    %v326 = vpop.f32.mrb[0].mxu0
    %v327 = vadd.f32 %v213, %v326
    %328 = vmatprep.mubr.bf16.mxu0 0
    %329 = vmatmul.mubr.bf16.gmra.mrb[0].mxu0 %v274
    %v330 = vpop.f32.mrb[0].mxu0
    %v331 = vadd.f32 %v209, %v330
    %v332 = vpop.f32.mrb[0].mxu0
    %v333 = vadd.f32 %v213, %v332
    %v334 = vpop.f32.mrb[0].mxu0
    %v335 = vadd.f32 %v209, %v334
    %v336 = vpop.f32.mrb[0].mxu0
    %v337 = vadd.f32 %v213, %v336
    %338 = vdwg.mxu0
    %v339 = vxor.u32 %v311, 2147483648
    %v340 = vxor.u32 %v313, 2147483648
    %v341 = vxor.u32 %v315, 2147483648
    %v342 = vxor.u32 %v317, 2147483648
    %v343 = vxor.u32 %v321, 2147483648
    %v344 = vxor.u32 %v323, 2147483648
    %v345 = vxor.u32 %v325, 2147483648
    %v346 = vxor.u32 %v327, 2147483648
    %v347 = vxor.u32 %v331, 2147483648
    %v348 = vxor.u32 %v333, 2147483648
    %v349 = vxor.u32 %v335, 2147483648
    %v350 = vxor.u32 %v337, 2147483648
    %v351 = vmul.f32 %v339, 1.442695
    %v352 = vpow.pop %v351
    %v353 = vmul.f32 %v340, 1.442695
    %v354 = vpow.pop %v353
    %v355 = vmul.f32 %v341, 1.442695
    %v356 = vpow.pop %v355
    %v357 = vmul.f32 %v342, 1.442695
    %v358 = vpow.pop %v357
    %v359 = vmul.f32 %v343, 1.442695
    %v360 = vpow.pop %v359
    %v361 = vmul.f32 %v344, 1.442695
    %v362 = vpow.pop %v361
    %v363 = vmul.f32 %v345, 1.442695
    %v364 = vpow.pop %v363
    %v365 = vmul.f32 %v346, 1.442695
    %v366 = vpow.pop %v365
    %v367 = vmul.f32 %v347, 1.442695
    %v368 = vpow.pop %v367
    %v369 = vmul.f32 %v348, 1.442695
    %v370 = vpow.pop %v369
    %v371 = vmul.f32 %v349, 1.442695
    %v372 = vpow.pop %v371
    %v373 = vmul.f32 %v350, 1.442695
    %v374 = vpow.pop %v373
    %v375 = vadd.f32 %v352, 1.0
    %v376 = vadd.f32 %v354, 1.0
    %v377 = vadd.f32 %v356, 1.0
    %v378 = vadd.f32 %v358, 1.0
    %v379 = vadd.f32 %v360, 1.0
    %v380 = vadd.f32 %v362, 1.0
    %v381 = vadd.f32 %v364, 1.0
    %v382 = vadd.f32 %v366, 1.0
    %v383 = vadd.f32 %v368, 1.0
    %v384 = vadd.f32 %v370, 1.0
    %v385 = vadd.f32 %v372, 1.0
    %v386 = vadd.f32 %v374, 1.0
    %v387 = vrcp.pop %v375
    %v388 = vmul.f32 1.0, %v387
    %v389 = vrcp.pop %v376
    %v390 = vmul.f32 1.0, %v389
    %v391 = vrcp.pop %v377
    %v392 = vmul.f32 1.0, %v391
    %v393 = vrcp.pop %v378
    %v394 = vmul.f32 1.0, %v393
    %v395 = vrcp.pop %v379
    %v396 = vmul.f32 1.0, %v395
    %v397 = vrcp.pop %v380
    %v398 = vmul.f32 1.0, %v397
    %v399 = vrcp.pop %v381
    %v400 = vmul.f32 1.0, %v399
    %v401 = vrcp.pop %v382
    %v402 = vmul.f32 1.0, %v401
    %v403 = vrcp.pop %v383
    %v404 = vmul.f32 1.0, %v403
    %v405 = vrcp.pop %v384
    %v406 = vmul.f32 1.0, %v405
    %v407 = vrcp.pop %v385
    %v408 = vmul.f32 1.0, %v407
    %v409 = vrcp.pop %v386
    %v410 = vmul.f32 1.0, %v409
    %v411 = vlaneseq
    %v412 = vand.u32 %v411, 127
    %v413 = vadd.s32 %v412, 128
    %vm414 = vcmp.lt.s32.totalorder %v412, 0
    %v415 = vsub.s32 0, %v412
    %v416 = vsel %vm414, %v415, %v412
    %v417 = vshrl.u32 %v416, 4
    %v418 = vand.u32 %v416, 15
    %v419 = vsub.s32 0, %v418
    %v420 = vsel %vm414, %v419, %v418
    %vm421 = vcmp.lt.s32.totalorder %v413, 0
    %v422 = vsub.s32 0, %v413
    %v423 = vsel %vm421, %v422, %v413
    %v424 = vshrl.u32 %v423, 4
    %v425 = vand.u32 %v423, 15
    %v426 = vsub.s32 0, %v425
    %v427 = vsel %vm421, %v426, %v425
    %vm428 = vcmp.ne.s32.totalorder %v420, 0
    %vm429 = vcmp.ne.s32.totalorder %v427, 0
    %vm430 = vcmp.lt.s32.totalorder %v420, 0
    %vm431 = vcmp.lt.s32.totalorder %v427, 0
    %vm432 = vmand %vm430, %vm428
    %vm433 = vmand %vm431, %vm429
    %v434 = vadd.s32 %v420, 16
    %v435 = vadd.s32 %v427, 16
    %v436 = vsel %vm432, %v434, %v420
    %v437 = vsel %vm433, %v435, %v427
    %438 = vset.pattern.permute.xlu0 0
    %439 = vperm.xlu0 %438, %v91
    %v440 = vpop.permute.xlu0 %439
    %441 = vset.pattern.permute.xlu0 0
    %442 = vperm.xlu0 %441, %v92
    %v443 = vpop.permute.xlu0 %442
    %444 = vset.pattern.permute.xlu0 0
    %445 = vperm.xlu0 %444, %v93
    %v446 = vpop.permute.xlu0 %445
    %447 = vset.pattern.permute.xlu0 0
    %448 = vperm.xlu0 %447, %v94
    %v449 = vpop.permute.xlu0 %448
    %450 = vset.pattern.permute.xlu0 0
    %451 = vperm.xlu0 %450, %v95
    %v452 = vpop.permute.xlu0 %451
    %453 = vset.pattern.permute.xlu0 0
    %454 = vperm.xlu0 %453, %v96
    %v455 = vpop.permute.xlu0 %454
    %vm456 = vcmp.eq.s32.totalorder %v440, %v436
    %vm457 = vcmp.eq.s32.totalorder %v440, %v437
    %vm458 = vcmp.eq.s32.totalorder %v443, %v436
    %vm459 = vcmp.eq.s32.totalorder %v443, %v437
    %vm460 = vcmp.eq.s32.totalorder %v446, %v436
    %vm461 = vcmp.eq.s32.totalorder %v446, %v437
    %vm462 = vcmp.eq.s32.totalorder %v449, %v436
    %vm463 = vcmp.eq.s32.totalorder %v449, %v437
    %vm464 = vcmp.eq.s32.totalorder %v452, %v436
    %vm465 = vcmp.eq.s32.totalorder %v452, %v437
    %vm466 = vcmp.eq.s32.totalorder %v455, %v436
    %vm467 = vcmp.eq.s32.totalorder %v455, %v437
    %v468 = vsel %vm456, %v388, 0.0
    %v469 = vsel %vm457, %v390, 0.0
    %v470 = vsel %vm458, %v392, 0.0
    %v471 = vsel %vm459, %v394, 0.0
    %v472 = vsel %vm460, %v396, 0.0
    %v473 = vsel %vm461, %v398, 0.0
    %v474 = vsel %vm462, %v400, 0.0
    %v475 = vsel %vm463, %v402, 0.0
    %v476 = vsel %vm464, %v404, 0.0
    %v477 = vsel %vm465, %v406, 0.0
    %v478 = vsel %vm466, %v408, 0.0
    %v479 = vsel %vm467, %v410, 0.0
    %v480 = vpack.c.bf16 %v470, %v468
    %v481 = vpack.c.bf16 %v471, %v469
    %v482 = vpack.c.bf16 %v474, %v472
    %v483 = vpack.c.bf16 %v475, %v473
    %v484 = vpack.c.bf16 %v478, %v476
    %v485 = vpack.c.bf16 %v479, %v477
    %vm486 = vcmask 392192
    %v488 = vsel %vm486, %v90, 0
    %490 = vmatprep.subr.bf16.mxu0 %v481
    %491 = vmatpush1.bf16.msra.mxu0 %v480
    %492 = vmatprep.subr.bf16.mxu0 %v483
    %493 = vmatpush1.bf16.msra.mxu0 %v482
    %494 = vmatprep.subr.bf16.mxu0 %v485
    %495 = vmatpush1.bf16.msra.mxu0 %v484
    %496 = vmatprep.subr.bf16.mxu0 0
    %497 = vmatpush1.bf16.msra.mxu0 0
    %498 = vmatprep.subr.bf16.mxu0 0
    %499 = vmatpush1.bf16.msra.mxu0 0
    %500 = vmatprep.subr.bf16.mxu0 0
    %501 = vmatpush1.bf16.msra.mxu0 0
    %502 = vmatprep.subr.bf16.mxu0 0
    %503 = vmatpush1.bf16.msra.mxu0 0
    %504 = vmatprep.subr.bf16.mxu0 0
    %505 = vmatpush1.bf16.msra.mxu0 0
    %506 = vmatprep.subr.bf16.mxu0 0
    %507 = vmatpush1.bf16.msra.mxu0 0
    %508 = vmatprep.subr.bf16.mxu0 0
    %509 = vmatpush1.bf16.msra.mxu0 0
    %510 = vmatprep.subr.bf16.mxu0 0
    %511 = vmatpush1.bf16.msra.mxu0 0
    %512 = vmatprep.subr.bf16.mxu0 0
    %513 = vmatpush1.bf16.msra.mxu0 0
    %514 = vmatprep.subr.bf16.mxu0 0
    %515 = vmatpush1.bf16.msra.mxu0 0
    %516 = vmatprep.subr.bf16.mxu0 0
    %517 = vmatpush1.bf16.msra.mxu0 0
    %518 = vmatprep.subr.bf16.mxu0 0
    %519 = vmatpush1.bf16.msra.mxu0 0
    %520 = vmatprep.subr.bf16.mxu0 0
    %521 = vmatpush1.bf16.msra.mxu0 0
    %522 = vmatprep.mubr.bf16.mxu0 0
    %523 = vmatmul.mubr.bf16.gmra.mrb[0].mxu0 %v488
    %v524 = vpop.f32.mrb[0].mxu0
    %v525 = vadd.f32 0.0, %v524
    %v526 = vpop.f32.mrb[0].mxu0
    %v527 = vadd.f32 0.0, %v526
    %v528 = vpop.f32.mrb[0].mxu0
    %v529 = vadd.f32 0.0, %v528
    %v530 = vpop.f32.mrb[0].mxu0
    %v531 = vadd.f32 0.0, %v530
    %532 = vdwg.mxu0
    %v533 = vpack.c.bf16 %v529, %v525
    %v534 = vpack.c.bf16 %v531, %v527
    %v535 = vld [vmem:[%s3] sm:$0xff]
    %v536 = vld [vmem:[%s3 + $0x8] sm:$0xff]
    %v537 = vpack.c.bf16 %v536, %v535
    %vm538 = vcmask 130048
    %v539 = vsel %vm538, %v525, 0.0
    %540 = vadd.xlane.f32.xlu0 %v539
    %v541 = vpop.xlane.xlu0 %540
    %v542 = vsel %vm538, %v529, 0.0
    %543 = vadd.xlane.f32.xlu0 %v542
    %v544 = vpop.xlane.xlu0 %543
    %v545 = vadd.f32 %v541, 1.0
    %v546 = vadd.f32 %v544, 1.0
    %v547 = vrsqrt.pop %v545
    %v548 = vrsqrt.pop %v546
    %v549 = vld [vmem:[#allocation2] sm:$0xf]
    %v550 = vld [vmem:[#allocation2 + $0x4] sm:$0xf]
    %v551 = vld [vmem:[#allocation2 + $0x8] sm:$0xf]
    %v552 = vld [vmem:[#allocation2 + $0xc] sm:$0xf]
    %v557 = vunpack.c.l.b16 %v549
    %v558 = vunpack.c.l.b16 %v550
    %v559 = vunpack.c.l.b16 %v551
    %v560 = vunpack.c.l.b16 %v552
    %v561 = vpack.c.b16 %v558, %v557
    %v562 = vpack.c.b16 %v560, %v559
    %vm565 = vcmask 261120
    %v567 = vsel %vm565, %v537, 0
    %569 = vmatprep.subr.bf16.mxu0 0
    %570 = vmatpush1.bf16.msra.mxu0 %v561
    %571 = vmatprep.subr.bf16.mxu0 0
    %572 = vmatpush1.bf16.msra.mxu0 %v562
    %573 = vmatprep.subr.bf16.mxu0 0
    %574 = vmatpush1.bf16.msra.mxu0 0
    %575 = vmatprep.subr.bf16.mxu0 0
    %576 = vmatpush1.bf16.msra.mxu0 0
    %577 = vmatprep.subr.bf16.mxu0 0
    %578 = vmatpush1.bf16.msra.mxu0 0
    %579 = vmatprep.subr.bf16.mxu0 0
    %580 = vmatpush1.bf16.msra.mxu0 0
    %581 = vmatprep.subr.bf16.mxu0 0
    %582 = vmatpush1.bf16.msra.mxu0 0
    %583 = vmatprep.subr.bf16.mxu0 0
    %584 = vmatpush1.bf16.msra.mxu0 0
    %585 = vmatprep.subr.bf16.mxu0 0
    %586 = vmatpush1.bf16.msra.mxu0 0
    %587 = vmatprep.subr.bf16.mxu0 0
    %588 = vmatpush1.bf16.msra.mxu0 0
    %589 = vmatprep.subr.bf16.mxu0 0
    %590 = vmatpush1.bf16.msra.mxu0 0
    %591 = vmatprep.subr.bf16.mxu0 0
    %592 = vmatpush1.bf16.msra.mxu0 0
    %593 = vmatprep.subr.bf16.mxu0 0
    %594 = vmatpush1.bf16.msra.mxu0 0
    %595 = vmatprep.subr.bf16.mxu0 0
    %596 = vmatpush1.bf16.msra.mxu0 0
    %597 = vmatprep.subr.bf16.mxu0 0
    %598 = vmatpush1.bf16.msra.mxu0 0
    %599 = vmatprep.subr.bf16.mxu0 0
    %600 = vmatpush1.bf16.msra.mxu0 0
    %601 = vmatprep.mubr.bf16.mxu0 0
    %602 = vmatmul.mubr.bf16.gmra.mrb[0].mxu0 %v567
    %v603 = vpop.f32.mrb[0].mxu0
    %v604 = vadd.f32 0.0, %v603
    %v605 = vpop.f32.mrb[0].mxu0
    %v606 = vpop.f32.mrb[0].mxu0
    %v607 = vadd.f32 0.0, %v606
    %v608 = vpop.f32.mrb[0].mxu0
    %609 = vdwg.mxu0
    %v610 = vmul.f32 %v547, %v604
    %v611 = vmul.f32 %v548, %v607
    %v612 = vpack.c.bf16 %v611, %v610
    %v614 = vsel %vm538, %v533, 0
    %616 = vmatprep.subr.bf16.mxu0 0
    %617 = vmatpush1.bf16.msra.mxu0 %v612
    %618 = vmatprep.subr.bf16.mxu0 0
    %619 = vmatpush1.bf16.msra.mxu0 0
    %620 = vmatprep.subr.bf16.mxu0 0
    %621 = vmatpush1.bf16.msra.mxu0 0
    %622 = vmatprep.subr.bf16.mxu0 0
    %623 = vmatpush1.bf16.msra.mxu0 0
    %624 = vmatprep.subr.bf16.mxu0 0
    %625 = vmatpush1.bf16.msra.mxu0 0
    %626 = vmatprep.subr.bf16.mxu0 0
    %627 = vmatpush1.bf16.msra.mxu0 0
    %628 = vmatprep.subr.bf16.mxu0 0
    %629 = vmatpush1.bf16.msra.mxu0 0
    %630 = vmatprep.subr.bf16.mxu0 0
    %631 = vmatpush1.bf16.msra.mxu0 0
    %632 = vmatprep.subr.bf16.mxu0 0
    %633 = vmatpush1.bf16.msra.mxu0 0
    %634 = vmatprep.subr.bf16.mxu0 0
    %635 = vmatpush1.bf16.msra.mxu0 0
    %636 = vmatprep.subr.bf16.mxu0 0
    %637 = vmatpush1.bf16.msra.mxu0 0
    %638 = vmatprep.subr.bf16.mxu0 0
    %639 = vmatpush1.bf16.msra.mxu0 0
    %640 = vmatprep.subr.bf16.mxu0 0
    %641 = vmatpush1.bf16.msra.mxu0 0
    %642 = vmatprep.subr.bf16.mxu0 0
    %643 = vmatpush1.bf16.msra.mxu0 0
    %644 = vmatprep.subr.bf16.mxu0 0
    %645 = vmatpush1.bf16.msra.mxu0 0
    %646 = vmatprep.subr.bf16.mxu0 0
    %647 = vmatpush1.bf16.msra.mxu0 0
    %648 = vmatprep.mubr.bf16.mxu0 0
    %649 = vmatmul.mubr.bf16.gmra.mrb[0].mxu0 %v614
    %v650 = vpop.f32.mrb[0].mxu0
    %v651 = vadd.f32 %v610, %v650
    %v652 = vpop.f32.mrb[0].mxu0
    %v653 = vpop.f32.mrb[0].mxu0
    %v654 = vadd.f32 %v611, %v653
    %v655 = vpop.f32.mrb[0].mxu0
    %656 = vdwg.mxu0
    %v657 = vmul.f32 %v547, %v651
    %v658 = vmul.f32 %v548, %v654
    %v659 = vld [vmem:[%s9] sm:$0x1]
    %v661 = vlaneseq
    %v662 = vshrl.u32 %v661, 7
    %v663 = vsub.s32 0, %v662
    %v664 = vrot.slane %v659, %v663
    %v666 = vadd.f32 %v657, %v664
    %v667 = vadd.f32 %v658, %v664
    %s668 = sld [smem:[#allocation6]]
    %vm669 = vcmp.ge.f32.partialorder %v666, 0.0
    %vm670 = vcmp.ge.f32.partialorder %v667, 0.0
    %v671 = vstv %s668
    %v672 = vmul.f32 %v671, %v666
    %v673 = vmul.f32 %v671, %v667
    %v674 = vsel %vm669, %v666, %v672
    %v675 = vsel %vm670, %v667, %v673
    %v676 = vsel %vm565, %v674, 0.0
    %v677 = vsel %vm565, %v675, 0.0
    %v678 = vadd.f32 %v676, %v677
    %v679 = vrot.slane %v678, 4
    %v680 = vadd.f32 %v678, %v679
    %v681 = vrot.slane %v680, 2
    %v682 = vadd.f32 %v680, %v681
    %v683 = vrot.slane %v682, 1
    %v684 = vadd.f32 %v682, %v683
    %v685 = vrcp.pop 16.0
    %v686 = vmul.f32 %v684, %v685
    %v687 = vld [vmem:[%s13] sm:$0x1]
    %v688 = vmul.f32 %v686, %v687
    %v689 = vlaneseq
    %v690 = vshrl.u32 %v689, 7
    %v691 = vsub.s32 0, %v690
    %v692 = vrot.slane %v688, %v691
    %v693 = vsub.f32 %v674, %v692
    %v694 = vsub.f32 %v675, %v692
    %v695 = vmul.f32 %v693, %v693
    %v696 = vmul.f32 %v694, %v694
    %v697 = vsel %vm565, %v695, 0.0
    %v698 = vsel %vm565, %v696, 0.0
    %v699 = vadd.f32 %v697, %v698
    %v700 = vrot.slane %v699, 4
    %v701 = vadd.f32 %v699, %v700
    %v702 = vrot.slane %v701, 2
    %v703 = vadd.f32 %v701, %v702
    %v704 = vrot.slane %v703, 1
    %v705 = vadd.f32 %v703, %v704
    %v706 = vmul.f32 %v705, %v685
    %v707 = vld [vmem:[%s11] sm:$0x1]
    %v709 = vlaneseq
    %v710 = vshrl.u32 %v709, 7
    %v711 = vsub.s32 0, %v710
    %v712 = vrot.slane %v707, %v711
    %v714 = vmul.f32 %v712, %v693
    %v715 = vmul.f32 %v712, %v694
    %v716 = vadd.f32 %v706, 1e-05
    %v717 = vrsqrt.pop %v716
    %v718 = vmul.f32 %v714, %v717
    %v719 = vmul.f32 %v715, %v717
    %v720 = vld [vmem:[%s12] sm:$0x1]
    %v722 = vlaneseq
    %v723 = vshrl.u32 %v722, 7
    %v724 = vsub.s32 0, %v723
    %v725 = vrot.slane %v720, %v724
    %v727 = vadd.f32 %v718, %v725
    %v728 = vadd.f32 %v719, %v725
    %v729 = vpack.c.bf16 %v728, %v727
    %732 = vrot.lane.b32.xlu0 %v525, 112
    %v733 = vpop.permute.xlu0 %732
    %734 = vrot.lane.b32.xlu0 %v529, 112
    %v735 = vpop.permute.xlu0 %734
    %v738 = vsel %vm538, %v733, 0.0
    %739 = vadd.xlane.f32.xlu0 %v738
    %v740 = vpop.xlane.xlu0 %739
    %v741 = vsel %vm538, %v735, 0.0
    %742 = vadd.xlane.f32.xlu0 %v741
    %v743 = vpop.xlane.xlu0 %742
    %v744 = vadd.f32 %v740, 1.0
    %v745 = vadd.f32 %v743, 1.0
    %v746 = vrsqrt.pop %v744
    %v747 = vrsqrt.pop %v745
    %s748 = scalar_lea.vmem [#allocation2], 16
    %v749 = vld [vmem:[%s748] sm:$0xf]
    %v750 = vld [vmem:[%s748 + $0x4] sm:$0xf]
    %v751 = vld [vmem:[%s748 + $0x8] sm:$0xf]
    %v752 = vld [vmem:[%s748 + $0xc] sm:$0xf]
    %v757 = vunpack.c.l.b16 %v749
    %v758 = vunpack.c.l.b16 %v750
    %v759 = vunpack.c.l.b16 %v751
    %v760 = vunpack.c.l.b16 %v752
    %v761 = vpack.c.b16 %v758, %v757
    %v762 = vpack.c.b16 %v760, %v759
    %v766 = vsel %vm565, %v729, 0
    %768 = vmatprep.subr.bf16.mxu0 0
    %769 = vmatpush1.bf16.msra.mxu0 %v761
    %770 = vmatprep.subr.bf16.mxu0 0
    %771 = vmatpush1.bf16.msra.mxu0 %v762
    %772 = vmatprep.subr.bf16.mxu0 0
    %773 = vmatpush1.bf16.msra.mxu0 0
    %774 = vmatprep.subr.bf16.mxu0 0
    %775 = vmatpush1.bf16.msra.mxu0 0
    %776 = vmatprep.subr.bf16.mxu0 0
    %777 = vmatpush1.bf16.msra.mxu0 0
    %778 = vmatprep.subr.bf16.mxu0 0
    %779 = vmatpush1.bf16.msra.mxu0 0
    %780 = vmatprep.subr.bf16.mxu0 0
    %781 = vmatpush1.bf16.msra.mxu0 0
    %782 = vmatprep.subr.bf16.mxu0 0
    %783 = vmatpush1.bf16.msra.mxu0 0
    %784 = vmatprep.subr.bf16.mxu0 0
    %785 = vmatpush1.bf16.msra.mxu0 0
    %786 = vmatprep.subr.bf16.mxu0 0
    %787 = vmatpush1.bf16.msra.mxu0 0
    %788 = vmatprep.subr.bf16.mxu0 0
    %789 = vmatpush1.bf16.msra.mxu0 0
    %790 = vmatprep.subr.bf16.mxu0 0
    %791 = vmatpush1.bf16.msra.mxu0 0
    %792 = vmatprep.subr.bf16.mxu0 0
    %793 = vmatpush1.bf16.msra.mxu0 0
    %794 = vmatprep.subr.bf16.mxu0 0
    %795 = vmatpush1.bf16.msra.mxu0 0
    %796 = vmatprep.subr.bf16.mxu0 0
    %797 = vmatpush1.bf16.msra.mxu0 0
    %798 = vmatprep.subr.bf16.mxu0 0
    %799 = vmatpush1.bf16.msra.mxu0 0
    %800 = vmatprep.mubr.bf16.mxu0 0
    %801 = vmatmul.mubr.bf16.gmra.mrb[0].mxu0 %v766
    %v802 = vpop.f32.mrb[0].mxu0
    %v803 = vadd.f32 0.0, %v802
    %v804 = vpop.f32.mrb[0].mxu0
    %v805 = vpop.f32.mrb[0].mxu0
    %v806 = vadd.f32 0.0, %v805
    %v807 = vpop.f32.mrb[0].mxu0
    %808 = vdwg.mxu0
    %v809 = vmul.f32 %v746, %v803
    %v810 = vmul.f32 %v747, %v806
    %v811 = vpack.c.bf16 %v810, %v809
    %813 = vrot.lane.b32.xlu0 %v533, 112
    %v814 = vpop.permute.xlu0 %813
    %v816 = vsel %vm538, %v814, 0
    %818 = vmatprep.subr.bf16.mxu0 0
    %819 = vmatpush1.bf16.msra.mxu0 %v811
    %820 = vmatprep.subr.bf16.mxu0 0
    %821 = vmatpush1.bf16.msra.mxu0 0
    %822 = vmatprep.subr.bf16.mxu0 0
    %823 = vmatpush1.bf16.msra.mxu0 0
    %824 = vmatprep.subr.bf16.mxu0 0
    %825 = vmatpush1.bf16.msra.mxu0 0
    %826 = vmatprep.subr.bf16.mxu0 0
    %827 = vmatpush1.bf16.msra.mxu0 0
    %828 = vmatprep.subr.bf16.mxu0 0
    %829 = vmatpush1.bf16.msra.mxu0 0
    %830 = vmatprep.subr.bf16.mxu0 0
    %831 = vmatpush1.bf16.msra.mxu0 0
    %832 = vmatprep.subr.bf16.mxu0 0
    %833 = vmatpush1.bf16.msra.mxu0 0
    %834 = vmatprep.subr.bf16.mxu0 0
    %835 = vmatpush1.bf16.msra.mxu0 0
    %836 = vmatprep.subr.bf16.mxu0 0
    %837 = vmatpush1.bf16.msra.mxu0 0
    %838 = vmatprep.subr.bf16.mxu0 0
    %839 = vmatpush1.bf16.msra.mxu0 0
    %840 = vmatprep.subr.bf16.mxu0 0
    %841 = vmatpush1.bf16.msra.mxu0 0
    %842 = vmatprep.subr.bf16.mxu0 0
    %843 = vmatpush1.bf16.msra.mxu0 0
    %844 = vmatprep.subr.bf16.mxu0 0
    %845 = vmatpush1.bf16.msra.mxu0 0
    %846 = vmatprep.subr.bf16.mxu0 0
    %847 = vmatpush1.bf16.msra.mxu0 0
    %848 = vmatprep.subr.bf16.mxu0 0
    %849 = vmatpush1.bf16.msra.mxu0 0
    %850 = vmatprep.mubr.bf16.mxu0 0
    %851 = vmatmul.mubr.bf16.gmra.mrb[0].mxu0 %v816
    %v852 = vpop.f32.mrb[0].mxu0
    %v853 = vadd.f32 %v809, %v852
    %v854 = vpop.f32.mrb[0].mxu0
    %v855 = vpop.f32.mrb[0].mxu0
    %v856 = vadd.f32 %v810, %v855
    %v857 = vpop.f32.mrb[0].mxu0
    %858 = vdwg.mxu0
    %v859 = vmul.f32 %v746, %v853
    %v860 = vmul.f32 %v747, %v856
    %s861 = scalar_lea.vmem %s9, 1
    %v862 = vld [vmem:[%s861] sm:$0x1]
    %v864 = vlaneseq
    %v865 = vshrl.u32 %v864, 7
    %v866 = vsub.s32 0, %v865
    %v867 = vrot.slane %v862, %v866
    %v869 = vadd.f32 %v859, %v867
    %v870 = vadd.f32 %v860, %v867
    %s871 = sld [smem:[#allocation6 + $0x1]]
    %vm872 = vcmp.ge.f32.partialorder %v869, 0.0
    %vm873 = vcmp.ge.f32.partialorder %v870, 0.0
    %v874 = vstv %s871
    %v875 = vmul.f32 %v874, %v869
    %v876 = vmul.f32 %v874, %v870
    %v877 = vsel %vm872, %v869, %v875
    %v878 = vsel %vm873, %v870, %v876
    %v879 = vsel %vm565, %v877, 0.0
    %v880 = vsel %vm565, %v878, 0.0
    %v881 = vadd.f32 %v879, %v880
    %v882 = vrot.slane %v881, 4
    %v883 = vadd.f32 %v881, %v882
    %v884 = vrot.slane %v883, 2
    %v885 = vadd.f32 %v883, %v884
    %v886 = vrot.slane %v885, 1
    %v887 = vadd.f32 %v885, %v886
    %v888 = vmul.f32 %v887, %v685
    %s889 = scalar_lea.vmem %s13, 1
    %v890 = vld [vmem:[%s889] sm:$0x1]
    %v891 = vmul.f32 %v888, %v890
    %v892 = vlaneseq
    %v893 = vshrl.u32 %v892, 7
    %v894 = vsub.s32 0, %v893
    %v895 = vrot.slane %v891, %v894
    %v896 = vsub.f32 %v877, %v895
    %v897 = vsub.f32 %v878, %v895
    %v898 = vmul.f32 %v896, %v896
    %v899 = vmul.f32 %v897, %v897
    %v900 = vsel %vm565, %v898, 0.0
    %v901 = vsel %vm565, %v899, 0.0
    %v902 = vadd.f32 %v900, %v901
    %v903 = vrot.slane %v902, 4
    %v904 = vadd.f32 %v902, %v903
    %v905 = vrot.slane %v904, 2
    %v906 = vadd.f32 %v904, %v905
    %v907 = vrot.slane %v906, 1
    %v908 = vadd.f32 %v906, %v907
    %v909 = vmul.f32 %v908, %v685
    %s910 = scalar_lea.vmem %s11, 1
    %v911 = vld [vmem:[%s910] sm:$0x1]
    %v913 = vlaneseq
    %v914 = vshrl.u32 %v913, 7
    %v915 = vsub.s32 0, %v914
    %v916 = vrot.slane %v911, %v915
    %v918 = vmul.f32 %v916, %v896
    %v919 = vmul.f32 %v916, %v897
    %v920 = vadd.f32 %v909, 1e-05
    %v921 = vrsqrt.pop %v920
    %v922 = vmul.f32 %v918, %v921
    %v923 = vmul.f32 %v919, %v921
    %s924 = scalar_lea.vmem %s12, 1
    %v925 = vld [vmem:[%s924] sm:$0x1]
    %v927 = vlaneseq
    %v928 = vshrl.u32 %v927, 7
    %v929 = vsub.s32 0, %v928
    %v930 = vrot.slane %v925, %v929
    %v932 = vadd.f32 %v922, %v930
    %v933 = vadd.f32 %v923, %v930
    %v934 = vpack.c.bf16 %v933, %v932
    %935 = vrot.lane.b32.xlu0 %v525, 96
    %v936 = vpop.permute.xlu0 %935
    %937 = vrot.lane.b32.xlu0 %v529, 96
    %v938 = vpop.permute.xlu0 %937
    %v941 = vsel %vm538, %v936, 0.0
    %942 = vadd.xlane.f32.xlu0 %v941
    %v943 = vpop.xlane.xlu0 %942
    %v944 = vsel %vm538, %v938, 0.0
    %945 = vadd.xlane.f32.xlu0 %v944
    %v946 = vpop.xlane.xlu0 %945
    %v947 = vadd.f32 %v943, 1.0
    %v948 = vadd.f32 %v946, 1.0
    %v949 = vrsqrt.pop %v947
    %v950 = vrsqrt.pop %v948
    %s951 = scalar_lea.vmem [#allocation2], 32
    %v952 = vld [vmem:[%s951] sm:$0xf]
    %v953 = vld [vmem:[%s951 + $0x4] sm:$0xf]
    %v954 = vld [vmem:[%s951 + $0x8] sm:$0xf]
    %v955 = vld [vmem:[%s951 + $0xc] sm:$0xf]
    %v960 = vunpack.c.l.b16 %v952
    %v961 = vunpack.c.l.b16 %v953
    %v962 = vunpack.c.l.b16 %v954
    %v963 = vunpack.c.l.b16 %v955
    %v964 = vpack.c.b16 %v961, %v960
    %v965 = vpack.c.b16 %v963, %v962
    %v969 = vsel %vm565, %v934, 0
    %971 = vmatprep.subr.bf16.mxu0 0
    %972 = vmatpush1.bf16.msra.mxu0 %v964
    %973 = vmatprep.subr.bf16.mxu0 0
    %974 = vmatpush1.bf16.msra.mxu0 %v965
    %975 = vmatprep.subr.bf16.mxu0 0
    %976 = vmatpush1.bf16.msra.mxu0 0
    %977 = vmatprep.subr.bf16.mxu0 0
    %978 = vmatpush1.bf16.msra.mxu0 0
    %979 = vmatprep.subr.bf16.mxu0 0
    %980 = vmatpush1.bf16.msra.mxu0 0
    %981 = vmatprep.subr.bf16.mxu0 0
    %982 = vmatpush1.bf16.msra.mxu0 0
    %983 = vmatprep.subr.bf16.mxu0 0
    %984 = vmatpush1.bf16.msra.mxu0 0
    %985 = vmatprep.subr.bf16.mxu0 0
    %986 = vmatpush1.bf16.msra.mxu0 0
    %987 = vmatprep.subr.bf16.mxu0 0
    %988 = vmatpush1.bf16.msra.mxu0 0
    %989 = vmatprep.subr.bf16.mxu0 0
    %990 = vmatpush1.bf16.msra.mxu0 0
    %991 = vmatprep.subr.bf16.mxu0 0
    %992 = vmatpush1.bf16.msra.mxu0 0
    %993 = vmatprep.subr.bf16.mxu0 0
    %994 = vmatpush1.bf16.msra.mxu0 0
    %995 = vmatprep.subr.bf16.mxu0 0
    %996 = vmatpush1.bf16.msra.mxu0 0
    %997 = vmatprep.subr.bf16.mxu0 0
    %998 = vmatpush1.bf16.msra.mxu0 0
    %999 = vmatprep.subr.bf16.mxu0 0
    %1000 = vmatpush1.bf16.msra.mxu0 0
    %1001 = vmatprep.subr.bf16.mxu0 0
    %1002 = vmatpush1.bf16.msra.mxu0 0
    %1003 = vmatprep.mubr.bf16.mxu0 0
    %1004 = vmatmul.mubr.bf16.gmra.mrb[0].mxu0 %v969
    %v1005 = vpop.f32.mrb[0].mxu0
    %v1006 = vadd.f32 0.0, %v1005
    %v1007 = vpop.f32.mrb[0].mxu0
    %v1008 = vpop.f32.mrb[0].mxu0
    %v1009 = vadd.f32 0.0, %v1008
    %v1010 = vpop.f32.mrb[0].mxu0
    %1011 = vdwg.mxu0
    %v1012 = vmul.f32 %v949, %v1006
    %v1013 = vmul.f32 %v950, %v1009
    %v1014 = vpack.c.bf16 %v1013, %v1012
    %1015 = vrot.lane.b32.xlu0 %v533, 96
    %v1016 = vpop.permute.xlu0 %1015
    %v1018 = vsel %vm538, %v1016, 0
    %1020 = vmatprep.subr.bf16.mxu0 0
    %1021 = vmatpush1.bf16.msra.mxu0 %v1014
    %1022 = vmatprep.subr.bf16.mxu0 0
    %1023 = vmatpush1.bf16.msra.mxu0 0
    %1024 = vmatprep.subr.bf16.mxu0 0
    %1025 = vmatpush1.bf16.msra.mxu0 0
    %1026 = vmatprep.subr.bf16.mxu0 0
    %1027 = vmatpush1.bf16.msra.mxu0 0
    %1028 = vmatprep.subr.bf16.mxu0 0
    %1029 = vmatpush1.bf16.msra.mxu0 0
    %1030 = vmatprep.subr.bf16.mxu0 0
    %1031 = vmatpush1.bf16.msra.mxu0 0
    %1032 = vmatprep.subr.bf16.mxu0 0
    %1033 = vmatpush1.bf16.msra.mxu0 0
    %1034 = vmatprep.subr.bf16.mxu0 0
    %1035 = vmatpush1.bf16.msra.mxu0 0
    %1036 = vmatprep.subr.bf16.mxu0 0
    %1037 = vmatpush1.bf16.msra.mxu0 0
    %1038 = vmatprep.subr.bf16.mxu0 0
    %1039 = vmatpush1.bf16.msra.mxu0 0
    %1040 = vmatprep.subr.bf16.mxu0 0
    %1041 = vmatpush1.bf16.msra.mxu0 0
    %1042 = vmatprep.subr.bf16.mxu0 0
    %1043 = vmatpush1.bf16.msra.mxu0 0
    %1044 = vmatprep.subr.bf16.mxu0 0
    %1045 = vmatpush1.bf16.msra.mxu0 0
    %1046 = vmatprep.subr.bf16.mxu0 0
    %1047 = vmatpush1.bf16.msra.mxu0 0
    %1048 = vmatprep.subr.bf16.mxu0 0
    %1049 = vmatpush1.bf16.msra.mxu0 0
    %1050 = vmatprep.subr.bf16.mxu0 0
    %1051 = vmatpush1.bf16.msra.mxu0 0
    %1052 = vmatprep.mubr.bf16.mxu0 0
    %1053 = vmatmul.mubr.bf16.gmra.mrb[0].mxu0 %v1018
    %v1054 = vpop.f32.mrb[0].mxu0
    %v1055 = vadd.f32 %v1012, %v1054
    %v1056 = vpop.f32.mrb[0].mxu0
    %v1057 = vpop.f32.mrb[0].mxu0
    %v1058 = vadd.f32 %v1013, %v1057
    %v1059 = vpop.f32.mrb[0].mxu0
    %1060 = vdwg.mxu0
    %v1061 = vmul.f32 %v949, %v1055
    %v1062 = vmul.f32 %v950, %v1058
    %s1063 = scalar_lea.vmem %s9, 2
    %v1064 = vld [vmem:[%s1063] sm:$0x1]
    %v1066 = vlaneseq
    %v1067 = vshrl.u32 %v1066, 7
    %v1068 = vsub.s32 0, %v1067
    %v1069 = vrot.slane %v1064, %v1068
    %v1071 = vadd.f32 %v1061, %v1069
    %v1072 = vadd.f32 %v1062, %v1069
    %s1073 = sld [smem:[#allocation6 + $0x2]]
    %vm1074 = vcmp.ge.f32.partialorder %v1071, 0.0
    %vm1075 = vcmp.ge.f32.partialorder %v1072, 0.0
    %v1076 = vstv %s1073
    %v1077 = vmul.f32 %v1076, %v1071
    %v1078 = vmul.f32 %v1076, %v1072
    %v1079 = vsel %vm1074, %v1071, %v1077
    %v1080 = vsel %vm1075, %v1072, %v1078
    %v1081 = vsel %vm565, %v1079, 0.0
    %v1082 = vsel %vm565, %v1080, 0.0
    %v1083 = vadd.f32 %v1081, %v1082
    %v1084 = vrot.slane %v1083, 4
    %v1085 = vadd.f32 %v1083, %v1084
    %v1086 = vrot.slane %v1085, 2
    %v1087 = vadd.f32 %v1085, %v1086
    %v1088 = vrot.slane %v1087, 1
    %v1089 = vadd.f32 %v1087, %v1088
    %v1090 = vmul.f32 %v1089, %v685
    %s1091 = scalar_lea.vmem %s13, 2
    %v1092 = vld [vmem:[%s1091] sm:$0x1]
    %v1093 = vmul.f32 %v1090, %v1092
    %v1094 = vlaneseq
    %v1095 = vshrl.u32 %v1094, 7
    %v1096 = vsub.s32 0, %v1095
    %v1097 = vrot.slane %v1093, %v1096
    %v1098 = vsub.f32 %v1079, %v1097
    %v1099 = vsub.f32 %v1080, %v1097
    %v1100 = vmul.f32 %v1098, %v1098
    %v1101 = vmul.f32 %v1099, %v1099
    %v1102 = vsel %vm565, %v1100, 0.0
    %v1103 = vsel %vm565, %v1101, 0.0
    %v1104 = vadd.f32 %v1102, %v1103
    %v1105 = vrot.slane %v1104, 4
    %v1106 = vadd.f32 %v1104, %v1105
    %v1107 = vrot.slane %v1106, 2
    %v1108 = vadd.f32 %v1106, %v1107
    %v1109 = vrot.slane %v1108, 1
    %v1110 = vadd.f32 %v1108, %v1109
    %v1111 = vmul.f32 %v1110, %v685
    %s1112 = scalar_lea.vmem %s11, 2
    %v1113 = vld [vmem:[%s1112] sm:$0x1]
    %v1115 = vlaneseq
    %v1116 = vshrl.u32 %v1115, 7
    %v1117 = vsub.s32 0, %v1116
    %v1118 = vrot.slane %v1113, %v1117
    %v1120 = vmul.f32 %v1118, %v1098
    %v1121 = vmul.f32 %v1118, %v1099
    %v1122 = vadd.f32 %v1111, 1e-05
    %v1123 = vrsqrt.pop %v1122
    %v1124 = vmul.f32 %v1120, %v1123
    %v1125 = vmul.f32 %v1121, %v1123
    %s1126 = scalar_lea.vmem %s12, 2
    %v1127 = vld [vmem:[%s1126] sm:$0x1]
    %v1129 = vlaneseq
    %v1130 = vshrl.u32 %v1129, 7
    %v1131 = vsub.s32 0, %v1130
    %v1132 = vrot.slane %v1127, %v1131
    %v1134 = vadd.f32 %v1124, %v1132
    %v1135 = vadd.f32 %v1125, %v1132
    %v1136 = vpack.c.bf16 %v1135, %v1134
    %1137 = vrot.lane.b32.xlu0 %v525, 80
    %v1138 = vpop.permute.xlu0 %1137
    %1139 = vrot.lane.b32.xlu0 %v529, 80
    %v1140 = vpop.permute.xlu0 %1139
    %v1143 = vsel %vm538, %v1138, 0.0
    %1144 = vadd.xlane.f32.xlu0 %v1143
    %v1145 = vpop.xlane.xlu0 %1144
    %v1146 = vsel %vm538, %v1140, 0.0
    %1147 = vadd.xlane.f32.xlu0 %v1146
    %v1148 = vpop.xlane.xlu0 %1147
    %v1149 = vadd.f32 %v1145, 1.0
    %v1150 = vadd.f32 %v1148, 1.0
    %v1151 = vrsqrt.pop %v1149
    %v1152 = vrsqrt.pop %v1150
    %s1153 = scalar_lea.vmem [#allocation2], 48
    %v1154 = vld [vmem:[%s1153] sm:$0xf]
    %v1155 = vld [vmem:[%s1153 + $0x4] sm:$0xf]
    %v1156 = vld [vmem:[%s1153 + $0x8] sm:$0xf]
    %v1157 = vld [vmem:[%s1153 + $0xc] sm:$0xf]
    %v1162 = vunpack.c.l.b16 %v1154
    %v1163 = vunpack.c.l.b16 %v1155
    %v1164 = vunpack.c.l.b16 %v1156
    %v1165 = vunpack.c.l.b16 %v1157
    %v1166 = vpack.c.b16 %v1163, %v1162
    %v1167 = vpack.c.b16 %v1165, %v1164
    %v1171 = vsel %vm565, %v1136, 0
    %1173 = vmatprep.subr.bf16.mxu0 0
    %1174 = vmatpush1.bf16.msra.mxu0 %v1166
    %1175 = vmatprep.subr.bf16.mxu0 0
    %1176 = vmatpush1.bf16.msra.mxu0 %v1167
    %1177 = vmatprep.subr.bf16.mxu0 0
    %1178 = vmatpush1.bf16.msra.mxu0 0
    %1179 = vmatprep.subr.bf16.mxu0 0
    %1180 = vmatpush1.bf16.msra.mxu0 0
    %1181 = vmatprep.subr.bf16.mxu0 0
    %1182 = vmatpush1.bf16.msra.mxu0 0
    %1183 = vmatprep.subr.bf16.mxu0 0
    %1184 = vmatpush1.bf16.msra.mxu0 0
    %1185 = vmatprep.subr.bf16.mxu0 0
    %1186 = vmatpush1.bf16.msra.mxu0 0
    %1187 = vmatprep.subr.bf16.mxu0 0
    %1188 = vmatpush1.bf16.msra.mxu0 0
    %1189 = vmatprep.subr.bf16.mxu0 0
    %1190 = vmatpush1.bf16.msra.mxu0 0
    %1191 = vmatprep.subr.bf16.mxu0 0
    %1192 = vmatpush1.bf16.msra.mxu0 0
    %1193 = vmatprep.subr.bf16.mxu0 0
    %1194 = vmatpush1.bf16.msra.mxu0 0
    %1195 = vmatprep.subr.bf16.mxu0 0
    %1196 = vmatpush1.bf16.msra.mxu0 0
    %1197 = vmatprep.subr.bf16.mxu0 0
    %1198 = vmatpush1.bf16.msra.mxu0 0
    %1199 = vmatprep.subr.bf16.mxu0 0
    %1200 = vmatpush1.bf16.msra.mxu0 0
    %1201 = vmatprep.subr.bf16.mxu0 0
    %1202 = vmatpush1.bf16.msra.mxu0 0
    %1203 = vmatprep.subr.bf16.mxu0 0
    %1204 = vmatpush1.bf16.msra.mxu0 0
    %1205 = vmatprep.mubr.bf16.mxu0 0
    %1206 = vmatmul.mubr.bf16.gmra.mrb[0].mxu0 %v1171
    %v1207 = vpop.f32.mrb[0].mxu0
    %v1208 = vadd.f32 0.0, %v1207
    %v1209 = vpop.f32.mrb[0].mxu0
    %v1210 = vpop.f32.mrb[0].mxu0
    %v1211 = vadd.f32 0.0, %v1210
    %v1212 = vpop.f32.mrb[0].mxu0
    %1213 = vdwg.mxu0
    %v1214 = vmul.f32 %v1151, %v1208
    %v1215 = vmul.f32 %v1152, %v1211
    %v1216 = vpack.c.bf16 %v1215, %v1214
    %1217 = vrot.lane.b32.xlu0 %v533, 80
    %v1218 = vpop.permute.xlu0 %1217
    %v1220 = vsel %vm538, %v1218, 0
    %1222 = vmatprep.subr.bf16.mxu0 0
    %1223 = vmatpush1.bf16.msra.mxu0 %v1216
    %1224 = vmatprep.subr.bf16.mxu0 0
    %1225 = vmatpush1.bf16.msra.mxu0 0
    %1226 = vmatprep.subr.bf16.mxu0 0
    %1227 = vmatpush1.bf16.msra.mxu0 0
    %1228 = vmatprep.subr.bf16.mxu0 0
    %1229 = vmatpush1.bf16.msra.mxu0 0
    %1230 = vmatprep.subr.bf16.mxu0 0
    %1231 = vmatpush1.bf16.msra.mxu0 0
    %1232 = vmatprep.subr.bf16.mxu0 0
    %1233 = vmatpush1.bf16.msra.mxu0 0
    %1234 = vmatprep.subr.bf16.mxu0 0
    %1235 = vmatpush1.bf16.msra.mxu0 0
    %1236 = vmatprep.subr.bf16.mxu0 0
    %1237 = vmatpush1.bf16.msra.mxu0 0
    %1238 = vmatprep.subr.bf16.mxu0 0
    %1239 = vmatpush1.bf16.msra.mxu0 0
    %1240 = vmatprep.subr.bf16.mxu0 0
    %1241 = vmatpush1.bf16.msra.mxu0 0
    %1242 = vmatprep.subr.bf16.mxu0 0
    %1243 = vmatpush1.bf16.msra.mxu0 0
    %1244 = vmatprep.subr.bf16.mxu0 0
    %1245 = vmatpush1.bf16.msra.mxu0 0
    %1246 = vmatprep.subr.bf16.mxu0 0
    %1247 = vmatpush1.bf16.msra.mxu0 0
    %1248 = vmatprep.subr.bf16.mxu0 0
    %1249 = vmatpush1.bf16.msra.mxu0 0
    %1250 = vmatprep.subr.bf16.mxu0 0
    %1251 = vmatpush1.bf16.msra.mxu0 0
    %1252 = vmatprep.subr.bf16.mxu0 0
    %1253 = vmatpush1.bf16.msra.mxu0 0
    %1254 = vmatprep.mubr.bf16.mxu0 0
    %1255 = vmatmul.mubr.bf16.gmra.mrb[0].mxu0 %v1220
    %v1256 = vpop.f32.mrb[0].mxu0
    %v1257 = vadd.f32 %v1214, %v1256
    %v1258 = vpop.f32.mrb[0].mxu0
    %v1259 = vpop.f32.mrb[0].mxu0
    %v1260 = vadd.f32 %v1215, %v1259
    %v1261 = vpop.f32.mrb[0].mxu0
    %1262 = vdwg.mxu0
    %v1263 = vmul.f32 %v1151, %v1257
    %v1264 = vmul.f32 %v1152, %v1260
    %s1265 = scalar_lea.vmem %s9, 3
    %v1266 = vld [vmem:[%s1265] sm:$0x1]
    %v1268 = vlaneseq
    %v1269 = vshrl.u32 %v1268, 7
    %v1270 = vsub.s32 0, %v1269
    %v1271 = vrot.slane %v1266, %v1270
    %v1273 = vadd.f32 %v1263, %v1271
    %v1274 = vadd.f32 %v1264, %v1271
    %s1275 = sld [smem:[#allocation6 + $0x3]]
    %vm1276 = vcmp.ge.f32.partialorder %v1273, 0.0
    %vm1277 = vcmp.ge.f32.partialorder %v1274, 0.0
    %v1278 = vstv %s1275
    %v1279 = vmul.f32 %v1278, %v1273
    %v1280 = vmul.f32 %v1278, %v1274
    %v1281 = vsel %vm1276, %v1273, %v1279
    %v1282 = vsel %vm1277, %v1274, %v1280
    %v1283 = vsel %vm565, %v1281, 0.0
    %v1284 = vsel %vm565, %v1282, 0.0
    %v1285 = vadd.f32 %v1283, %v1284
    %v1286 = vrot.slane %v1285, 4
    %v1287 = vadd.f32 %v1285, %v1286
    %v1288 = vrot.slane %v1287, 2
    %v1289 = vadd.f32 %v1287, %v1288
    %v1290 = vrot.slane %v1289, 1
    %v1291 = vadd.f32 %v1289, %v1290
    %v1292 = vmul.f32 %v1291, %v685
    %s1293 = scalar_lea.vmem %s13, 3
    %v1294 = vld [vmem:[%s1293] sm:$0x1]
    %v1295 = vmul.f32 %v1292, %v1294
    %v1296 = vlaneseq
    %v1297 = vshrl.u32 %v1296, 7
    %v1298 = vsub.s32 0, %v1297
    %v1299 = vrot.slane %v1295, %v1298
    %v1300 = vsub.f32 %v1281, %v1299
    %v1301 = vsub.f32 %v1282, %v1299
    %v1302 = vmul.f32 %v1300, %v1300
    %v1303 = vmul.f32 %v1301, %v1301
    %v1304 = vsel %vm565, %v1302, 0.0
    %v1305 = vsel %vm565, %v1303, 0.0
    %v1306 = vadd.f32 %v1304, %v1305
    %v1307 = vrot.slane %v1306, 4
    %v1308 = vadd.f32 %v1306, %v1307
    %v1309 = vrot.slane %v1308, 2
    %v1310 = vadd.f32 %v1308, %v1309
    %v1311 = vrot.slane %v1310, 1
    %v1312 = vadd.f32 %v1310, %v1311
    %v1313 = vmul.f32 %v1312, %v685
    %s1314 = scalar_lea.vmem %s11, 3
    %v1315 = vld [vmem:[%s1314] sm:$0x1]
    %v1317 = vlaneseq
    %v1318 = vshrl.u32 %v1317, 7
    %v1319 = vsub.s32 0, %v1318
    %v1320 = vrot.slane %v1315, %v1319
    %v1322 = vmul.f32 %v1320, %v1300
    %v1323 = vmul.f32 %v1320, %v1301
    %v1324 = vadd.f32 %v1313, 1e-05
    %v1325 = vrsqrt.pop %v1324
    %v1326 = vmul.f32 %v1322, %v1325
    %v1327 = vmul.f32 %v1323, %v1325
    %s1328 = scalar_lea.vmem %s12, 3
    %v1329 = vld [vmem:[%s1328] sm:$0x1]
    %v1331 = vlaneseq
    %v1332 = vshrl.u32 %v1331, 7
    %v1333 = vsub.s32 0, %v1332
    %v1334 = vrot.slane %v1329, %v1333
    %v1336 = vadd.f32 %v1326, %v1334
    %v1337 = vadd.f32 %v1327, %v1334
    %v1338 = vpack.c.bf16 %v1337, %v1336
    %1339 = vrot.lane.b32.xlu0 %v525, 64
    %v1340 = vpop.permute.xlu0 %1339
    %1341 = vrot.lane.b32.xlu0 %v529, 64
    %v1342 = vpop.permute.xlu0 %1341
    %v1345 = vsel %vm538, %v1340, 0.0
    %1346 = vadd.xlane.f32.xlu0 %v1345
    %v1347 = vpop.xlane.xlu0 %1346
    %v1348 = vsel %vm538, %v1342, 0.0
    %1349 = vadd.xlane.f32.xlu0 %v1348
    %v1350 = vpop.xlane.xlu0 %1349
    %v1351 = vadd.f32 %v1347, 1.0
    %v1352 = vadd.f32 %v1350, 1.0
    %v1353 = vrsqrt.pop %v1351
    %v1354 = vrsqrt.pop %v1352
    %s1355 = scalar_lea.vmem [#allocation2], 64
    %v1356 = vld [vmem:[%s1355] sm:$0xf]
    %v1357 = vld [vmem:[%s1355 + $0x4] sm:$0xf]
    %v1358 = vld [vmem:[%s1355 + $0x8] sm:$0xf]
    %v1359 = vld [vmem:[%s1355 + $0xc] sm:$0xf]
    %v1364 = vunpack.c.l.b16 %v1356
    %v1365 = vunpack.c.l.b16 %v1357
    %v1366 = vunpack.c.l.b16 %v1358
    %v1367 = vunpack.c.l.b16 %v1359
    %v1368 = vpack.c.b16 %v1365, %v1364
    %v1369 = vpack.c.b16 %v1367, %v1366
    %v1373 = vsel %vm565, %v1338, 0
    %1375 = vmatprep.subr.bf16.mxu0 0
    %1376 = vmatpush1.bf16.msra.mxu0 %v1368
    %1377 = vmatprep.subr.bf16.mxu0 0
    %1378 = vmatpush1.bf16.msra.mxu0 %v1369
    %1379 = vmatprep.subr.bf16.mxu0 0
    %1380 = vmatpush1.bf16.msra.mxu0 0
    %1381 = vmatprep.subr.bf16.mxu0 0
    %1382 = vmatpush1.bf16.msra.mxu0 0
    %1383 = vmatprep.subr.bf16.mxu0 0
    %1384 = vmatpush1.bf16.msra.mxu0 0
    %1385 = vmatprep.subr.bf16.mxu0 0
    %1386 = vmatpush1.bf16.msra.mxu0 0
    %1387 = vmatprep.subr.bf16.mxu0 0
    %1388 = vmatpush1.bf16.msra.mxu0 0
    %1389 = vmatprep.subr.bf16.mxu0 0
    %1390 = vmatpush1.bf16.msra.mxu0 0
    %1391 = vmatprep.subr.bf16.mxu0 0
    %1392 = vmatpush1.bf16.msra.mxu0 0
    %1393 = vmatprep.subr.bf16.mxu0 0
    %1394 = vmatpush1.bf16.msra.mxu0 0
    %1395 = vmatprep.subr.bf16.mxu0 0
    %1396 = vmatpush1.bf16.msra.mxu0 0
    %1397 = vmatprep.subr.bf16.mxu0 0
    %1398 = vmatpush1.bf16.msra.mxu0 0
    %1399 = vmatprep.subr.bf16.mxu0 0
    %1400 = vmatpush1.bf16.msra.mxu0 0
    %1401 = vmatprep.subr.bf16.mxu0 0
    %1402 = vmatpush1.bf16.msra.mxu0 0
    %1403 = vmatprep.subr.bf16.mxu0 0
    %1404 = vmatpush1.bf16.msra.mxu0 0
    %1405 = vmatprep.subr.bf16.mxu0 0
    %1406 = vmatpush1.bf16.msra.mxu0 0
    %1407 = vmatprep.mubr.bf16.mxu0 0
    %1408 = vmatmul.mubr.bf16.gmra.mrb[0].mxu0 %v1373
    %v1409 = vpop.f32.mrb[0].mxu0
    %v1410 = vadd.f32 0.0, %v1409
    %v1411 = vpop.f32.mrb[0].mxu0
    %v1412 = vpop.f32.mrb[0].mxu0
    %v1413 = vadd.f32 0.0, %v1412
    %v1414 = vpop.f32.mrb[0].mxu0
    %1415 = vdwg.mxu0
    %v1416 = vmul.f32 %v1353, %v1410
    %v1417 = vmul.f32 %v1354, %v1413
    %v1418 = vpack.c.bf16 %v1417, %v1416
    %1419 = vrot.lane.b32.xlu0 %v533, 64
    %v1420 = vpop.permute.xlu0 %1419
    %v1422 = vsel %vm538, %v1420, 0
    %1424 = vmatprep.subr.bf16.mxu0 0
    %1425 = vmatpush1.bf16.msra.mxu0 %v1418
    %1426 = vmatprep.subr.bf16.mxu0 0
    %1427 = vmatpush1.bf16.msra.mxu0 0
    %1428 = vmatprep.subr.bf16.mxu0 0
    %1429 = vmatpush1.bf16.msra.mxu0 0
    %1430 = vmatprep.subr.bf16.mxu0 0
    %1431 = vmatpush1.bf16.msra.mxu0 0
    %1432 = vmatprep.subr.bf16.mxu0 0
    %1433 = vmatpush1.bf16.msra.mxu0 0
    %1434 = vmatprep.subr.bf16.mxu0 0
    %1435 = vmatpush1.bf16.msra.mxu0 0
    %1436 = vmatprep.subr.bf16.mxu0 0
    %1437 = vmatpush1.bf16.msra.mxu0 0
    %1438 = vmatprep.subr.bf16.mxu0 0
    %1439 = vmatpush1.bf16.msra.mxu0 0
    %1440 = vmatprep.subr.bf16.mxu0 0
    %1441 = vmatpush1.bf16.msra.mxu0 0
    %1442 = vmatprep.subr.bf16.mxu0 0
    %1443 = vmatpush1.bf16.msra.mxu0 0
    %1444 = vmatprep.subr.bf16.mxu0 0
    %1445 = vmatpush1.bf16.msra.mxu0 0
    %1446 = vmatprep.subr.bf16.mxu0 0
    %1447 = vmatpush1.bf16.msra.mxu0 0
    %1448 = vmatprep.subr.bf16.mxu0 0
    %1449 = vmatpush1.bf16.msra.mxu0 0
    %1450 = vmatprep.subr.bf16.mxu0 0
    %1451 = vmatpush1.bf16.msra.mxu0 0
    %1452 = vmatprep.subr.bf16.mxu0 0
    %1453 = vmatpush1.bf16.msra.mxu0 0
    %1454 = vmatprep.subr.bf16.mxu0 0
    %1455 = vmatpush1.bf16.msra.mxu0 0
    %1456 = vmatprep.mubr.bf16.mxu0 0
    %1457 = vmatmul.mubr.bf16.gmra.mrb[0].mxu0 %v1422
    %v1458 = vpop.f32.mrb[0].mxu0
    %v1459 = vadd.f32 %v1416, %v1458
    %v1460 = vpop.f32.mrb[0].mxu0
    %v1461 = vpop.f32.mrb[0].mxu0
    %v1462 = vadd.f32 %v1417, %v1461
    %v1463 = vpop.f32.mrb[0].mxu0
    %1464 = vdwg.mxu0
    %v1465 = vmul.f32 %v1353, %v1459
    %v1466 = vmul.f32 %v1354, %v1462
    %s1467 = scalar_lea.vmem %s9, 4
    %v1468 = vld [vmem:[%s1467] sm:$0x1]
    %v1470 = vlaneseq
    %v1471 = vshrl.u32 %v1470, 7
    %v1472 = vsub.s32 0, %v1471
    %v1473 = vrot.slane %v1468, %v1472
    %v1475 = vadd.f32 %v1465, %v1473
    %v1476 = vadd.f32 %v1466, %v1473
    %s1477 = sld [smem:[#allocation6 + $0x4]]
    %vm1478 = vcmp.ge.f32.partialorder %v1475, 0.0
    %vm1479 = vcmp.ge.f32.partialorder %v1476, 0.0
    %v1480 = vstv %s1477
    %v1481 = vmul.f32 %v1480, %v1475
    %v1482 = vmul.f32 %v1480, %v1476
    %v1483 = vsel %vm1478, %v1475, %v1481
    %v1484 = vsel %vm1479, %v1476, %v1482
    %v1485 = vsel %vm565, %v1483, 0.0
    %v1486 = vsel %vm565, %v1484, 0.0
    %v1487 = vadd.f32 %v1485, %v1486
    %v1488 = vrot.slane %v1487, 4
    %v1489 = vadd.f32 %v1487, %v1488
    %v1490 = vrot.slane %v1489, 2
    %v1491 = vadd.f32 %v1489, %v1490
    %v1492 = vrot.slane %v1491, 1
    %v1493 = vadd.f32 %v1491, %v1492
    %v1494 = vmul.f32 %v1493, %v685
    %s1495 = scalar_lea.vmem %s13, 4
    %v1496 = vld [vmem:[%s1495] sm:$0x1]
    %v1497 = vmul.f32 %v1494, %v1496
    %v1498 = vlaneseq
    %v1499 = vshrl.u32 %v1498, 7
    %v1500 = vsub.s32 0, %v1499
    %v1501 = vrot.slane %v1497, %v1500
    %v1502 = vsub.f32 %v1483, %v1501
    %v1503 = vsub.f32 %v1484, %v1501
    %v1504 = vmul.f32 %v1502, %v1502
    %v1505 = vmul.f32 %v1503, %v1503
    %v1506 = vsel %vm565, %v1504, 0.0
    %v1507 = vsel %vm565, %v1505, 0.0
    %v1508 = vadd.f32 %v1506, %v1507
    %v1509 = vrot.slane %v1508, 4
    %v1510 = vadd.f32 %v1508, %v1509
    %v1511 = vrot.slane %v1510, 2
    %v1512 = vadd.f32 %v1510, %v1511
    %v1513 = vrot.slane %v1512, 1
    %v1514 = vadd.f32 %v1512, %v1513
    %v1515 = vmul.f32 %v1514, %v685
    %s1516 = scalar_lea.vmem %s11, 4
    %v1517 = vld [vmem:[%s1516] sm:$0x1]
    %v1519 = vlaneseq
    %v1520 = vshrl.u32 %v1519, 7
    %v1521 = vsub.s32 0, %v1520
    %v1522 = vrot.slane %v1517, %v1521
    %v1524 = vmul.f32 %v1522, %v1502
    %v1525 = vmul.f32 %v1522, %v1503
    %v1526 = vadd.f32 %v1515, 1e-05
    %v1527 = vrsqrt.pop %v1526
    %v1528 = vmul.f32 %v1524, %v1527
    %v1529 = vmul.f32 %v1525, %v1527
    %s1530 = scalar_lea.vmem %s12, 4
    %v1531 = vld [vmem:[%s1530] sm:$0x1]
    %v1533 = vlaneseq
    %v1534 = vshrl.u32 %v1533, 7
    %v1535 = vsub.s32 0, %v1534
    %v1536 = vrot.slane %v1531, %v1535
    %v1538 = vadd.f32 %v1528, %v1536
    %v1539 = vadd.f32 %v1529, %v1536
    %v1540 = vpack.c.bf16 %v1539, %v1538
    %1541 = vrot.lane.b32.xlu0 %v525, 48
    %v1542 = vpop.permute.xlu0 %1541
    %1543 = vrot.lane.b32.xlu0 %v529, 48
    %v1544 = vpop.permute.xlu0 %1543
    %v1547 = vsel %vm538, %v1542, 0.0
    %1548 = vadd.xlane.f32.xlu0 %v1547
    %v1549 = vpop.xlane.xlu0 %1548
    %v1550 = vsel %vm538, %v1544, 0.0
    %1551 = vadd.xlane.f32.xlu0 %v1550
    %v1552 = vpop.xlane.xlu0 %1551
    %v1553 = vadd.f32 %v1549, 1.0
    %v1554 = vadd.f32 %v1552, 1.0
    %v1555 = vrsqrt.pop %v1553
    %v1556 = vrsqrt.pop %v1554
    %s1557 = scalar_lea.vmem [#allocation2], 80
    %v1558 = vld [vmem:[%s1557] sm:$0xf]
    %v1559 = vld [vmem:[%s1557 + $0x4] sm:$0xf]
    %v1560 = vld [vmem:[%s1557 + $0x8] sm:$0xf]
    %v1561 = vld [vmem:[%s1557 + $0xc] sm:$0xf]
    %v1566 = vunpack.c.l.b16 %v1558
    %v1567 = vunpack.c.l.b16 %v1559
    %v1568 = vunpack.c.l.b16 %v1560
    %v1569 = vunpack.c.l.b16 %v1561
    %v1570 = vpack.c.b16 %v1567, %v1566
    %v1571 = vpack.c.b16 %v1569, %v1568
    %v1575 = vsel %vm565, %v1540, 0
    %1577 = vmatprep.subr.bf16.mxu0 0
    %1578 = vmatpush1.bf16.msra.mxu0 %v1570
    %1579 = vmatprep.subr.bf16.mxu0 0
    %1580 = vmatpush1.bf16.msra.mxu0 %v1571
    %1581 = vmatprep.subr.bf16.mxu0 0
    %1582 = vmatpush1.bf16.msra.mxu0 0
    %1583 = vmatprep.subr.bf16.mxu0 0
    %1584 = vmatpush1.bf16.msra.mxu0 0
    %1585 = vmatprep.subr.bf16.mxu0 0
    %1586 = vmatpush1.bf16.msra.mxu0 0
    %1587 = vmatprep.subr.bf16.mxu0 0
    %1588 = vmatpush1.bf16.msra.mxu0 0
    %1589 = vmatprep.subr.bf16.mxu0 0
    %1590 = vmatpush1.bf16.msra.mxu0 0
    %1591 = vmatprep.subr.bf16.mxu0 0
    %1592 = vmatpush1.bf16.msra.mxu0 0
    %1593 = vmatprep.subr.bf16.mxu0 0
    %1594 = vmatpush1.bf16.msra.mxu0 0
    %1595 = vmatprep.subr.bf16.mxu0 0
    %1596 = vmatpush1.bf16.msra.mxu0 0
    %1597 = vmatprep.subr.bf16.mxu0 0
    %1598 = vmatpush1.bf16.msra.mxu0 0
    %1599 = vmatprep.subr.bf16.mxu0 0
    %1600 = vmatpush1.bf16.msra.mxu0 0
    %1601 = vmatprep.subr.bf16.mxu0 0
    %1602 = vmatpush1.bf16.msra.mxu0 0
    %1603 = vmatprep.subr.bf16.mxu0 0
    %1604 = vmatpush1.bf16.msra.mxu0 0
    %1605 = vmatprep.subr.bf16.mxu0 0
    %1606 = vmatpush1.bf16.msra.mxu0 0
    %1607 = vmatprep.subr.bf16.mxu0 0
    %1608 = vmatpush1.bf16.msra.mxu0 0
    %1609 = vmatprep.mubr.bf16.mxu0 0
    %1610 = vmatmul.mubr.bf16.gmra.mrb[0].mxu0 %v1575
    %v1611 = vpop.f32.mrb[0].mxu0
    %v1612 = vadd.f32 0.0, %v1611
    %v1613 = vpop.f32.mrb[0].mxu0
    %v1614 = vpop.f32.mrb[0].mxu0
    %v1615 = vadd.f32 0.0, %v1614
    %v1616 = vpop.f32.mrb[0].mxu0
    %1617 = vdwg.mxu0
    %v1618 = vmul.f32 %v1555, %v1612
    %v1619 = vmul.f32 %v1556, %v1615
    %v1620 = vpack.c.bf16 %v1619, %v1618
    %1621 = vrot.lane.b32.xlu0 %v533, 48
    %v1622 = vpop.permute.xlu0 %1621
    %v1624 = vsel %vm538, %v1622, 0
    %1626 = vmatprep.subr.bf16.mxu0 0
    %1627 = vmatpush1.bf16.msra.mxu0 %v1620
    %1628 = vmatprep.subr.bf16.mxu0 0
    %1629 = vmatpush1.bf16.msra.mxu0 0
    %1630 = vmatprep.subr.bf16.mxu0 0
    %1631 = vmatpush1.bf16.msra.mxu0 0
    %1632 = vmatprep.subr.bf16.mxu0 0
    %1633 = vmatpush1.bf16.msra.mxu0 0
    %1634 = vmatprep.subr.bf16.mxu0 0
    %1635 = vmatpush1.bf16.msra.mxu0 0
    %1636 = vmatprep.subr.bf16.mxu0 0
    %1637 = vmatpush1.bf16.msra.mxu0 0
    %1638 = vmatprep.subr.bf16.mxu0 0
    %1639 = vmatpush1.bf16.msra.mxu0 0
    %1640 = vmatprep.subr.bf16.mxu0 0
    %1641 = vmatpush1.bf16.msra.mxu0 0
    %1642 = vmatprep.subr.bf16.mxu0 0
    %1643 = vmatpush1.bf16.msra.mxu0 0
    %1644 = vmatprep.subr.bf16.mxu0 0
    %1645 = vmatpush1.bf16.msra.mxu0 0
    %1646 = vmatprep.subr.bf16.mxu0 0
    %1647 = vmatpush1.bf16.msra.mxu0 0
    %1648 = vmatprep.subr.bf16.mxu0 0
    %1649 = vmatpush1.bf16.msra.mxu0 0
    %1650 = vmatprep.subr.bf16.mxu0 0
    %1651 = vmatpush1.bf16.msra.mxu0 0
    %1652 = vmatprep.subr.bf16.mxu0 0
    %1653 = vmatpush1.bf16.msra.mxu0 0
    %1654 = vmatprep.subr.bf16.mxu0 0
    %1655 = vmatpush1.bf16.msra.mxu0 0
    %1656 = vmatprep.subr.bf16.mxu0 0
    %1657 = vmatpush1.bf16.msra.mxu0 0
    %1658 = vmatprep.mubr.bf16.mxu0 0
    %1659 = vmatmul.mubr.bf16.gmra.mrb[0].mxu0 %v1624
    %v1660 = vpop.f32.mrb[0].mxu0
    %v1661 = vadd.f32 %v1618, %v1660
    %v1662 = vpop.f32.mrb[0].mxu0
    %v1663 = vpop.f32.mrb[0].mxu0
    %v1664 = vadd.f32 %v1619, %v1663
    %v1665 = vpop.f32.mrb[0].mxu0
    %1666 = vdwg.mxu0
    %v1667 = vmul.f32 %v1555, %v1661
    %v1668 = vmul.f32 %v1556, %v1664
    %s1669 = scalar_lea.vmem %s9, 5
    %v1670 = vld [vmem:[%s1669] sm:$0x1]
    %v1672 = vlaneseq
    %v1673 = vshrl.u32 %v1672, 7
    %v1674 = vsub.s32 0, %v1673
    %v1675 = vrot.slane %v1670, %v1674
    %v1677 = vadd.f32 %v1667, %v1675
    %v1678 = vadd.f32 %v1668, %v1675
    %s1679 = sld [smem:[#allocation6 + $0x5]]
    %vm1680 = vcmp.ge.f32.partialorder %v1677, 0.0
    %vm1681 = vcmp.ge.f32.partialorder %v1678, 0.0
    %v1682 = vstv %s1679
    %v1683 = vmul.f32 %v1682, %v1677
    %v1684 = vmul.f32 %v1682, %v1678
    %v1685 = vsel %vm1680, %v1677, %v1683
    %v1686 = vsel %vm1681, %v1678, %v1684
    %v1687 = vsel %vm565, %v1685, 0.0
    %v1688 = vsel %vm565, %v1686, 0.0
    %v1689 = vadd.f32 %v1687, %v1688
    %v1690 = vrot.slane %v1689, 4
    %v1691 = vadd.f32 %v1689, %v1690
    %v1692 = vrot.slane %v1691, 2
    %v1693 = vadd.f32 %v1691, %v1692
    %v1694 = vrot.slane %v1693, 1
    %v1695 = vadd.f32 %v1693, %v1694
    %v1696 = vmul.f32 %v1695, %v685
    %s1697 = scalar_lea.vmem %s13, 5
    %v1698 = vld [vmem:[%s1697] sm:$0x1]
    %v1699 = vmul.f32 %v1696, %v1698
    %v1700 = vlaneseq
    %v1701 = vshrl.u32 %v1700, 7
    %v1702 = vsub.s32 0, %v1701
    %v1703 = vrot.slane %v1699, %v1702
    %v1704 = vsub.f32 %v1685, %v1703
    %v1705 = vsub.f32 %v1686, %v1703
    %v1706 = vmul.f32 %v1704, %v1704
    %v1707 = vmul.f32 %v1705, %v1705
    %v1708 = vsel %vm565, %v1706, 0.0
    %v1709 = vsel %vm565, %v1707, 0.0
    %v1710 = vadd.f32 %v1708, %v1709
    %v1711 = vrot.slane %v1710, 4
    %v1712 = vadd.f32 %v1710, %v1711
    %v1713 = vrot.slane %v1712, 2
    %v1714 = vadd.f32 %v1712, %v1713
    %v1715 = vrot.slane %v1714, 1
    %v1716 = vadd.f32 %v1714, %v1715
    %v1717 = vmul.f32 %v1716, %v685
    %s1718 = scalar_lea.vmem %s11, 5
    %v1719 = vld [vmem:[%s1718] sm:$0x1]
    %v1721 = vlaneseq
    %v1722 = vshrl.u32 %v1721, 7
    %v1723 = vsub.s32 0, %v1722
    %v1724 = vrot.slane %v1719, %v1723
    %v1726 = vmul.f32 %v1724, %v1704
    %v1727 = vmul.f32 %v1724, %v1705
    %v1728 = vadd.f32 %v1717, 1e-05
    %v1729 = vrsqrt.pop %v1728
    %v1730 = vmul.f32 %v1726, %v1729
    %v1731 = vmul.f32 %v1727, %v1729
    %s1732 = scalar_lea.vmem %s12, 5
    %v1733 = vld [vmem:[%s1732] sm:$0x1]
    %v1735 = vlaneseq
    %v1736 = vshrl.u32 %v1735, 7
    %v1737 = vsub.s32 0, %v1736
    %v1738 = vrot.slane %v1733, %v1737
    %v1740 = vadd.f32 %v1730, %v1738
    %v1741 = vadd.f32 %v1731, %v1738
    %v1742 = vpack.c.bf16 %v1741, %v1740
    %1743 = vrot.lane.b32.xlu0 %v525, 32
    %v1744 = vpop.permute.xlu0 %1743
    %1745 = vrot.lane.b32.xlu0 %v529, 32
    %v1746 = vpop.permute.xlu0 %1745
    %v1749 = vsel %vm538, %v1744, 0.0
    %1750 = vadd.xlane.f32.xlu0 %v1749
    %v1751 = vpop.xlane.xlu0 %1750
    %v1752 = vsel %vm538, %v1746, 0.0
    %1753 = vadd.xlane.f32.xlu0 %v1752
    %v1754 = vpop.xlane.xlu0 %1753
    %v1755 = vadd.f32 %v1751, 1.0
    %v1756 = vadd.f32 %v1754, 1.0
    %v1757 = vrsqrt.pop %v1755
    %v1758 = vrsqrt.pop %v1756
    %s1759 = scalar_lea.vmem [#allocation2], 96
    %v1760 = vld [vmem:[%s1759] sm:$0xf]
    %v1761 = vld [vmem:[%s1759 + $0x4] sm:$0xf]
    %v1762 = vld [vmem:[%s1759 + $0x8] sm:$0xf]
    %v1763 = vld [vmem:[%s1759 + $0xc] sm:$0xf]
    %v1768 = vunpack.c.l.b16 %v1760
    %v1769 = vunpack.c.l.b16 %v1761
    %v1770 = vunpack.c.l.b16 %v1762
    %v1771 = vunpack.c.l.b16 %v1763
    %v1772 = vpack.c.b16 %v1769, %v1768
    %v1773 = vpack.c.b16 %v1771, %v1770
    %v1777 = vsel %vm565, %v1742, 0
    %1779 = vmatprep.subr.bf16.mxu0 0
    %1780 = vmatpush1.bf16.msra.mxu0 %v1772
    %1781 = vmatprep.subr.bf16.mxu0 0
    %1782 = vmatpush1.bf16.msra.mxu0 %v1773
    %1783 = vmatprep.subr.bf16.mxu0 0
    %1784 = vmatpush1.bf16.msra.mxu0 0
    %1785 = vmatprep.subr.bf16.mxu0 0
    %1786 = vmatpush1.bf16.msra.mxu0 0
    %1787 = vmatprep.subr.bf16.mxu0 0
    %1788 = vmatpush1.bf16.msra.mxu0 0
    %1789 = vmatprep.subr.bf16.mxu0 0
    %1790 = vmatpush1.bf16.msra.mxu0 0
    %1791 = vmatprep.subr.bf16.mxu0 0
    %1792 = vmatpush1.bf16.msra.mxu0 0
    %1793 = vmatprep.subr.bf16.mxu0 0
    %1794 = vmatpush1.bf16.msra.mxu0 0
    %1795 = vmatprep.subr.bf16.mxu0 0
    %1796 = vmatpush1.bf16.msra.mxu0 0
    %1797 = vmatprep.subr.bf16.mxu0 0
    %1798 = vmatpush1.bf16.msra.mxu0 0
    %1799 = vmatprep.subr.bf16.mxu0 0
    %1800 = vmatpush1.bf16.msra.mxu0 0
    %1801 = vmatprep.subr.bf16.mxu0 0
    %1802 = vmatpush1.bf16.msra.mxu0 0
    %1803 = vmatprep.subr.bf16.mxu0 0
    %1804 = vmatpush1.bf16.msra.mxu0 0
    %1805 = vmatprep.subr.bf16.mxu0 0
    %1806 = vmatpush1.bf16.msra.mxu0 0
    %1807 = vmatprep.subr.bf16.mxu0 0
    %1808 = vmatpush1.bf16.msra.mxu0 0
    %1809 = vmatprep.subr.bf16.mxu0 0
    %1810 = vmatpush1.bf16.msra.mxu0 0
    %1811 = vmatprep.mubr.bf16.mxu0 0
    %1812 = vmatmul.mubr.bf16.gmra.mrb[0].mxu0 %v1777
    %v1813 = vpop.f32.mrb[0].mxu0
    %v1814 = vadd.f32 0.0, %v1813
    %v1815 = vpop.f32.mrb[0].mxu0
    %v1816 = vpop.f32.mrb[0].mxu0
    %v1817 = vadd.f32 0.0, %v1816
    %v1818 = vpop.f32.mrb[0].mxu0
    %1819 = vdwg.mxu0
    %v1820 = vmul.f32 %v1757, %v1814
    %v1821 = vmul.f32 %v1758, %v1817
    %v1822 = vpack.c.bf16 %v1821, %v1820
    %1823 = vrot.lane.b32.xlu0 %v533, 32
    %v1824 = vpop.permute.xlu0 %1823
    %v1826 = vsel %vm538, %v1824, 0
    %1828 = vmatprep.subr.bf16.mxu0 0
    %1829 = vmatpush1.bf16.msra.mxu0 %v1822
    %1830 = vmatprep.subr.bf16.mxu0 0
    %1831 = vmatpush1.bf16.msra.mxu0 0
    %1832 = vmatprep.subr.bf16.mxu0 0
    %1833 = vmatpush1.bf16.msra.mxu0 0
    %1834 = vmatprep.subr.bf16.mxu0 0
    %1835 = vmatpush1.bf16.msra.mxu0 0
    %1836 = vmatprep.subr.bf16.mxu0 0
    %1837 = vmatpush1.bf16.msra.mxu0 0
    %1838 = vmatprep.subr.bf16.mxu0 0
    %1839 = vmatpush1.bf16.msra.mxu0 0
    %1840 = vmatprep.subr.bf16.mxu0 0
    %1841 = vmatpush1.bf16.msra.mxu0 0
    %1842 = vmatprep.subr.bf16.mxu0 0
    %1843 = vmatpush1.bf16.msra.mxu0 0
    %1844 = vmatprep.subr.bf16.mxu0 0
    %1845 = vmatpush1.bf16.msra.mxu0 0
    %1846 = vmatprep.subr.bf16.mxu0 0
    %1847 = vmatpush1.bf16.msra.mxu0 0
    %1848 = vmatprep.subr.bf16.mxu0 0
    %1849 = vmatpush1.bf16.msra.mxu0 0
    %1850 = vmatprep.subr.bf16.mxu0 0
    %1851 = vmatpush1.bf16.msra.mxu0 0
    %1852 = vmatprep.subr.bf16.mxu0 0
    %1853 = vmatpush1.bf16.msra.mxu0 0
    %1854 = vmatprep.subr.bf16.mxu0 0
    %1855 = vmatpush1.bf16.msra.mxu0 0
    %1856 = vmatprep.subr.bf16.mxu0 0
    %1857 = vmatpush1.bf16.msra.mxu0 0
    %1858 = vmatprep.subr.bf16.mxu0 0
    %1859 = vmatpush1.bf16.msra.mxu0 0
    %1860 = vmatprep.mubr.bf16.mxu0 0
    %1861 = vmatmul.mubr.bf16.gmra.mrb[0].mxu0 %v1826
    %v1862 = vpop.f32.mrb[0].mxu0
    %v1863 = vadd.f32 %v1820, %v1862
    %v1864 = vpop.f32.mrb[0].mxu0
    %v1865 = vpop.f32.mrb[0].mxu0
    %v1866 = vadd.f32 %v1821, %v1865
    %v1867 = vpop.f32.mrb[0].mxu0
    %1868 = vdwg.mxu0
    %v1869 = vmul.f32 %v1757, %v1863
    %v1870 = vmul.f32 %v1758, %v1866
    %s1871 = scalar_lea.vmem %s9, 6
    %v1872 = vld [vmem:[%s1871] sm:$0x1]
    %v1874 = vlaneseq
    %v1875 = vshrl.u32 %v1874, 7
    %v1876 = vsub.s32 0, %v1875
    %v1877 = vrot.slane %v1872, %v1876
    %v1879 = vadd.f32 %v1869, %v1877
    %v1880 = vadd.f32 %v1870, %v1877
    %s1881 = sld [smem:[#allocation6 + $0x6]]
    %vm1882 = vcmp.ge.f32.partialorder %v1879, 0.0
    %vm1883 = vcmp.ge.f32.partialorder %v1880, 0.0
    %v1884 = vstv %s1881
    %v1885 = vmul.f32 %v1884, %v1879
    %v1886 = vmul.f32 %v1884, %v1880
    %v1887 = vsel %vm1882, %v1879, %v1885
    %v1888 = vsel %vm1883, %v1880, %v1886
    %v1889 = vsel %vm565, %v1887, 0.0
    %v1890 = vsel %vm565, %v1888, 0.0
    %v1891 = vadd.f32 %v1889, %v1890
    %v1892 = vrot.slane %v1891, 4
    %v1893 = vadd.f32 %v1891, %v1892
    %v1894 = vrot.slane %v1893, 2
    %v1895 = vadd.f32 %v1893, %v1894
    %v1896 = vrot.slane %v1895, 1
    %v1897 = vadd.f32 %v1895, %v1896
    %v1898 = vmul.f32 %v1897, %v685
    %s1899 = scalar_lea.vmem %s13, 6
    %v1900 = vld [vmem:[%s1899] sm:$0x1]
    %v1901 = vmul.f32 %v1898, %v1900
    %v1902 = vlaneseq
    %v1903 = vshrl.u32 %v1902, 7
    %v1904 = vsub.s32 0, %v1903
    %v1905 = vrot.slane %v1901, %v1904
    %v1906 = vsub.f32 %v1887, %v1905
    %v1907 = vsub.f32 %v1888, %v1905
    %v1908 = vmul.f32 %v1906, %v1906
    %v1909 = vmul.f32 %v1907, %v1907
    %v1910 = vsel %vm565, %v1908, 0.0
    %v1911 = vsel %vm565, %v1909, 0.0
    %v1912 = vadd.f32 %v1910, %v1911
    %v1913 = vrot.slane %v1912, 4
    %v1914 = vadd.f32 %v1912, %v1913
    %v1915 = vrot.slane %v1914, 2
    %v1916 = vadd.f32 %v1914, %v1915
    %v1917 = vrot.slane %v1916, 1
    %v1918 = vadd.f32 %v1916, %v1917
    %v1919 = vmul.f32 %v1918, %v685
    %s1920 = scalar_lea.vmem %s11, 6
    %v1921 = vld [vmem:[%s1920] sm:$0x1]
    %v1923 = vlaneseq
    %v1924 = vshrl.u32 %v1923, 7
    %v1925 = vsub.s32 0, %v1924
    %v1926 = vrot.slane %v1921, %v1925
    %v1928 = vmul.f32 %v1926, %v1906
    %v1929 = vmul.f32 %v1926, %v1907
    %v1930 = vadd.f32 %v1919, 1e-05
    %v1931 = vrsqrt.pop %v1930
    %v1932 = vmul.f32 %v1928, %v1931
    %v1933 = vmul.f32 %v1929, %v1931
    %s1934 = scalar_lea.vmem %s12, 6
    %v1935 = vld [vmem:[%s1934] sm:$0x1]
    %v1937 = vlaneseq
    %v1938 = vshrl.u32 %v1937, 7
    %v1939 = vsub.s32 0, %v1938
    %v1940 = vrot.slane %v1935, %v1939
    %v1942 = vadd.f32 %v1932, %v1940
    %v1943 = vadd.f32 %v1933, %v1940
    %v1944 = vpack.c.bf16 %v1943, %v1942
    %1945 = vrot.lane.b32.xlu0 %v525, 16
    %v1946 = vpop.permute.xlu0 %1945
    %1947 = vrot.lane.b32.xlu0 %v529, 16
    %v1948 = vpop.permute.xlu0 %1947
    %v1951 = vsel %vm538, %v1946, 0.0
    %1952 = vadd.xlane.f32.xlu0 %v1951
    %v1953 = vpop.xlane.xlu0 %1952
    %v1954 = vsel %vm538, %v1948, 0.0
    %1955 = vadd.xlane.f32.xlu0 %v1954
    %v1956 = vpop.xlane.xlu0 %1955
    %v1957 = vadd.f32 %v1953, 1.0
    %v1958 = vadd.f32 %v1956, 1.0
    %v1959 = vrsqrt.pop %v1957
    %v1960 = vrsqrt.pop %v1958
    %s1961 = scalar_lea.vmem [#allocation2], 112
    %v1962 = vld [vmem:[%s1961] sm:$0xf]
    %v1963 = vld [vmem:[%s1961 + $0x4] sm:$0xf]
    %v1964 = vld [vmem:[%s1961 + $0x8] sm:$0xf]
    %v1965 = vld [vmem:[%s1961 + $0xc] sm:$0xf]
    %v1970 = vunpack.c.l.b16 %v1962
    %v1971 = vunpack.c.l.b16 %v1963
    %v1972 = vunpack.c.l.b16 %v1964
    %v1973 = vunpack.c.l.b16 %v1965
    %v1974 = vpack.c.b16 %v1971, %v1970
    %v1975 = vpack.c.b16 %v1973, %v1972
    %v1979 = vsel %vm565, %v1944, 0
    %1981 = vmatprep.subr.bf16.mxu0 0
    %1982 = vmatpush1.bf16.msra.mxu0 %v1974
    %1983 = vmatprep.subr.bf16.mxu0 0
    %1984 = vmatpush1.bf16.msra.mxu0 %v1975
    %1985 = vmatprep.subr.bf16.mxu0 0
    %1986 = vmatpush1.bf16.msra.mxu0 0
    %1987 = vmatprep.subr.bf16.mxu0 0
    %1988 = vmatpush1.bf16.msra.mxu0 0
    %1989 = vmatprep.subr.bf16.mxu0 0
    %1990 = vmatpush1.bf16.msra.mxu0 0
    %1991 = vmatprep.subr.bf16.mxu0 0
    %1992 = vmatpush1.bf16.msra.mxu0 0
    %1993 = vmatprep.subr.bf16.mxu0 0
    %1994 = vmatpush1.bf16.msra.mxu0 0
    %1995 = vmatprep.subr.bf16.mxu0 0
    %1996 = vmatpush1.bf16.msra.mxu0 0
    %1997 = vmatprep.subr.bf16.mxu0 0
    %1998 = vmatpush1.bf16.msra.mxu0 0
    %1999 = vmatprep.subr.bf16.mxu0 0
    %2000 = vmatpush1.bf16.msra.mxu0 0
    %2001 = vmatprep.subr.bf16.mxu0 0
    %2002 = vmatpush1.bf16.msra.mxu0 0
    %2003 = vmatprep.subr.bf16.mxu0 0
    %2004 = vmatpush1.bf16.msra.mxu0 0
    %2005 = vmatprep.subr.bf16.mxu0 0
    %2006 = vmatpush1.bf16.msra.mxu0 0
    %2007 = vmatprep.subr.bf16.mxu0 0
    %2008 = vmatpush1.bf16.msra.mxu0 0
    %2009 = vmatprep.subr.bf16.mxu0 0
    %2010 = vmatpush1.bf16.msra.mxu0 0
    %2011 = vmatprep.subr.bf16.mxu0 0
    %2012 = vmatpush1.bf16.msra.mxu0 0
    %2013 = vmatprep.mubr.bf16.mxu0 0
    %2014 = vmatmul.mubr.bf16.gmra.mrb[0].mxu0 %v1979
    %v2015 = vpop.f32.mrb[0].mxu0
    %v2016 = vadd.f32 0.0, %v2015
    %v2017 = vpop.f32.mrb[0].mxu0
    %v2018 = vpop.f32.mrb[0].mxu0
    %v2019 = vadd.f32 0.0, %v2018
    %v2020 = vpop.f32.mrb[0].mxu0
    %2021 = vdwg.mxu0
    %v2022 = vmul.f32 %v1959, %v2016
    %v2023 = vmul.f32 %v1960, %v2019
    %v2024 = vpack.c.bf16 %v2023, %v2022
    %2025 = vrot.lane.b32.xlu0 %v533, 16
    %v2026 = vpop.permute.xlu0 %2025
    %v2028 = vsel %vm538, %v2026, 0
    %2030 = vmatprep.subr.bf16.mxu0 0
    %2031 = vmatpush1.bf16.msra.mxu0 %v2024
    %2032 = vmatprep.subr.bf16.mxu0 0
    %2033 = vmatpush1.bf16.msra.mxu0 0
    %2034 = vmatprep.subr.bf16.mxu0 0
    %2035 = vmatpush1.bf16.msra.mxu0 0
    %2036 = vmatprep.subr.bf16.mxu0 0
    %2037 = vmatpush1.bf16.msra.mxu0 0
    %2038 = vmatprep.subr.bf16.mxu0 0
    %2039 = vmatpush1.bf16.msra.mxu0 0
    %2040 = vmatprep.subr.bf16.mxu0 0
    %2041 = vmatpush1.bf16.msra.mxu0 0
    %2042 = vmatprep.subr.bf16.mxu0 0
    %2043 = vmatpush1.bf16.msra.mxu0 0
    %2044 = vmatprep.subr.bf16.mxu0 0
    %2045 = vmatpush1.bf16.msra.mxu0 0
    %2046 = vmatprep.subr.bf16.mxu0 0
    %2047 = vmatpush1.bf16.msra.mxu0 0
    %2048 = vmatprep.subr.bf16.mxu0 0
    %2049 = vmatpush1.bf16.msra.mxu0 0
    %2050 = vmatprep.subr.bf16.mxu0 0
    %2051 = vmatpush1.bf16.msra.mxu0 0
    %2052 = vmatprep.subr.bf16.mxu0 0
    %2053 = vmatpush1.bf16.msra.mxu0 0
    %2054 = vmatprep.subr.bf16.mxu0 0
    %2055 = vmatpush1.bf16.msra.mxu0 0
    %2056 = vmatprep.subr.bf16.mxu0 0
    %2057 = vmatpush1.bf16.msra.mxu0 0
    %2058 = vmatprep.subr.bf16.mxu0 0
    %2059 = vmatpush1.bf16.msra.mxu0 0
    %2060 = vmatprep.subr.bf16.mxu0 0
    %2061 = vmatpush1.bf16.msra.mxu0 0
    %2062 = vmatprep.mubr.bf16.mxu0 0
    %2063 = vmatmul.mubr.bf16.gmra.mrb[0].mxu0 %v2028
    %v2064 = vpop.f32.mrb[0].mxu0
    %v2065 = vadd.f32 %v2022, %v2064
    %v2066 = vpop.f32.mrb[0].mxu0
    %v2067 = vpop.f32.mrb[0].mxu0
    %v2068 = vadd.f32 %v2023, %v2067
    %v2069 = vpop.f32.mrb[0].mxu0
    %2070 = vdwg.mxu0
    %v2071 = vmul.f32 %v1959, %v2065
    %v2072 = vmul.f32 %v1960, %v2068
    %s2073 = scalar_lea.vmem %s9, 7
    %v2074 = vld [vmem:[%s2073] sm:$0x1]
    %v2076 = vlaneseq
    %v2077 = vshrl.u32 %v2076, 7
    %v2078 = vsub.s32 0, %v2077
    %v2079 = vrot.slane %v2074, %v2078
    %v2081 = vadd.f32 %v2071, %v2079
    %v2082 = vadd.f32 %v2072, %v2079
    %s2083 = sld [smem:[#allocation6 + $0x7]]
    %vm2084 = vcmp.ge.f32.partialorder %v2081, 0.0
    %vm2085 = vcmp.ge.f32.partialorder %v2082, 0.0
    %v2086 = vstv %s2083
    %v2087 = vmul.f32 %v2086, %v2081
    %v2088 = vmul.f32 %v2086, %v2082
    %v2089 = vsel %vm2084, %v2081, %v2087
    %v2090 = vsel %vm2085, %v2082, %v2088
    %v2091 = vsel %vm565, %v2089, 0.0
    %v2092 = vsel %vm565, %v2090, 0.0
    %v2093 = vadd.f32 %v2091, %v2092
    %v2094 = vrot.slane %v2093, 4
    %v2095 = vadd.f32 %v2093, %v2094
    %v2096 = vrot.slane %v2095, 2
    %v2097 = vadd.f32 %v2095, %v2096
    %v2098 = vrot.slane %v2097, 1
    %v2099 = vadd.f32 %v2097, %v2098
    %v2100 = vmul.f32 %v2099, %v685
    %s2101 = scalar_lea.vmem %s13, 7
    %v2102 = vld [vmem:[%s2101] sm:$0x1]
    %v2103 = vmul.f32 %v2100, %v2102
    %v2104 = vlaneseq
    %v2105 = vshrl.u32 %v2104, 7
    %v2106 = vsub.s32 0, %v2105
    %v2107 = vrot.slane %v2103, %v2106
    %v2108 = vsub.f32 %v2089, %v2107
    %v2109 = vsub.f32 %v2090, %v2107
    %v2110 = vmul.f32 %v2108, %v2108
    %v2111 = vmul.f32 %v2109, %v2109
    %v2112 = vsel %vm565, %v2110, 0.0
    %v2113 = vsel %vm565, %v2111, 0.0
    %v2114 = vadd.f32 %v2112, %v2113
    %v2115 = vrot.slane %v2114, 4
    %v2116 = vadd.f32 %v2114, %v2115
    %v2117 = vrot.slane %v2116, 2
    %v2118 = vadd.f32 %v2116, %v2117
    %v2119 = vrot.slane %v2118, 1
    %v2120 = vadd.f32 %v2118, %v2119
    %v2121 = vmul.f32 %v2120, %v685
    %s2122 = scalar_lea.vmem %s11, 7
    %v2123 = vld [vmem:[%s2122] sm:$0x1]
    %v2125 = vlaneseq
    %v2126 = vshrl.u32 %v2125, 7
    %v2127 = vsub.s32 0, %v2126
    %v2128 = vrot.slane %v2123, %v2127
    %v2130 = vmul.f32 %v2128, %v2108
    %v2131 = vmul.f32 %v2128, %v2109
    %v2132 = vadd.f32 %v2121, 1e-05
    %v2133 = vrsqrt.pop %v2132
    %v2134 = vmul.f32 %v2130, %v2133
    %v2135 = vmul.f32 %v2131, %v2133
    %s2136 = scalar_lea.vmem %s12, 7
    %v2137 = vld [vmem:[%s2136] sm:$0x1]
    %v2139 = vlaneseq
    %v2140 = vshrl.u32 %v2139, 7
    %v2141 = vsub.s32 0, %v2140
    %v2142 = vrot.slane %v2137, %v2141
    %v2144 = vadd.f32 %v2134, %v2142
    %v2145 = vadd.f32 %v2135, %v2142
    %v2146 = vpack.c.bf16 %v2145, %v2144
    %v2147 = vsel %vm538, %v527, 0.0
    %2148 = vadd.xlane.f32.xlu0 %v2147
    %v2149 = vpop.xlane.xlu0 %2148
    %v2150 = vsel %vm538, %v531, 0.0
    %2151 = vadd.xlane.f32.xlu0 %v2150
    %v2152 = vpop.xlane.xlu0 %2151
    %v2153 = vadd.f32 %v2149, 1.0
    %v2154 = vadd.f32 %v2152, 1.0
    %v2155 = vrsqrt.pop %v2153
    %v2156 = vrsqrt.pop %v2154
    %s2157 = scalar_lea.vmem [#allocation2], 128
    %v2158 = vld [vmem:[%s2157] sm:$0xf]
    %v2159 = vld [vmem:[%s2157 + $0x4] sm:$0xf]
    %v2160 = vld [vmem:[%s2157 + $0x8] sm:$0xf]
    %v2161 = vld [vmem:[%s2157 + $0xc] sm:$0xf]
    %v2166 = vunpack.c.l.b16 %v2158
    %v2167 = vunpack.c.l.b16 %v2159
    %v2168 = vunpack.c.l.b16 %v2160
    %v2169 = vunpack.c.l.b16 %v2161
    %v2170 = vpack.c.b16 %v2167, %v2166
    %v2171 = vpack.c.b16 %v2169, %v2168
    %v2175 = vsel %vm565, %v2146, 0
    %2177 = vmatprep.subr.bf16.mxu0 0
    %2178 = vmatpush1.bf16.msra.mxu0 %v2170
    %2179 = vmatprep.subr.bf16.mxu0 0
    %2180 = vmatpush1.bf16.msra.mxu0 %v2171
    %2181 = vmatprep.subr.bf16.mxu0 0
    %2182 = vmatpush1.bf16.msra.mxu0 0
    %2183 = vmatprep.subr.bf16.mxu0 0
    %2184 = vmatpush1.bf16.msra.mxu0 0
    %2185 = vmatprep.subr.bf16.mxu0 0
    %2186 = vmatpush1.bf16.msra.mxu0 0
    %2187 = vmatprep.subr.bf16.mxu0 0
    %2188 = vmatpush1.bf16.msra.mxu0 0
    %2189 = vmatprep.subr.bf16.mxu0 0
    %2190 = vmatpush1.bf16.msra.mxu0 0
    %2191 = vmatprep.subr.bf16.mxu0 0
    %2192 = vmatpush1.bf16.msra.mxu0 0
    %2193 = vmatprep.subr.bf16.mxu0 0
    %2194 = vmatpush1.bf16.msra.mxu0 0
    %2195 = vmatprep.subr.bf16.mxu0 0
    %2196 = vmatpush1.bf16.msra.mxu0 0
    %2197 = vmatprep.subr.bf16.mxu0 0
    %2198 = vmatpush1.bf16.msra.mxu0 0
    %2199 = vmatprep.subr.bf16.mxu0 0
    %2200 = vmatpush1.bf16.msra.mxu0 0
    %2201 = vmatprep.subr.bf16.mxu0 0
    %2202 = vmatpush1.bf16.msra.mxu0 0
    %2203 = vmatprep.subr.bf16.mxu0 0
    %2204 = vmatpush1.bf16.msra.mxu0 0
    %2205 = vmatprep.subr.bf16.mxu0 0
    %2206 = vmatpush1.bf16.msra.mxu0 0
    %2207 = vmatprep.subr.bf16.mxu0 0
    %2208 = vmatpush1.bf16.msra.mxu0 0
    %2209 = vmatprep.mubr.bf16.mxu0 0
    %2210 = vmatmul.mubr.bf16.gmra.mrb[0].mxu0 %v2175
    %v2211 = vpop.f32.mrb[0].mxu0
    %v2212 = vadd.f32 0.0, %v2211
    %v2213 = vpop.f32.mrb[0].mxu0
    %v2214 = vpop.f32.mrb[0].mxu0
    %v2215 = vadd.f32 0.0, %v2214
    %v2216 = vpop.f32.mrb[0].mxu0
    %2217 = vdwg.mxu0
    %v2218 = vmul.f32 %v2155, %v2212
    %v2219 = vmul.f32 %v2156, %v2215
    %v2220 = vpack.c.bf16 %v2219, %v2218
    %v2222 = vsel %vm538, %v534, 0
    %2224 = vmatprep.subr.bf16.mxu0 0
    %2225 = vmatpush1.bf16.msra.mxu0 %v2220
    %2226 = vmatprep.subr.bf16.mxu0 0
    %2227 = vmatpush1.bf16.msra.mxu0 0
    %2228 = vmatprep.subr.bf16.mxu0 0
    %2229 = vmatpush1.bf16.msra.mxu0 0
    %2230 = vmatprep.subr.bf16.mxu0 0
    %2231 = vmatpush1.bf16.msra.mxu0 0
    %2232 = vmatprep.subr.bf16.mxu0 0
    %2233 = vmatpush1.bf16.msra.mxu0 0
    %2234 = vmatprep.subr.bf16.mxu0 0
    %2235 = vmatpush1.bf16.msra.mxu0 0
    %2236 = vmatprep.subr.bf16.mxu0 0
    %2237 = vmatpush1.bf16.msra.mxu0 0
    %2238 = vmatprep.subr.bf16.mxu0 0
    %2239 = vmatpush1.bf16.msra.mxu0 0
    %2240 = vmatprep.subr.bf16.mxu0 0
    %2241 = vmatpush1.bf16.msra.mxu0 0
    %2242 = vmatprep.subr.bf16.mxu0 0
    %2243 = vmatpush1.bf16.msra.mxu0 0
    %2244 = vmatprep.subr.bf16.mxu0 0
    %2245 = vmatpush1.bf16.msra.mxu0 0
    %2246 = vmatprep.subr.bf16.mxu0 0
    %2247 = vmatpush1.bf16.msra.mxu0 0
    %2248 = vmatprep.subr.bf16.mxu0 0
    %2249 = vmatpush1.bf16.msra.mxu0 0
    %2250 = vmatprep.subr.bf16.mxu0 0
    %2251 = vmatpush1.bf16.msra.mxu0 0
    %2252 = vmatprep.subr.bf16.mxu0 0
    %2253 = vmatpush1.bf16.msra.mxu0 0
    %2254 = vmatprep.subr.bf16.mxu0 0
    %2255 = vmatpush1.bf16.msra.mxu0 0
    %2256 = vmatprep.mubr.bf16.mxu0 0
    %2257 = vmatmul.mubr.bf16.gmra.mrb[0].mxu0 %v2222
    %v2258 = vpop.f32.mrb[0].mxu0
    %v2259 = vadd.f32 %v2218, %v2258
    %v2260 = vpop.f32.mrb[0].mxu0
    %v2261 = vpop.f32.mrb[0].mxu0
    %v2262 = vadd.f32 %v2219, %v2261
    %v2263 = vpop.f32.mrb[0].mxu0
    %2264 = vdwg.mxu0
    %v2265 = vmul.f32 %v2155, %v2259
    %v2266 = vmul.f32 %v2156, %v2262
    %s2267 = scalar_lea.vmem %s9, 8
    %v2268 = vld [vmem:[%s2267] sm:$0x1]
    %v2270 = vlaneseq
    %v2271 = vshrl.u32 %v2270, 7
    %v2272 = vsub.s32 0, %v2271
    %v2273 = vrot.slane %v2268, %v2272
    %v2275 = vadd.f32 %v2265, %v2273
    %v2276 = vadd.f32 %v2266, %v2273
    %s2277 = sld [smem:[#allocation6 + $0x8]]
    %vm2278 = vcmp.ge.f32.partialorder %v2275, 0.0
    %vm2279 = vcmp.ge.f32.partialorder %v2276, 0.0
    %v2280 = vstv %s2277
    %v2281 = vmul.f32 %v2280, %v2275
    %v2282 = vmul.f32 %v2280, %v2276
    %v2283 = vsel %vm2278, %v2275, %v2281
    %v2284 = vsel %vm2279, %v2276, %v2282
    %v2285 = vsel %vm565, %v2283, 0.0
    %v2286 = vsel %vm565, %v2284, 0.0
    %v2287 = vadd.f32 %v2285, %v2286
    %v2288 = vrot.slane %v2287, 4
    %v2289 = vadd.f32 %v2287, %v2288
    %v2290 = vrot.slane %v2289, 2
    %v2291 = vadd.f32 %v2289, %v2290
    %v2292 = vrot.slane %v2291, 1
    %v2293 = vadd.f32 %v2291, %v2292
    %v2294 = vmul.f32 %v2293, %v685
    %s2295 = scalar_lea.vmem %s13, 8
    %v2296 = vld [vmem:[%s2295] sm:$0x1]
    %v2297 = vmul.f32 %v2294, %v2296
    %v2298 = vlaneseq
    %v2299 = vshrl.u32 %v2298, 7
    %v2300 = vsub.s32 0, %v2299
    %v2301 = vrot.slane %v2297, %v2300
    %v2302 = vsub.f32 %v2283, %v2301
    %v2303 = vsub.f32 %v2284, %v2301
    %v2304 = vmul.f32 %v2302, %v2302
    %v2305 = vmul.f32 %v2303, %v2303
    %v2306 = vsel %vm565, %v2304, 0.0
    %v2307 = vsel %vm565, %v2305, 0.0
    %v2308 = vadd.f32 %v2306, %v2307
    %v2309 = vrot.slane %v2308, 4
    %v2310 = vadd.f32 %v2308, %v2309
    %v2311 = vrot.slane %v2310, 2
    %v2312 = vadd.f32 %v2310, %v2311
    %v2313 = vrot.slane %v2312, 1
    %v2314 = vadd.f32 %v2312, %v2313
    %v2315 = vmul.f32 %v2314, %v685
    %s2316 = scalar_lea.vmem %s11, 8
    %v2317 = vld [vmem:[%s2316] sm:$0x1]
    %v2319 = vlaneseq
    %v2320 = vshrl.u32 %v2319, 7
    %v2321 = vsub.s32 0, %v2320
    %v2322 = vrot.slane %v2317, %v2321
    %v2324 = vmul.f32 %v2322, %v2302
    %v2325 = vmul.f32 %v2322, %v2303
    %v2326 = vadd.f32 %v2315, 1e-05
    %v2327 = vrsqrt.pop %v2326
    %v2328 = vmul.f32 %v2324, %v2327
    %v2329 = vmul.f32 %v2325, %v2327
    %s2330 = scalar_lea.vmem %s12, 8
    %v2331 = vld [vmem:[%s2330] sm:$0x1]
    %v2333 = vlaneseq
    %v2334 = vshrl.u32 %v2333, 7
    %v2335 = vsub.s32 0, %v2334
    %v2336 = vrot.slane %v2331, %v2335
    %v2338 = vadd.f32 %v2328, %v2336
    %v2339 = vadd.f32 %v2329, %v2336
    %v2340 = vpack.c.bf16 %v2339, %v2338
    %2343 = vrot.lane.b32.xlu0 %v527, 112
    %v2344 = vpop.permute.xlu0 %2343
    %2345 = vrot.lane.b32.xlu0 %v531, 112
    %v2346 = vpop.permute.xlu0 %2345
    %v2349 = vsel %vm538, %v2344, 0.0
    %2350 = vadd.xlane.f32.xlu0 %v2349
    %v2351 = vpop.xlane.xlu0 %2350
    %v2352 = vsel %vm538, %v2346, 0.0
    %2353 = vadd.xlane.f32.xlu0 %v2352
    %v2354 = vpop.xlane.xlu0 %2353
    %v2355 = vadd.f32 %v2351, 1.0
    %v2356 = vadd.f32 %v2354, 1.0
    %v2357 = vrsqrt.pop %v2355
    %v2358 = vrsqrt.pop %v2356
    %s2359 = scalar_lea.vmem [#allocation2], 144
    %v2360 = vld [vmem:[%s2359] sm:$0xf]
    %v2361 = vld [vmem:[%s2359 + $0x4] sm:$0xf]
    %v2362 = vld [vmem:[%s2359 + $0x8] sm:$0xf]
    %v2363 = vld [vmem:[%s2359 + $0xc] sm:$0xf]
    %v2368 = vunpack.c.l.b16 %v2360
    %v2369 = vunpack.c.l.b16 %v2361
    %v2370 = vunpack.c.l.b16 %v2362
    %v2371 = vunpack.c.l.b16 %v2363
    %v2372 = vpack.c.b16 %v2369, %v2368
    %v2373 = vpack.c.b16 %v2371, %v2370
    %v2377 = vsel %vm565, %v2340, 0
    %2379 = vmatprep.subr.bf16.mxu0 0
    %2380 = vmatpush1.bf16.msra.mxu0 %v2372
    %2381 = vmatprep.subr.bf16.mxu0 0
    %2382 = vmatpush1.bf16.msra.mxu0 %v2373
    %2383 = vmatprep.subr.bf16.mxu0 0
    %2384 = vmatpush1.bf16.msra.mxu0 0
    %2385 = vmatprep.subr.bf16.mxu0 0
    %2386 = vmatpush1.bf16.msra.mxu0 0
    %2387 = vmatprep.subr.bf16.mxu0 0
    %2388 = vmatpush1.bf16.msra.mxu0 0
    %2389 = vmatprep.subr.bf16.mxu0 0
    %2390 = vmatpush1.bf16.msra.mxu0 0
    %2391 = vmatprep.subr.bf16.mxu0 0
    %2392 = vmatpush1.bf16.msra.mxu0 0
    %2393 = vmatprep.subr.bf16.mxu0 0
    %2394 = vmatpush1.bf16.msra.mxu0 0
    %2395 = vmatprep.subr.bf16.mxu0 0
    %2396 = vmatpush1.bf16.msra.mxu0 0
    %2397 = vmatprep.subr.bf16.mxu0 0
    %2398 = vmatpush1.bf16.msra.mxu0 0
    %2399 = vmatprep.subr.bf16.mxu0 0
    %2400 = vmatpush1.bf16.msra.mxu0 0
    %2401 = vmatprep.subr.bf16.mxu0 0
    %2402 = vmatpush1.bf16.msra.mxu0 0
    %2403 = vmatprep.subr.bf16.mxu0 0
    %2404 = vmatpush1.bf16.msra.mxu0 0
    %2405 = vmatprep.subr.bf16.mxu0 0
    %2406 = vmatpush1.bf16.msra.mxu0 0
    %2407 = vmatprep.subr.bf16.mxu0 0
    %2408 = vmatpush1.bf16.msra.mxu0 0
    %2409 = vmatprep.subr.bf16.mxu0 0
    %2410 = vmatpush1.bf16.msra.mxu0 0
    %2411 = vmatprep.mubr.bf16.mxu0 0
    %2412 = vmatmul.mubr.bf16.gmra.mrb[0].mxu0 %v2377
    %v2413 = vpop.f32.mrb[0].mxu0
    %v2414 = vadd.f32 0.0, %v2413
    %v2415 = vpop.f32.mrb[0].mxu0
    %v2416 = vpop.f32.mrb[0].mxu0
    %v2417 = vadd.f32 0.0, %v2416
    %v2418 = vpop.f32.mrb[0].mxu0
    %2419 = vdwg.mxu0
    %v2420 = vmul.f32 %v2357, %v2414
    %v2421 = vmul.f32 %v2358, %v2417
    %v2422 = vpack.c.bf16 %v2421, %v2420
    %2424 = vrot.lane.b32.xlu0 %v534, 112
    %v2425 = vpop.permute.xlu0 %2424
    %v2427 = vsel %vm538, %v2425, 0
    %2429 = vmatprep.subr.bf16.mxu0 0
    %2430 = vmatpush1.bf16.msra.mxu0 %v2422
    %2431 = vmatprep.subr.bf16.mxu0 0
    %2432 = vmatpush1.bf16.msra.mxu0 0
    %2433 = vmatprep.subr.bf16.mxu0 0
    %2434 = vmatpush1.bf16.msra.mxu0 0
    %2435 = vmatprep.subr.bf16.mxu0 0
    %2436 = vmatpush1.bf16.msra.mxu0 0
    %2437 = vmatprep.subr.bf16.mxu0 0
    %2438 = vmatpush1.bf16.msra.mxu0 0
    %2439 = vmatprep.subr.bf16.mxu0 0
    %2440 = vmatpush1.bf16.msra.mxu0 0
    %2441 = vmatprep.subr.bf16.mxu0 0
    %2442 = vmatpush1.bf16.msra.mxu0 0
    %2443 = vmatprep.subr.bf16.mxu0 0
    %2444 = vmatpush1.bf16.msra.mxu0 0
    %2445 = vmatprep.subr.bf16.mxu0 0
    %2446 = vmatpush1.bf16.msra.mxu0 0
    %2447 = vmatprep.subr.bf16.mxu0 0
    %2448 = vmatpush1.bf16.msra.mxu0 0
    %2449 = vmatprep.subr.bf16.mxu0 0
    %2450 = vmatpush1.bf16.msra.mxu0 0
    %2451 = vmatprep.subr.bf16.mxu0 0
    %2452 = vmatpush1.bf16.msra.mxu0 0
    %2453 = vmatprep.subr.bf16.mxu0 0
    %2454 = vmatpush1.bf16.msra.mxu0 0
    %2455 = vmatprep.subr.bf16.mxu0 0
    %2456 = vmatpush1.bf16.msra.mxu0 0
    %2457 = vmatprep.subr.bf16.mxu0 0
    %2458 = vmatpush1.bf16.msra.mxu0 0
    %2459 = vmatprep.subr.bf16.mxu0 0
    %2460 = vmatpush1.bf16.msra.mxu0 0
    %2461 = vmatprep.mubr.bf16.mxu0 0
    %2462 = vmatmul.mubr.bf16.gmra.mrb[0].mxu0 %v2427
    %v2463 = vpop.f32.mrb[0].mxu0
    %v2464 = vadd.f32 %v2420, %v2463
    %v2465 = vpop.f32.mrb[0].mxu0
    %v2466 = vpop.f32.mrb[0].mxu0
    %v2467 = vadd.f32 %v2421, %v2466
    %v2468 = vpop.f32.mrb[0].mxu0
    %2469 = vdwg.mxu0
    %v2470 = vmul.f32 %v2357, %v2464
    %v2471 = vmul.f32 %v2358, %v2467
    %s2472 = scalar_lea.vmem %s9, 9
    %v2473 = vld [vmem:[%s2472] sm:$0x1]
    %v2475 = vlaneseq
    %v2476 = vshrl.u32 %v2475, 7
    %v2477 = vsub.s32 0, %v2476
    %v2478 = vrot.slane %v2473, %v2477
    %v2480 = vadd.f32 %v2470, %v2478
    %v2481 = vadd.f32 %v2471, %v2478
    %2482 = vst.msk [vmem:[#allocation7] sm:$0xff] %vm565, %v2480
    %2483 = vst.msk [vmem:[#allocation7 + $0x8] sm:$0xff] %vm565, %v2481
    // Predicated region
    $region66: #{pfae_pdn_forward.1} parent=1 // pred_check
      _
    $region67: #{pfae_pdn_forward.1} parent=1 // pred_check_branch
      %2485 = sbr.rel (0) target = $region69
    $region68: #{pfae_pdn_forward.1} parent=1 // pred_region
      %s2487 = ssub.s32 256, 256
      %2488 = vsyncadd [#allocation4], %s2487
      %s2489 = sshll.u32 [#allocation7], 4
      %s2490 = int_to_ptr.vmem [resolvable:$true] %s2489
      %2495 = dma.vmem_to_hbm [thread:$0]  %s2490, 256, %s14, [#allocation4], 128, 128, 8
    $region69: #{pfae_pdn_forward.1} parent=1 // pred_fallthru
      _
    // Predicated region
    $region70: #{pfae_pdn_forward.1} parent=1 // pred_check
      _
    $region71: #{pfae_pdn_forward.1} parent=1 // pred_check_branch
      %2497 = sbr.rel (0) target = $region73
    $region72: #{pfae_pdn_forward.1} parent=1 // pred_region
      %2498 = dma.done [#allocation4], 256
    $region73: #{pfae_pdn_forward.1} parent=1 // pred_fallthru
      _
    %2499 = vsyncpa [#allocation3], 1
    %2500 = vsyncpa [#allocation4], 1
    %2501 = vsyncpa [#allocation5], 1

</llo_original>
